<compile_context>
chip_gen: v7x
topology: tpu7x:2x2x1
jax: 0.10.0
libtpu: 0.0.40
codegen_flags: <defaults>
</compile_context>

<pallas_src>
import functools

import jax
import jax.numpy as jnp
from jax.experimental import pallas as pl


_CLAMP = 50.0


# -----------------------------------------------------------------------------
# In-kernel helpers
# -----------------------------------------------------------------------------
def _lstm_cell(gates, c_prev, H):
    """LSTM cell update from pre-activation gates (PyTorch i, f, g, o order).
    One sigmoid over the packed [B, 4H] vreg; only g takes a separate tanh."""
    sig = jax.nn.sigmoid(gates)
    i_g = sig[:, 0 * H:1 * H]
    f_g = sig[:, 1 * H:2 * H]
    o_g = sig[:, 3 * H:4 * H]
    g_g = jnp.tanh(gates[:, 2 * H:3 * H])
    c_new = f_g * c_prev + i_g * g_g
    h_new = o_g * jnp.tanh(c_new)
    return h_new, c_new


def _stack_step(xg0, h_list, c_list, wb_refs, n_layers, E, H):
    """All LSTM layers for one timestep.

    xg0:     [B, 4H] precomputed layer-0 input gates (x_t @ W_ih0).
    h/c:     python lists of [B, H] previous-step state (values in vregs).
    wb_refs: [w_0, b_0, ..., w_{L-1}, b_{L-1}] resident VMEM refs;
             w_0 = [E+H, 4H] (= [W_ih^T; W_hh^T]), w_{l>0} = [2H, 4H],
             b_l = [1, 4H] (= b_ih + b_hh).
    Returns (top_h, new_h, new_c), all UNclamped; the caller decides clamping
    so layer-to-layer inputs match PyTorch nn.LSTM + external clamp semantics.
    """
    w0_ref, b0_ref = wb_refs[0], wb_refs[1]
    gates = (xg0
             + jnp.dot(h_list[0], w0_ref[E:, :],
                       preferred_element_type=jnp.float32)
             + b0_ref[...])
    h0, c0 = _lstm_cell(gates, c_list[0], H)
    new_h, new_c = [h0], [c0]
    inp = h0
    for l in range(1, n_layers):
        w_ref, b_ref = wb_refs[2 * l], wb_refs[2 * l + 1]
        xh = jnp.concatenate([inp, h_list[l]], axis=-1)          # [B, 2H] lanes
        gates = (jnp.dot(xh, w_ref[...], preferred_element_type=jnp.float32)
                 + b_ref[...])
        hl, cl = _lstm_cell(gates, c_list[l], H)
        new_h.append(hl)
        new_c.append(cl)
        inp = hl
    return inp, new_h, new_c


# -----------------------------------------------------------------------------
# Fused whole-model kernel (no grid): embeddings + encoder + decoder + proj
# -----------------------------------------------------------------------------
def _seq2seq_kernel(L, S, T, B, H, E, *refs):
    enc_tok_ref, dec_tok_ref, enc_emb_ref, dec_emb_ref = refs[:4]
    idx = 4
    enc_wb = refs[idx:idx + 2 * L]; idx += 2 * L
    dec_wb = refs[idx:idx + 2 * L]; idx += 2 * L
    out_w_ref, out_b_ref = refs[idx], refs[idx + 1]; idx += 2
    logits_ref, h_fin_ref = refs[idx], refs[idx + 1]

    f32 = jnp.float32
    Vsrc = enc_emb_ref.shape[0]
    Vref = dec_emb_ref.shape[0]

    # ---- fused embedding + layer-0 input projection (non-recurrent) ---------
    enc_proj = jnp.dot(enc_emb_ref[...], enc_wb[0][:E, :],
                       preferred_element_type=f32)               # [Vsrc, 4H]
    dec_proj = jnp.dot(dec_emb_ref[...], dec_wb[0][:E, :],
                       preferred_element_type=f32)               # [Vref, 4H]

    enc_oh = (enc_tok_ref[...] ==
              jax.lax.broadcasted_iota(jnp.int32, (S * B, Vsrc), 1)).astype(f32)
    enc_xg = jnp.dot(enc_oh, enc_proj, preferred_element_type=f32)  # [S*B, 4H]

    dec_oh = (dec_tok_ref[...] ==
              jax.lax.broadcasted_iota(jnp.int32, (T * B, Vref), 1)).astype(f32)
    dec_xg = jnp.dot(dec_oh, dec_proj, preferred_element_type=f32)  # [T*B, 4H]

    # ---- encoder: fully unrolled time recurrence, state in vregs ------------
    h = [jnp.zeros((B, H), f32) for _ in range(L)]
    c = [jnp.zeros((B, H), f32) for _ in range(L)]
    for t in range(S):
        _, h, c = _stack_step(enc_xg[t * B:(t + 1) * B, :], h, c,
                              enc_wb, L, E, H)

    # Encoder clamps only the final (hidden, cell) it returns; this becomes
    # the decoder's initial state (in-kernel, no HBM round-trip).
    h = [jnp.clip(x, -_CLAMP, _CLAMP) for x in h]
    c = [jnp.clip(x, -_CLAMP, _CLAMP) for x in c]

    # ---- decoder: unrolled recurrence; projection hoisted out of the loop ---
    tops = []
    for t in range(T):
        top, h, c = _stack_step(dec_xg[t * B:(t + 1) * B, :], h, c,
                                dec_wb, L, E, H)
        tops.append(top)                       # unclamped (projection input)
        # PyTorch clamps only the carried (hidden, cell) each step.
        h = [jnp.clip(x, -_CLAMP, _CLAMP) for x in h]
        c = [jnp.clip(x, -_CLAMP, _CLAMP) for x in c]

    top_all = jnp.concatenate(tops, axis=0)                      # [T*B, H]
    logits_ref[...] = (jnp.dot(top_all, out_w_ref[...],
                               preferred_element_type=f32)
                       + out_b_ref[...])                         # single slab
    for l in range(L):
        h_fin_ref[l] = h[l]


# -----------------------------------------------------------------------------
# Parameter initialization (deterministic, synthetic)
# -----------------------------------------------------------------------------
def init_params(key, src_vocab, ref_vocab, emb, hidden, n_layers):
    def uni(k, shape):
        return jax.random.uniform(k, shape, jnp.float32, -0.1, 0.1)

    keys = iter(jax.random.split(key, 4 + 4 * n_layers))
    params = {}

    # Encoder embedding (padding_idx=2 row zeroed) + LSTM (biases zero).
    params["enc_embedding"] = uni(next(keys), (src_vocab, emb)).at[2].set(0.0)
    enc_lstm = []
    for l in range(n_layers):
        in_dim = emb if l == 0 else hidden
        w = uni(next(keys), (in_dim + hidden, 4 * hidden))   # [W_ih^T; W_hh^T]
        b = jnp.zeros((1, 4 * hidden), jnp.float32)          # nn.init.zeros_
        enc_lstm.append((w, b))
    params["enc_lstm"] = enc_lstm

    # Decoder embedding + LSTM + output projection.
    params["dec_embedding"] = uni(next(keys), (ref_vocab, emb)).at[2].set(0.0)
    dec_lstm = []
    for l in range(n_layers):
        in_dim = emb if l == 0 else hidden
        w = uni(next(keys), (in_dim + hidden, 4 * hidden))
        b = uni(next(keys), (1, 4 * hidden))                 # b_ih + b_hh combined
        dec_lstm.append((w, b))
    params["dec_lstm"] = dec_lstm
    params["out_w"] = uni(next(keys), (hidden, ref_vocab))
    params["out_b"] = jnp.zeros((1, ref_vocab), jnp.float32)  # constant_(0.0)
    return params


# -----------------------------------------------------------------------------
# Model forward (single pallas_call)
# -----------------------------------------------------------------------------
def seq2seq_forward(params, input_tensor, output_tensor, source_len,
                    hidden_size, n_layers, max_len):
    del source_len  # only used by local attention (not on this path)
    B = input_tensor.shape[0]
    B_pad = max(8, ((B + 7) // 8) * 8)                # pad batch to 8 sublanes
    pad = B_pad - B

    inp_p = jnp.pad(input_tensor.astype(jnp.int32), ((0, pad), (0, 0)))
    tgt_p = jnp.pad(output_tensor.astype(jnp.int32), ((0, pad), (0, 0)))

    S = inp_p.shape[1]
    T = max_len + 1
    H, L = hidden_size, n_layers
    E = params["enc_embedding"].shape[1]
    V = params["out_w"].shape[1]

    # Time-major, flattened token ids (row = t*B_pad + b); padded rows carry
    # token 0 — their garbage state is sliced off below.
    enc_tok = inp_p.T.reshape(S * B_pad, 1)
    sos = jnp.zeros((1, B_pad), jnp.int32)            # SOS token = 0
    dec_tok = jnp.concatenate([sos, tgt_p[:, :T - 1].T],
                              axis=0).reshape(T * B_pad, 1)

    inputs = [enc_tok, dec_tok, params["enc_embedding"], params["dec_embedding"]]
    for w, b in params["enc_lstm"]:
        inputs += [w, b]
    for w, b in params["dec_lstm"]:
        inputs += [w, b]
    inputs += [params["out_w"], params["out_b"]]

    logits_flat, h_fin = pl.pallas_call(
        functools.partial(_seq2seq_kernel, L, S, T, B_pad, H, E),
        out_shape=(jax.ShapeDtypeStruct((T * B_pad, V), jnp.float32),
                   jax.ShapeDtypeStruct((L, B_pad, H), jnp.float32)),
    )(*inputs)

    decoder_outputs = logits_flat.reshape(T, B_pad, V).transpose(1, 0, 2)[:B]
    decoder_hidden = h_fin[:, :B, :]
    return decoder_outputs, decoder_hidden


# -----------------------------------------------------------------------------
if __name__ == "__main__":
    SRC_VOCAB = 16
    REF_VOCAB = 16
    EMB = 16
    HIDDEN = 32
    N_LAYERS = 2
    MAX_LEN = 8
    BATCH = 2
    SRC_SEQ = 8

    key = jax.random.PRNGKey(0)
    k_param, k_in, k_out = jax.random.split(key, 3)

    params = init_params(k_param, SRC_VOCAB, REF_VOCAB, EMB, HIDDEN, N_LAYERS)

    input_tensor = jax.random.randint(k_in, (BATCH, SRC_SEQ), 0, SRC_VOCAB,
                                      dtype=jnp.int32)
    # Decoder consumes target_tensor[:, i] for i in [0, MAX_LEN] -> MAX_LEN+1 cols.
    output_tensor = jax.random.randint(k_out, (BATCH, MAX_LEN + 1), 0, REF_VOCAB,
                                       dtype=jnp.int32)
    source_len = jnp.full((BATCH,), SRC_SEQ, dtype=jnp.float32)

    fwd = jax.jit(functools.partial(seq2seq_forward,
                                    hidden_size=HIDDEN,
                                    n_layers=N_LAYERS,
                                    max_len=MAX_LEN))
    decoder_outputs, decoder_hidden = fwd(params, input_tensor, output_tensor,
                                          source_len)
    jax.block_until_ready((decoder_outputs, decoder_hidden))

    assert decoder_outputs.shape == (BATCH, MAX_LEN + 1, REF_VOCAB)
    assert decoder_hidden.shape == (N_LAYERS, BATCH, HIDDEN)
    assert bool(jnp.all(jnp.isfinite(decoder_outputs)))
    assert bool(jnp.all(jnp.isfinite(decoder_hidden)))
    print("KERNEL_OK")
</pallas_src>

<mosaic_0001>
module attributes {stable_mosaic.version = 11 : i64} {
  func.func @_seq2seq_kernel(%arg0: memref<64x1xi32, #tpu.memory_space<vmem>>, %arg1: memref<72x1xi32, #tpu.memory_space<vmem>>, %arg2: memref<16x16xf32, #tpu.memory_space<vmem>>, %arg3: memref<16x16xf32, #tpu.memory_space<vmem>>, %arg4: memref<48x128xf32, #tpu.memory_space<vmem>>, %arg5: memref<1x128xf32, #tpu.memory_space<vmem>>, %arg6: memref<64x128xf32, #tpu.memory_space<vmem>>, %arg7: memref<1x128xf32, #tpu.memory_space<vmem>>, %arg8: memref<48x128xf32, #tpu.memory_space<vmem>>, %arg9: memref<1x128xf32, #tpu.memory_space<vmem>>, %arg10: memref<64x128xf32, #tpu.memory_space<vmem>>, %arg11: memref<1x128xf32, #tpu.memory_space<vmem>>, %arg12: memref<32x16xf32, #tpu.memory_space<vmem>>, %arg13: memref<1x16xf32, #tpu.memory_space<vmem>>, %arg14: memref<72x16xf32, #tpu.memory_space<vmem>>, %arg15: memref<2x8x32xf32, #tpu.memory_space<vmem>>) attributes {dimension_semantics = [], scalar_prefetch = 0 : i64, scratch_operands = 0 : i64, tpu.core_type = #tpu.core_type<tc>} {
    %c0 = arith.constant 0 : index
    %c0_0 = arith.constant 0 : index
    %0 = vector.load %arg2[%c0, %c0_0] : memref<16x16xf32, #tpu.memory_space<vmem>>, vector<16x16xf32>
    %c0_1 = arith.constant 0 : index
    %c0_2 = arith.constant 0 : index
    %1 = vector.load %arg4[%c0_1, %c0_2] : memref<48x128xf32, #tpu.memory_space<vmem>>, vector<16x128xf32>
    %cst = arith.constant dense<0.000000e+00> : vector<16x128xf32>
    %2 = tpu.matmul %0, %1, %cst {dimension_numbers = #tpu.dot_dimension_numbers<[1], [0], [0], [1], [0, 0, 1, 1], [], []>} : vector<16x16xf32>, vector<16x128xf32>, vector<16x128xf32> -> vector<16x128xf32>
    %c0_3 = arith.constant 0 : index
    %c0_4 = arith.constant 0 : index
    %3 = vector.load %arg3[%c0_3, %c0_4] : memref<16x16xf32, #tpu.memory_space<vmem>>, vector<16x16xf32>
    %c0_5 = arith.constant 0 : index
    %c0_6 = arith.constant 0 : index
    %4 = vector.load %arg8[%c0_5, %c0_6] : memref<48x128xf32, #tpu.memory_space<vmem>>, vector<16x128xf32>
    %cst_7 = arith.constant dense<0.000000e+00> : vector<16x128xf32>
    %5 = tpu.matmul %3, %4, %cst_7 {dimension_numbers = #tpu.dot_dimension_numbers<[1], [0], [0], [1], [0, 0, 1, 1], [], []>} : vector<16x16xf32>, vector<16x128xf32>, vector<16x128xf32> -> vector<16x128xf32>
    %c0_8 = arith.constant 0 : index
    %c0_9 = arith.constant 0 : index
    %6 = vector.load %arg0[%c0_8, %c0_9] : memref<64x1xi32, #tpu.memory_space<vmem>>, vector<64x1xi32>
    %7 = tpu.iota {dimensions = array<i32: 1>} : vector<64x16xi32>
    %8 = vector.broadcast %6 : vector<64x1xi32> to vector<64x16xi32>
    %9 = arith.cmpi eq, %8, %7 : vector<64x16xi32>
    %10 = arith.extui %9 : vector<64x16xi1> to vector<64x16xi32>
    %11 = arith.sitofp %10 : vector<64x16xi32> to vector<64x16xf32>
    %cst_10 = arith.constant dense<0.000000e+00> : vector<64x128xf32>
    %12 = tpu.matmul %11, %2, %cst_10 {dimension_numbers = #tpu.dot_dimension_numbers<[1], [0], [0], [1], [0, 0, 1, 1], [], []>} : vector<64x16xf32>, vector<16x128xf32>, vector<64x128xf32> -> vector<64x128xf32>
    %c0_11 = arith.constant 0 : index
    %c0_12 = arith.constant 0 : index
    %13 = vector.load %arg1[%c0_11, %c0_12] : memref<72x1xi32, #tpu.memory_space<vmem>>, vector<72x1xi32>
    %14 = tpu.iota {dimensions = array<i32: 1>} : vector<72x16xi32>
    %15 = vector.broadcast %13 : vector<72x1xi32> to vector<72x16xi32>
    %16 = arith.cmpi eq, %15, %14 : vector<72x16xi32>
    %17 = arith.extui %16 : vector<72x16xi1> to vector<72x16xi32>
    %18 = arith.sitofp %17 : vector<72x16xi32> to vector<72x16xf32>
    %cst_13 = arith.constant dense<0.000000e+00> : vector<72x128xf32>
    %19 = tpu.matmul %18, %5, %cst_13 {dimension_numbers = #tpu.dot_dimension_numbers<[1], [0], [0], [1], [0, 0, 1, 1], [], []>} : vector<72x16xf32>, vector<16x128xf32>, vector<72x128xf32> -> vector<72x128xf32>
    %cst_14 = arith.constant 0.000000e+00 : f32
    %20 = vector.broadcast %cst_14 : f32 to vector<8x32xf32>
    %cst_15 = arith.constant 0.000000e+00 : f32
    %21 = vector.broadcast %cst_15 : f32 to vector<8x32xf32>
    %cst_16 = arith.constant 0.000000e+00 : f32
    %22 = vector.broadcast %cst_16 : f32 to vector<8x32xf32>
    %cst_17 = arith.constant 0.000000e+00 : f32
    %23 = vector.broadcast %cst_17 : f32 to vector<8x32xf32>
    %24 = vector.extract_strided_slice %12 {offsets = [0, 0], sizes = [8, 128], strides = [1, 1]} : vector<64x128xf32> to vector<8x128xf32>
    %c16 = arith.constant 16 : index
    %c0_18 = arith.constant 0 : index
    %25 = vector.load %arg4[%c16, %c0_18] : memref<48x128xf32, #tpu.memory_space<vmem>>, vector<32x128xf32>
    %cst_19 = arith.constant dense<0.000000e+00> : vector<8x128xf32>
    %26 = tpu.matmul %20, %25, %cst_19 {dimension_numbers = #tpu.dot_dimension_numbers<[1], [0], [0], [1], [0, 0, 1, 1], [], []>} : vector<8x32xf32>, vector<32x128xf32>, vector<8x128xf32> -> vector<8x128xf32>
    %27 = arith.addf %24, %26 : vector<8x128xf32>
    %c0_20 = arith.constant 0 : index
    %c0_21 = arith.constant 0 : index
    %28 = vector.load %arg5[%c0_20, %c0_21] : memref<1x128xf32, #tpu.memory_space<vmem>>, vector<1x128xf32>
    %29 = vector.broadcast %28 : vector<1x128xf32> to vector<8x128xf32>
    %30 = arith.addf %27, %29 : vector<8x128xf32>
    %31 = arith.negf %30 : vector<8x128xf32>
    %32 = math.exp %31 : vector<8x128xf32>
    %cst_22 = arith.constant 1.000000e+00 : f32
    %33 = vector.broadcast %cst_22 : f32 to vector<8x128xf32>
    %34 = arith.addf %33, %32 : vector<8x128xf32>
    %35 = arith.divf %33, %34 : vector<8x128xf32>
    %36 = vector.extract_strided_slice %35 {offsets = [0, 0], sizes = [8, 32], strides = [1, 1]} : vector<8x128xf32> to vector<8x32xf32>
    %37 = vector.extract_strided_slice %35 {offsets = [0, 32], sizes = [8, 32], strides = [1, 1]} : vector<8x128xf32> to vector<8x32xf32>
    %38 = vector.extract_strided_slice %35 {offsets = [0, 96], sizes = [8, 32], strides = [1, 1]} : vector<8x128xf32> to vector<8x32xf32>
    %39 = vector.extract_strided_slice %30 {offsets = [0, 64], sizes = [8, 32], strides = [1, 1]} : vector<8x128xf32> to vector<8x32xf32>
    %40 = math.tanh %39 : vector<8x32xf32>
    %41 = arith.mulf %37, %22 : vector<8x32xf32>
    %42 = arith.mulf %36, %40 : vector<8x32xf32>
    %43 = arith.addf %41, %42 : vector<8x32xf32>
    %44 = math.tanh %43 : vector<8x32xf32>
    %45 = arith.mulf %38, %44 : vector<8x32xf32>
    %46 = tpu.concatenate %45, %21 in 1 : vector<8x32xf32>, vector<8x32xf32> -> vector<8x64xf32>
    %c0_23 = arith.constant 0 : index
    %c0_24 = arith.constant 0 : index
    %47 = vector.load %arg6[%c0_23, %c0_24] : memref<64x128xf32, #tpu.memory_space<vmem>>, vector<64x128xf32>
    %cst_25 = arith.constant dense<0.000000e+00> : vector<8x128xf32>
    %48 = tpu.matmul %46, %47, %cst_25 {dimension_numbers = #tpu.dot_dimension_numbers<[1], [0], [0], [1], [0, 0, 1, 1], [], []>} : vector<8x64xf32>, vector<64x128xf32>, vector<8x128xf32> -> vector<8x128xf32>
    %c0_26 = arith.constant 0 : index
    %c0_27 = arith.constant 0 : index
    %49 = vector.load %arg7[%c0_26, %c0_27] : memref<1x128xf32, #tpu.memory_space<vmem>>, vector<1x128xf32>
    %50 = vector.broadcast %49 : vector<1x128xf32> to vector<8x128xf32>
    %51 = arith.addf %48, %50 : vector<8x128xf32>
    %52 = arith.negf %51 : vector<8x128xf32>
    %53 = math.exp %52 : vector<8x128xf32>
    %cst_28 = arith.constant 1.000000e+00 : f32
    %54 = vector.broadcast %cst_28 : f32 to vector<8x128xf32>
    %55 = arith.addf %54, %53 : vector<8x128xf32>
    %56 = arith.divf %54, %55 : vector<8x128xf32>
    %57 = vector.extract_strided_slice %56 {offsets = [0, 0], sizes = [8, 32], strides = [1, 1]} : vector<8x128xf32> to vector<8x32xf32>
    %58 = vector.extract_strided_slice %56 {offsets = [0, 32], sizes = [8, 32], strides = [1, 1]} : vector<8x128xf32> to vector<8x32xf32>
    %59 = vector.extract_strided_slice %56 {offsets = [0, 96], sizes = [8, 32], strides = [1, 1]} : vector<8x128xf32> to vector<8x32xf32>
    %60 = vector.extract_strided_slice %51 {offsets = [0, 64], sizes = [8, 32], strides = [1, 1]} : vector<8x128xf32> to vector<8x32xf32>
    %61 = math.tanh %60 : vector<8x32xf32>
    %62 = arith.mulf %58, %23 : vector<8x32xf32>
    %63 = arith.mulf %57, %61 : vector<8x32xf32>
    %64 = arith.addf %62, %63 : vector<8x32xf32>
    %65 = math.tanh %64 : vector<8x32xf32>
    %66 = arith.mulf %59, %65 : vector<8x32xf32>
    %67 = vector.extract_strided_slice %12 {offsets = [8, 0], sizes = [8, 128], strides = [1, 1]} : vector<64x128xf32> to vector<8x128xf32>
    %c16_29 = arith.constant 16 : index
    %c0_30 = arith.constant 0 : index
    %68 = vector.load %arg4[%c16_29, %c0_30] : memref<48x128xf32, #tpu.memory_space<vmem>>, vector<32x128xf32>
    %cst_31 = arith.constant dense<0.000000e+00> : vector<8x128xf32>
    %69 = tpu.matmul %45, %68, %cst_31 {dimension_numbers = #tpu.dot_dimension_numbers<[1], [0], [0], [1], [0, 0, 1, 1], [], []>} : vector<8x32xf32>, vector<32x128xf32>, vector<8x128xf32> -> vector<8x128xf32>
    %70 = arith.addf %67, %69 : vector<8x128xf32>
    %c0_32 = arith.constant 0 : index
    %c0_33 = arith.constant 0 : index
    %71 = vector.load %arg5[%c0_32, %c0_33] : memref<1x128xf32, #tpu.memory_space<vmem>>, vector<1x128xf32>
    %72 = vector.broadcast %71 : vector<1x128xf32> to vector<8x128xf32>
    %73 = arith.addf %70, %72 : vector<8x128xf32>
    %74 = arith.negf %73 : vector<8x128xf32>
    %75 = math.exp %74 : vector<8x128xf32>
    %cst_34 = arith.constant 1.000000e+00 : f32
    %76 = vector.broadcast %cst_34 : f32 to vector<8x128xf32>
    %77 = arith.addf %76, %75 : vector<8x128xf32>
    %78 = arith.divf %76, %77 : vector<8x128xf32>
    %79 = vector.extract_strided_slice %78 {offsets = [0, 0], sizes = [8, 32], strides = [1, 1]} : vector<8x128xf32> to vector<8x32xf32>
    %80 = vector.extract_strided_slice %78 {offsets = [0, 32], sizes = [8, 32], strides = [1, 1]} : vector<8x128xf32> to vector<8x32xf32>
    %81 = vector.extract_strided_slice %78 {offsets = [0, 96], sizes = [8, 32], strides = [1, 1]} : vector<8x128xf32> to vector<8x32xf32>
    %82 = vector.extract_strided_slice %73 {offsets = [0, 64], sizes = [8, 32], strides = [1, 1]} : vector<8x128xf32> to vector<8x32xf32>
    %83 = math.tanh %82 : vector<8x32xf32>
    %84 = arith.mulf %80, %43 : vector<8x32xf32>
    %85 = arith.mulf %79, %83 : vector<8x32xf32>
    %86 = arith.addf %84, %85 : vector<8x32xf32>
    %87 = math.tanh %86 : vector<8x32xf32>
    %88 = arith.mulf %81, %87 : vector<8x32xf32>
    %89 = tpu.concatenate %88, %66 in 1 : vector<8x32xf32>, vector<8x32xf32> -> vector<8x64xf32>
    %c0_35 = arith.constant 0 : index
    %c0_36 = arith.constant 0 : index
    %90 = vector.load %arg6[%c0_35, %c0_36] : memref<64x128xf32, #tpu.memory_space<vmem>>, vector<64x128xf32>
    %cst_37 = arith.constant dense<0.000000e+00> : vector<8x128xf32>
    %91 = tpu.matmul %89, %90, %cst_37 {dimension_numbers = #tpu.dot_dimension_numbers<[1], [0], [0], [1], [0, 0, 1, 1], [], []>} : vector<8x64xf32>, vector<64x128xf32>, vector<8x128xf32> -> vector<8x128xf32>
    %c0_38 = arith.constant 0 : index
    %c0_39 = arith.constant 0 : index
    %92 = vector.load %arg7[%c0_38, %c0_39] : memref<1x128xf32, #tpu.memory_space<vmem>>, vector<1x128xf32>
    %93 = vector.broadcast %92 : vector<1x128xf32> to vector<8x128xf32>
    %94 = arith.addf %91, %93 : vector<8x128xf32>
    %95 = arith.negf %94 : vector<8x128xf32>
    %96 = math.exp %95 : vector<8x128xf32>
    %cst_40 = arith.constant 1.000000e+00 : f32
    %97 = vector.broadcast %cst_40 : f32 to vector<8x128xf32>
    %98 = arith.addf %97, %96 : vector<8x128xf32>
    %99 = arith.divf %97, %98 : vector<8x128xf32>
    %100 = vector.extract_strided_slice %99 {offsets = [0, 0], sizes = [8, 32], strides = [1, 1]} : vector<8x128xf32> to vector<8x32xf32>
    %101 = vector.extract_strided_slice %99 {offsets = [0, 32], sizes = [8, 32], strides = [1, 1]} : vector<8x128xf32> to vector<8x32xf32>
    %102 = vector.extract_strided_slice %99 {offsets = [0, 96], sizes = [8, 32], strides = [1, 1]} : vector<8x128xf32> to vector<8x32xf32>
    %103 = vector.extract_strided_slice %94 {offsets = [0, 64], sizes = [8, 32], strides = [1, 1]} : vector<8x128xf32> to vector<8x32xf32>
    %104 = math.tanh %103 : vector<8x32xf32>
    %105 = arith.mulf %101, %64 : vector<8x32xf32>
    %106 = arith.mulf %100, %104 : vector<8x32xf32>
    %107 = arith.addf %105, %106 : vector<8x32xf32>
    %108 = math.tanh %107 : vector<8x32xf32>
    %109 = arith.mulf %102, %108 : vector<8x32xf32>
    %110 = vector.extract_strided_slice %12 {offsets = [16, 0], sizes = [8, 128], strides = [1, 1]} : vector<64x128xf32> to vector<8x128xf32>
    %c16_41 = arith.constant 16 : index
    %c0_42 = arith.constant 0 : index
    %111 = vector.load %arg4[%c16_41, %c0_42] : memref<48x128xf32, #tpu.memory_space<vmem>>, vector<32x128xf32>
    %cst_43 = arith.constant dense<0.000000e+00> : vector<8x128xf32>
    %112 = tpu.matmul %88, %111, %cst_43 {dimension_numbers = #tpu.dot_dimension_numbers<[1], [0], [0], [1], [0, 0, 1, 1], [], []>} : vector<8x32xf32>, vector<32x128xf32>, vector<8x128xf32> -> vector<8x128xf32>
    %113 = arith.addf %110, %112 : vector<8x128xf32>
    %c0_44 = arith.constant 0 : index
    %c0_45 = arith.constant 0 : index
    %114 = vector.load %arg5[%c0_44, %c0_45] : memref<1x128xf32, #tpu.memory_space<vmem>>, vector<1x128xf32>
    %115 = vector.broadcast %114 : vector<1x128xf32> to vector<8x128xf32>
    %116 = arith.addf %113, %115 : vector<8x128xf32>
    %117 = arith.negf %116 : vector<8x128xf32>
    %118 = math.exp %117 : vector<8x128xf32>
    %cst_46 = arith.constant 1.000000e+00 : f32
    %119 = vector.broadcast %cst_46 : f32 to vector<8x128xf32>
    %120 = arith.addf %119, %118 : vector<8x128xf32>
    %121 = arith.divf %119, %120 : vector<8x128xf32>
    %122 = vector.extract_strided_slice %121 {offsets = [0, 0], sizes = [8, 32], strides = [1, 1]} : vector<8x128xf32> to vector<8x32xf32>
    %123 = vector.extract_strided_slice %121 {offsets = [0, 32], sizes = [8, 32], strides = [1, 1]} : vector<8x128xf32> to vector<8x32xf32>
    %124 = vector.extract_strided_slice %121 {offsets = [0, 96], sizes = [8, 32], strides = [1, 1]} : vector<8x128xf32> to vector<8x32xf32>
    %125 = vector.extract_strided_slice %116 {offsets = [0, 64], sizes = [8, 32], strides = [1, 1]} : vector<8x128xf32> to vector<8x32xf32>
    %126 = math.tanh %125 : vector<8x32xf32>
    %127 = arith.mulf %123, %86 : vector<8x32xf32>
    %128 = arith.mulf %122, %126 : vector<8x32xf32>
    %129 = arith.addf %127, %128 : vector<8x32xf32>
    %130 = math.tanh %129 : vector<8x32xf32>
    %131 = arith.mulf %124, %130 : vector<8x32xf32>
    %132 = tpu.concatenate %131, %109 in 1 : vector<8x32xf32>, vector<8x32xf32> -> vector<8x64xf32>
    %c0_47 = arith.constant 0 : index
    %c0_48 = arith.constant 0 : index
    %133 = vector.load %arg6[%c0_47, %c0_48] : memref<64x128xf32, #tpu.memory_space<vmem>>, vector<64x128xf32>
    %cst_49 = arith.constant dense<0.000000e+00> : vector<8x128xf32>
    %134 = tpu.matmul %132, %133, %cst_49 {dimension_numbers = #tpu.dot_dimension_numbers<[1], [0], [0], [1], [0, 0, 1, 1], [], []>} : vector<8x64xf32>, vector<64x128xf32>, vector<8x128xf32> -> vector<8x128xf32>
    %c0_50 = arith.constant 0 : index
    %c0_51 = arith.constant 0 : index
    %135 = vector.load %arg7[%c0_50, %c0_51] : memref<1x128xf32, #tpu.memory_space<vmem>>, vector<1x128xf32>
    %136 = vector.broadcast %135 : vector<1x128xf32> to vector<8x128xf32>
    %137 = arith.addf %134, %136 : vector<8x128xf32>
    %138 = arith.negf %137 : vector<8x128xf32>
    %139 = math.exp %138 : vector<8x128xf32>
    %cst_52 = arith.constant 1.000000e+00 : f32
    %140 = vector.broadcast %cst_52 : f32 to vector<8x128xf32>
    %141 = arith.addf %140, %139 : vector<8x128xf32>
    %142 = arith.divf %140, %141 : vector<8x128xf32>
    %143 = vector.extract_strided_slice %142 {offsets = [0, 0], sizes = [8, 32], strides = [1, 1]} : vector<8x128xf32> to vector<8x32xf32>
    %144 = vector.extract_strided_slice %142 {offsets = [0, 32], sizes = [8, 32], strides = [1, 1]} : vector<8x128xf32> to vector<8x32xf32>
    %145 = vector.extract_strided_slice %142 {offsets = [0, 96], sizes = [8, 32], strides = [1, 1]} : vector<8x128xf32> to vector<8x32xf32>
    %146 = vector.extract_strided_slice %137 {offsets = [0, 64], sizes = [8, 32], strides = [1, 1]} : vector<8x128xf32> to vector<8x32xf32>
    %147 = math.tanh %146 : vector<8x32xf32>
    %148 = arith.mulf %144, %107 : vector<8x32xf32>
    %149 = arith.mulf %143, %147 : vector<8x32xf32>
    %150 = arith.addf %148, %149 : vector<8x32xf32>
    %151 = math.tanh %150 : vector<8x32xf32>
    %152 = arith.mulf %145, %151 : vector<8x32xf32>
    %153 = vector.extract_strided_slice %12 {offsets = [24, 0], sizes = [8, 128], strides = [1, 1]} : vector<64x128xf32> to vector<8x128xf32>
    %c16_53 = arith.constant 16 : index
    %c0_54 = arith.constant 0 : index
    %154 = vector.load %arg4[%c16_53, %c0_54] : memref<48x128xf32, #tpu.memory_space<vmem>>, vector<32x128xf32>
    %cst_55 = arith.constant dense<0.000000e+00> : vector<8x128xf32>
    %155 = tpu.matmul %131, %154, %cst_55 {dimension_numbers = #tpu.dot_dimension_numbers<[1], [0], [0], [1], [0, 0, 1, 1], [], []>} : vector<8x32xf32>, vector<32x128xf32>, vector<8x128xf32> -> vector<8x128xf32>
    %156 = arith.addf %153, %155 : vector<8x128xf32>
    %c0_56 = arith.constant 0 : index
    %c0_57 = arith.constant 0 : index
    %157 = vector.load %arg5[%c0_56, %c0_57] : memref<1x128xf32, #tpu.memory_space<vmem>>, vector<1x128xf32>
    %158 = vector.broadcast %157 : vector<1x128xf32> to vector<8x128xf32>
    %159 = arith.addf %156, %158 : vector<8x128xf32>
    %160 = arith.negf %159 : vector<8x128xf32>
    %161 = math.exp %160 : vector<8x128xf32>
    %cst_58 = arith.constant 1.000000e+00 : f32
    %162 = vector.broadcast %cst_58 : f32 to vector<8x128xf32>
    %163 = arith.addf %162, %161 : vector<8x128xf32>
    %164 = arith.divf %162, %163 : vector<8x128xf32>
    %165 = vector.extract_strided_slice %164 {offsets = [0, 0], sizes = [8, 32], strides = [1, 1]} : vector<8x128xf32> to vector<8x32xf32>
    %166 = vector.extract_strided_slice %164 {offsets = [0, 32], sizes = [8, 32], strides = [1, 1]} : vector<8x128xf32> to vector<8x32xf32>
    %167 = vector.extract_strided_slice %164 {offsets = [0, 96], sizes = [8, 32], strides = [1, 1]} : vector<8x128xf32> to vector<8x32xf32>
    %168 = vector.extract_strided_slice %159 {offsets = [0, 64], sizes = [8, 32], strides = [1, 1]} : vector<8x128xf32> to vector<8x32xf32>
    %169 = math.tanh %168 : vector<8x32xf32>
    %170 = arith.mulf %166, %129 : vector<8x32xf32>
    %171 = arith.mulf %165, %169 : vector<8x32xf32>
    %172 = arith.addf %170, %171 : vector<8x32xf32>
    %173 = math.tanh %172 : vector<8x32xf32>
    %174 = arith.mulf %167, %173 : vector<8x32xf32>
    %175 = tpu.concatenate %174, %152 in 1 : vector<8x32xf32>, vector<8x32xf32> -> vector<8x64xf32>
    %c0_59 = arith.constant 0 : index
    %c0_60 = arith.constant 0 : index
    %176 = vector.load %arg6[%c0_59, %c0_60] : memref<64x128xf32, #tpu.memory_space<vmem>>, vector<64x128xf32>
    %cst_61 = arith.constant dense<0.000000e+00> : vector<8x128xf32>
    %177 = tpu.matmul %175, %176, %cst_61 {dimension_numbers = #tpu.dot_dimension_numbers<[1], [0], [0], [1], [0, 0, 1, 1], [], []>} : vector<8x64xf32>, vector<64x128xf32>, vector<8x128xf32> -> vector<8x128xf32>
    %c0_62 = arith.constant 0 : index
    %c0_63 = arith.constant 0 : index
    %178 = vector.load %arg7[%c0_62, %c0_63] : memref<1x128xf32, #tpu.memory_space<vmem>>, vector<1x128xf32>
    %179 = vector.broadcast %178 : vector<1x128xf32> to vector<8x128xf32>
    %180 = arith.addf %177, %179 : vector<8x128xf32>
    %181 = arith.negf %180 : vector<8x128xf32>
    %182 = math.exp %181 : vector<8x128xf32>
    %cst_64 = arith.constant 1.000000e+00 : f32
    %183 = vector.broadcast %cst_64 : f32 to vector<8x128xf32>
    %184 = arith.addf %183, %182 : vector<8x128xf32>
    %185 = arith.divf %183, %184 : vector<8x128xf32>
    %186 = vector.extract_strided_slice %185 {offsets = [0, 0], sizes = [8, 32], strides = [1, 1]} : vector<8x128xf32> to vector<8x32xf32>
    %187 = vector.extract_strided_slice %185 {offsets = [0, 32], sizes = [8, 32], strides = [1, 1]} : vector<8x128xf32> to vector<8x32xf32>
    %188 = vector.extract_strided_slice %185 {offsets = [0, 96], sizes = [8, 32], strides = [1, 1]} : vector<8x128xf32> to vector<8x32xf32>
    %189 = vector.extract_strided_slice %180 {offsets = [0, 64], sizes = [8, 32], strides = [1, 1]} : vector<8x128xf32> to vector<8x32xf32>
    %190 = math.tanh %189 : vector<8x32xf32>
    %191 = arith.mulf %187, %150 : vector<8x32xf32>
    %192 = arith.mulf %186, %190 : vector<8x32xf32>
    %193 = arith.addf %191, %192 : vector<8x32xf32>
    %194 = math.tanh %193 : vector<8x32xf32>
    %195 = arith.mulf %188, %194 : vector<8x32xf32>
    %196 = vector.extract_strided_slice %12 {offsets = [32, 0], sizes = [8, 128], strides = [1, 1]} : vector<64x128xf32> to vector<8x128xf32>
    %c16_65 = arith.constant 16 : index
    %c0_66 = arith.constant 0 : index
    %197 = vector.load %arg4[%c16_65, %c0_66] : memref<48x128xf32, #tpu.memory_space<vmem>>, vector<32x128xf32>
    %cst_67 = arith.constant dense<0.000000e+00> : vector<8x128xf32>
    %198 = tpu.matmul %174, %197, %cst_67 {dimension_numbers = #tpu.dot_dimension_numbers<[1], [0], [0], [1], [0, 0, 1, 1], [], []>} : vector<8x32xf32>, vector<32x128xf32>, vector<8x128xf32> -> vector<8x128xf32>
    %199 = arith.addf %196, %198 : vector<8x128xf32>
    %c0_68 = arith.constant 0 : index
    %c0_69 = arith.constant 0 : index
    %200 = vector.load %arg5[%c0_68, %c0_69] : memref<1x128xf32, #tpu.memory_space<vmem>>, vector<1x128xf32>
    %201 = vector.broadcast %200 : vector<1x128xf32> to vector<8x128xf32>
    %202 = arith.addf %199, %201 : vector<8x128xf32>
    %203 = arith.negf %202 : vector<8x128xf32>
    %204 = math.exp %203 : vector<8x128xf32>
    %cst_70 = arith.constant 1.000000e+00 : f32
    %205 = vector.broadcast %cst_70 : f32 to vector<8x128xf32>
    %206 = arith.addf %205, %204 : vector<8x128xf32>
    %207 = arith.divf %205, %206 : vector<8x128xf32>
    %208 = vector.extract_strided_slice %207 {offsets = [0, 0], sizes = [8, 32], strides = [1, 1]} : vector<8x128xf32> to vector<8x32xf32>
    %209 = vector.extract_strided_slice %207 {offsets = [0, 32], sizes = [8, 32], strides = [1, 1]} : vector<8x128xf32> to vector<8x32xf32>
    %210 = vector.extract_strided_slice %207 {offsets = [0, 96], sizes = [8, 32], strides = [1, 1]} : vector<8x128xf32> to vector<8x32xf32>
    %211 = vector.extract_strided_slice %202 {offsets = [0, 64], sizes = [8, 32], strides = [1, 1]} : vector<8x128xf32> to vector<8x32xf32>
    %212 = math.tanh %211 : vector<8x32xf32>
    %213 = arith.mulf %209, %172 : vector<8x32xf32>
    %214 = arith.mulf %208, %212 : vector<8x32xf32>
    %215 = arith.addf %213, %214 : vector<8x32xf32>
    %216 = math.tanh %215 : vector<8x32xf32>
    %217 = arith.mulf %210, %216 : vector<8x32xf32>
    %218 = tpu.concatenate %217, %195 in 1 : vector<8x32xf32>, vector<8x32xf32> -> vector<8x64xf32>
    %c0_71 = arith.constant 0 : index
    %c0_72 = arith.constant 0 : index
    %219 = vector.load %arg6[%c0_71, %c0_72] : memref<64x128xf32, #tpu.memory_space<vmem>>, vector<64x128xf32>
    %cst_73 = arith.constant dense<0.000000e+00> : vector<8x128xf32>
    %220 = tpu.matmul %218, %219, %cst_73 {dimension_numbers = #tpu.dot_dimension_numbers<[1], [0], [0], [1], [0, 0, 1, 1], [], []>} : vector<8x64xf32>, vector<64x128xf32>, vector<8x128xf32> -> vector<8x128xf32>
    %c0_74 = arith.constant 0 : index
    %c0_75 = arith.constant 0 : index
    %221 = vector.load %arg7[%c0_74, %c0_75] : memref<1x128xf32, #tpu.memory_space<vmem>>, vector<1x128xf32>
    %222 = vector.broadcast %221 : vector<1x128xf32> to vector<8x128xf32>
    %223 = arith.addf %220, %222 : vector<8x128xf32>
    %224 = arith.negf %223 : vector<8x128xf32>
    %225 = math.exp %224 : vector<8x128xf32>
    %cst_76 = arith.constant 1.000000e+00 : f32
    %226 = vector.broadcast %cst_76 : f32 to vector<8x128xf32>
    %227 = arith.addf %226, %225 : vector<8x128xf32>
    %228 = arith.divf %226, %227 : vector<8x128xf32>
    %229 = vector.extract_strided_slice %228 {offsets = [0, 0], sizes = [8, 32], strides = [1, 1]} : vector<8x128xf32> to vector<8x32xf32>
    %230 = vector.extract_strided_slice %228 {offsets = [0, 32], sizes = [8, 32], strides = [1, 1]} : vector<8x128xf32> to vector<8x32xf32>
    %231 = vector.extract_strided_slice %228 {offsets = [0, 96], sizes = [8, 32], strides = [1, 1]} : vector<8x128xf32> to vector<8x32xf32>
    %232 = vector.extract_strided_slice %223 {offsets = [0, 64], sizes = [8, 32], strides = [1, 1]} : vector<8x128xf32> to vector<8x32xf32>
    %233 = math.tanh %232 : vector<8x32xf32>
    %234 = arith.mulf %230, %193 : vector<8x32xf32>
    %235 = arith.mulf %229, %233 : vector<8x32xf32>
    %236 = arith.addf %234, %235 : vector<8x32xf32>
    %237 = math.tanh %236 : vector<8x32xf32>
    %238 = arith.mulf %231, %237 : vector<8x32xf32>
    %239 = vector.extract_strided_slice %12 {offsets = [40, 0], sizes = [8, 128], strides = [1, 1]} : vector<64x128xf32> to vector<8x128xf32>
    %c16_77 = arith.constant 16 : index
    %c0_78 = arith.constant 0 : index
    %240 = vector.load %arg4[%c16_77, %c0_78] : memref<48x128xf32, #tpu.memory_space<vmem>>, vector<32x128xf32>
    %cst_79 = arith.constant dense<0.000000e+00> : vector<8x128xf32>
    %241 = tpu.matmul %217, %240, %cst_79 {dimension_numbers = #tpu.dot_dimension_numbers<[1], [0], [0], [1], [0, 0, 1, 1], [], []>} : vector<8x32xf32>, vector<32x128xf32>, vector<8x128xf32> -> vector<8x128xf32>
    %242 = arith.addf %239, %241 : vector<8x128xf32>
    %c0_80 = arith.constant 0 : index
    %c0_81 = arith.constant 0 : index
    %243 = vector.load %arg5[%c0_80, %c0_81] : memref<1x128xf32, #tpu.memory_space<vmem>>, vector<1x128xf32>
    %244 = vector.broadcast %243 : vector<1x128xf32> to vector<8x128xf32>
    %245 = arith.addf %242, %244 : vector<8x128xf32>
    %246 = arith.negf %245 : vector<8x128xf32>
    %247 = math.exp %246 : vector<8x128xf32>
    %cst_82 = arith.constant 1.000000e+00 : f32
    %248 = vector.broadcast %cst_82 : f32 to vector<8x128xf32>
    %249 = arith.addf %248, %247 : vector<8x128xf32>
    %250 = arith.divf %248, %249 : vector<8x128xf32>
    %251 = vector.extract_strided_slice %250 {offsets = [0, 0], sizes = [8, 32], strides = [1, 1]} : vector<8x128xf32> to vector<8x32xf32>
    %252 = vector.extract_strided_slice %250 {offsets = [0, 32], sizes = [8, 32], strides = [1, 1]} : vector<8x128xf32> to vector<8x32xf32>
    %253 = vector.extract_strided_slice %250 {offsets = [0, 96], sizes = [8, 32], strides = [1, 1]} : vector<8x128xf32> to vector<8x32xf32>
    %254 = vector.extract_strided_slice %245 {offsets = [0, 64], sizes = [8, 32], strides = [1, 1]} : vector<8x128xf32> to vector<8x32xf32>
    %255 = math.tanh %254 : vector<8x32xf32>
    %256 = arith.mulf %252, %215 : vector<8x32xf32>
    %257 = arith.mulf %251, %255 : vector<8x32xf32>
    %258 = arith.addf %256, %257 : vector<8x32xf32>
    %259 = math.tanh %258 : vector<8x32xf32>
    %260 = arith.mulf %253, %259 : vector<8x32xf32>
    %261 = tpu.concatenate %260, %238 in 1 : vector<8x32xf32>, vector<8x32xf32> -> vector<8x64xf32>
    %c0_83 = arith.constant 0 : index
    %c0_84 = arith.constant 0 : index
    %262 = vector.load %arg6[%c0_83, %c0_84] : memref<64x128xf32, #tpu.memory_space<vmem>>, vector<64x128xf32>
    %cst_85 = arith.constant dense<0.000000e+00> : vector<8x128xf32>
    %263 = tpu.matmul %261, %262, %cst_85 {dimension_numbers = #tpu.dot_dimension_numbers<[1], [0], [0], [1], [0, 0, 1, 1], [], []>} : vector<8x64xf32>, vector<64x128xf32>, vector<8x128xf32> -> vector<8x128xf32>
    %c0_86 = arith.constant 0 : index
    %c0_87 = arith.constant 0 : index
    %264 = vector.load %arg7[%c0_86, %c0_87] : memref<1x128xf32, #tpu.memory_space<vmem>>, vector<1x128xf32>
    %265 = vector.broadcast %264 : vector<1x128xf32> to vector<8x128xf32>
    %266 = arith.addf %263, %265 : vector<8x128xf32>
    %267 = arith.negf %266 : vector<8x128xf32>
    %268 = math.exp %267 : vector<8x128xf32>
    %cst_88 = arith.constant 1.000000e+00 : f32
    %269 = vector.broadcast %cst_88 : f32 to vector<8x128xf32>
    %270 = arith.addf %269, %268 : vector<8x128xf32>
    %271 = arith.divf %269, %270 : vector<8x128xf32>
    %272 = vector.extract_strided_slice %271 {offsets = [0, 0], sizes = [8, 32], strides = [1, 1]} : vector<8x128xf32> to vector<8x32xf32>
    %273 = vector.extract_strided_slice %271 {offsets = [0, 32], sizes = [8, 32], strides = [1, 1]} : vector<8x128xf32> to vector<8x32xf32>
    %274 = vector.extract_strided_slice %271 {offsets = [0, 96], sizes = [8, 32], strides = [1, 1]} : vector<8x128xf32> to vector<8x32xf32>
    %275 = vector.extract_strided_slice %266 {offsets = [0, 64], sizes = [8, 32], strides = [1, 1]} : vector<8x128xf32> to vector<8x32xf32>
    %276 = math.tanh %275 : vector<8x32xf32>
    %277 = arith.mulf %273, %236 : vector<8x32xf32>
    %278 = arith.mulf %272, %276 : vector<8x32xf32>
    %279 = arith.addf %277, %278 : vector<8x32xf32>
    %280 = math.tanh %279 : vector<8x32xf32>
    %281 = arith.mulf %274, %280 : vector<8x32xf32>
    %282 = vector.extract_strided_slice %12 {offsets = [48, 0], sizes = [8, 128], strides = [1, 1]} : vector<64x128xf32> to vector<8x128xf32>
    %c16_89 = arith.constant 16 : index
    %c0_90 = arith.constant 0 : index
    %283 = vector.load %arg4[%c16_89, %c0_90] : memref<48x128xf32, #tpu.memory_space<vmem>>, vector<32x128xf32>
    %cst_91 = arith.constant dense<0.000000e+00> : vector<8x128xf32>
    %284 = tpu.matmul %260, %283, %cst_91 {dimension_numbers = #tpu.dot_dimension_numbers<[1], [0], [0], [1], [0, 0, 1, 1], [], []>} : vector<8x32xf32>, vector<32x128xf32>, vector<8x128xf32> -> vector<8x128xf32>
    %285 = arith.addf %282, %284 : vector<8x128xf32>
    %c0_92 = arith.constant 0 : index
    %c0_93 = arith.constant 0 : index
    %286 = vector.load %arg5[%c0_92, %c0_93] : memref<1x128xf32, #tpu.memory_space<vmem>>, vector<1x128xf32>
    %287 = vector.broadcast %286 : vector<1x128xf32> to vector<8x128xf32>
    %288 = arith.addf %285, %287 : vector<8x128xf32>
    %289 = arith.negf %288 : vector<8x128xf32>
    %290 = math.exp %289 : vector<8x128xf32>
    %cst_94 = arith.constant 1.000000e+00 : f32
    %291 = vector.broadcast %cst_94 : f32 to vector<8x128xf32>
    %292 = arith.addf %291, %290 : vector<8x128xf32>
    %293 = arith.divf %291, %292 : vector<8x128xf32>
    %294 = vector.extract_strided_slice %293 {offsets = [0, 0], sizes = [8, 32], strides = [1, 1]} : vector<8x128xf32> to vector<8x32xf32>
    %295 = vector.extract_strided_slice %293 {offsets = [0, 32], sizes = [8, 32], strides = [1, 1]} : vector<8x128xf32> to vector<8x32xf32>
    %296 = vector.extract_strided_slice %293 {offsets = [0, 96], sizes = [8, 32], strides = [1, 1]} : vector<8x128xf32> to vector<8x32xf32>
    %297 = vector.extract_strided_slice %288 {offsets = [0, 64], sizes = [8, 32], strides = [1, 1]} : vector<8x128xf32> to vector<8x32xf32>
    %298 = math.tanh %297 : vector<8x32xf32>
    %299 = arith.mulf %295, %258 : vector<8x32xf32>
    %300 = arith.mulf %294, %298 : vector<8x32xf32>
    %301 = arith.addf %299, %300 : vector<8x32xf32>
    %302 = math.tanh %301 : vector<8x32xf32>
    %303 = arith.mulf %296, %302 : vector<8x32xf32>
    %304 = tpu.concatenate %303, %281 in 1 : vector<8x32xf32>, vector<8x32xf32> -> vector<8x64xf32>
    %c0_95 = arith.constant 0 : index
    %c0_96 = arith.constant 0 : index
    %305 = vector.load %arg6[%c0_95, %c0_96] : memref<64x128xf32, #tpu.memory_space<vmem>>, vector<64x128xf32>
    %cst_97 = arith.constant dense<0.000000e+00> : vector<8x128xf32>
    %306 = tpu.matmul %304, %305, %cst_97 {dimension_numbers = #tpu.dot_dimension_numbers<[1], [0], [0], [1], [0, 0, 1, 1], [], []>} : vector<8x64xf32>, vector<64x128xf32>, vector<8x128xf32> -> vector<8x128xf32>
    %c0_98 = arith.constant 0 : index
    %c0_99 = arith.constant 0 : index
    %307 = vector.load %arg7[%c0_98, %c0_99] : memref<1x128xf32, #tpu.memory_space<vmem>>, vector<1x128xf32>
    %308 = vector.broadcast %307 : vector<1x128xf32> to vector<8x128xf32>
    %309 = arith.addf %306, %308 : vector<8x128xf32>
    %310 = arith.negf %309 : vector<8x128xf32>
    %311 = math.exp %310 : vector<8x128xf32>
    %cst_100 = arith.constant 1.000000e+00 : f32
    %312 = vector.broadcast %cst_100 : f32 to vector<8x128xf32>
    %313 = arith.addf %312, %311 : vector<8x128xf32>
    %314 = arith.divf %312, %313 : vector<8x128xf32>
    %315 = vector.extract_strided_slice %314 {offsets = [0, 0], sizes = [8, 32], strides = [1, 1]} : vector<8x128xf32> to vector<8x32xf32>
    %316 = vector.extract_strided_slice %314 {offsets = [0, 32], sizes = [8, 32], strides = [1, 1]} : vector<8x128xf32> to vector<8x32xf32>
    %317 = vector.extract_strided_slice %314 {offsets = [0, 96], sizes = [8, 32], strides = [1, 1]} : vector<8x128xf32> to vector<8x32xf32>
    %318 = vector.extract_strided_slice %309 {offsets = [0, 64], sizes = [8, 32], strides = [1, 1]} : vector<8x128xf32> to vector<8x32xf32>
    %319 = math.tanh %318 : vector<8x32xf32>
    %320 = arith.mulf %316, %279 : vector<8x32xf32>
    %321 = arith.mulf %315, %319 : vector<8x32xf32>
    %322 = arith.addf %320, %321 : vector<8x32xf32>
    %323 = math.tanh %322 : vector<8x32xf32>
    %324 = arith.mulf %317, %323 : vector<8x32xf32>
    %325 = vector.extract_strided_slice %12 {offsets = [56, 0], sizes = [8, 128], strides = [1, 1]} : vector<64x128xf32> to vector<8x128xf32>
    %c16_101 = arith.constant 16 : index
    %c0_102 = arith.constant 0 : index
    %326 = vector.load %arg4[%c16_101, %c0_102] : memref<48x128xf32, #tpu.memory_space<vmem>>, vector<32x128xf32>
    %cst_103 = arith.constant dense<0.000000e+00> : vector<8x128xf32>
    %327 = tpu.matmul %303, %326, %cst_103 {dimension_numbers = #tpu.dot_dimension_numbers<[1], [0], [0], [1], [0, 0, 1, 1], [], []>} : vector<8x32xf32>, vector<32x128xf32>, vector<8x128xf32> -> vector<8x128xf32>
    %328 = arith.addf %325, %327 : vector<8x128xf32>
    %c0_104 = arith.constant 0 : index
    %c0_105 = arith.constant 0 : index
    %329 = vector.load %arg5[%c0_104, %c0_105] : memref<1x128xf32, #tpu.memory_space<vmem>>, vector<1x128xf32>
    %330 = vector.broadcast %329 : vector<1x128xf32> to vector<8x128xf32>
    %331 = arith.addf %328, %330 : vector<8x128xf32>
    %332 = arith.negf %331 : vector<8x128xf32>
    %333 = math.exp %332 : vector<8x128xf32>
    %cst_106 = arith.constant 1.000000e+00 : f32
    %334 = vector.broadcast %cst_106 : f32 to vector<8x128xf32>
    %335 = arith.addf %334, %333 : vector<8x128xf32>
    %336 = arith.divf %334, %335 : vector<8x128xf32>
    %337 = vector.extract_strided_slice %336 {offsets = [0, 0], sizes = [8, 32], strides = [1, 1]} : vector<8x128xf32> to vector<8x32xf32>
    %338 = vector.extract_strided_slice %336 {offsets = [0, 32], sizes = [8, 32], strides = [1, 1]} : vector<8x128xf32> to vector<8x32xf32>
    %339 = vector.extract_strided_slice %336 {offsets = [0, 96], sizes = [8, 32], strides = [1, 1]} : vector<8x128xf32> to vector<8x32xf32>
    %340 = vector.extract_strided_slice %331 {offsets = [0, 64], sizes = [8, 32], strides = [1, 1]} : vector<8x128xf32> to vector<8x32xf32>
    %341 = math.tanh %340 : vector<8x32xf32>
    %342 = arith.mulf %338, %301 : vector<8x32xf32>
    %343 = arith.mulf %337, %341 : vector<8x32xf32>
    %344 = arith.addf %342, %343 : vector<8x32xf32>
    %345 = math.tanh %344 : vector<8x32xf32>
    %346 = arith.mulf %339, %345 : vector<8x32xf32>
    %347 = tpu.concatenate %346, %324 in 1 : vector<8x32xf32>, vector<8x32xf32> -> vector<8x64xf32>
    %c0_107 = arith.constant 0 : index
    %c0_108 = arith.constant 0 : index
    %348 = vector.load %arg6[%c0_107, %c0_108] : memref<64x128xf32, #tpu.memory_space<vmem>>, vector<64x128xf32>
    %cst_109 = arith.constant dense<0.000000e+00> : vector<8x128xf32>
    %349 = tpu.matmul %347, %348, %cst_109 {dimension_numbers = #tpu.dot_dimension_numbers<[1], [0], [0], [1], [0, 0, 1, 1], [], []>} : vector<8x64xf32>, vector<64x128xf32>, vector<8x128xf32> -> vector<8x128xf32>
    %c0_110 = arith.constant 0 : index
    %c0_111 = arith.constant 0 : index
    %350 = vector.load %arg7[%c0_110, %c0_111] : memref<1x128xf32, #tpu.memory_space<vmem>>, vector<1x128xf32>
    %351 = vector.broadcast %350 : vector<1x128xf32> to vector<8x128xf32>
    %352 = arith.addf %349, %351 : vector<8x128xf32>
    %353 = arith.negf %352 : vector<8x128xf32>
    %354 = math.exp %353 : vector<8x128xf32>
    %cst_112 = arith.constant 1.000000e+00 : f32
    %355 = vector.broadcast %cst_112 : f32 to vector<8x128xf32>
    %356 = arith.addf %355, %354 : vector<8x128xf32>
    %357 = arith.divf %355, %356 : vector<8x128xf32>
    %358 = vector.extract_strided_slice %357 {offsets = [0, 0], sizes = [8, 32], strides = [1, 1]} : vector<8x128xf32> to vector<8x32xf32>
    %359 = vector.extract_strided_slice %357 {offsets = [0, 32], sizes = [8, 32], strides = [1, 1]} : vector<8x128xf32> to vector<8x32xf32>
    %360 = vector.extract_strided_slice %357 {offsets = [0, 96], sizes = [8, 32], strides = [1, 1]} : vector<8x128xf32> to vector<8x32xf32>
    %361 = vector.extract_strided_slice %352 {offsets = [0, 64], sizes = [8, 32], strides = [1, 1]} : vector<8x128xf32> to vector<8x32xf32>
    %362 = math.tanh %361 : vector<8x32xf32>
    %363 = arith.mulf %359, %322 : vector<8x32xf32>
    %364 = arith.mulf %358, %362 : vector<8x32xf32>
    %365 = arith.addf %363, %364 : vector<8x32xf32>
    %366 = math.tanh %365 : vector<8x32xf32>
    %367 = arith.mulf %360, %366 : vector<8x32xf32>
    %cst_113 = arith.constant -5.000000e+01 : f32
    %cst_114 = arith.constant 5.000000e+01 : f32
    %368 = vector.broadcast %cst_113 : f32 to vector<8x32xf32>
    %369 = arith.maximumf %368, %346 : vector<8x32xf32>
    %370 = vector.broadcast %cst_114 : f32 to vector<8x32xf32>
    %371 = arith.minimumf %370, %369 : vector<8x32xf32>
    %cst_115 = arith.constant -5.000000e+01 : f32
    %cst_116 = arith.constant 5.000000e+01 : f32
    %372 = vector.broadcast %cst_115 : f32 to vector<8x32xf32>
    %373 = arith.maximumf %372, %367 : vector<8x32xf32>
    %374 = vector.broadcast %cst_116 : f32 to vector<8x32xf32>
    %375 = arith.minimumf %374, %373 : vector<8x32xf32>
    %cst_117 = arith.constant -5.000000e+01 : f32
    %cst_118 = arith.constant 5.000000e+01 : f32
    %376 = vector.broadcast %cst_117 : f32 to vector<8x32xf32>
    %377 = arith.maximumf %376, %344 : vector<8x32xf32>
    %378 = vector.broadcast %cst_118 : f32 to vector<8x32xf32>
    %379 = arith.minimumf %378, %377 : vector<8x32xf32>
    %cst_119 = arith.constant -5.000000e+01 : f32
    %cst_120 = arith.constant 5.000000e+01 : f32
    %380 = vector.broadcast %cst_119 : f32 to vector<8x32xf32>
    %381 = arith.maximumf %380, %365 : vector<8x32xf32>
    %382 = vector.broadcast %cst_120 : f32 to vector<8x32xf32>
    %383 = arith.minimumf %382, %381 : vector<8x32xf32>
    %384 = vector.extract_strided_slice %19 {offsets = [0, 0], sizes = [8, 128], strides = [1, 1]} : vector<72x128xf32> to vector<8x128xf32>
    %c16_121 = arith.constant 16 : index
    %c0_122 = arith.constant 0 : index
    %385 = vector.load %arg8[%c16_121, %c0_122] : memref<48x128xf32, #tpu.memory_space<vmem>>, vector<32x128xf32>
    %cst_123 = arith.constant dense<0.000000e+00> : vector<8x128xf32>
    %386 = tpu.matmul %371, %385, %cst_123 {dimension_numbers = #tpu.dot_dimension_numbers<[1], [0], [0], [1], [0, 0, 1, 1], [], []>} : vector<8x32xf32>, vector<32x128xf32>, vector<8x128xf32> -> vector<8x128xf32>
    %387 = arith.addf %384, %386 : vector<8x128xf32>
    %c0_124 = arith.constant 0 : index
    %c0_125 = arith.constant 0 : index
    %388 = vector.load %arg9[%c0_124, %c0_125] : memref<1x128xf32, #tpu.memory_space<vmem>>, vector<1x128xf32>
    %389 = vector.broadcast %388 : vector<1x128xf32> to vector<8x128xf32>
    %390 = arith.addf %387, %389 : vector<8x128xf32>
    %391 = arith.negf %390 : vector<8x128xf32>
    %392 = math.exp %391 : vector<8x128xf32>
    %cst_126 = arith.constant 1.000000e+00 : f32
    %393 = vector.broadcast %cst_126 : f32 to vector<8x128xf32>
    %394 = arith.addf %393, %392 : vector<8x128xf32>
    %395 = arith.divf %393, %394 : vector<8x128xf32>
    %396 = vector.extract_strided_slice %395 {offsets = [0, 0], sizes = [8, 32], strides = [1, 1]} : vector<8x128xf32> to vector<8x32xf32>
    %397 = vector.extract_strided_slice %395 {offsets = [0, 32], sizes = [8, 32], strides = [1, 1]} : vector<8x128xf32> to vector<8x32xf32>
    %398 = vector.extract_strided_slice %395 {offsets = [0, 96], sizes = [8, 32], strides = [1, 1]} : vector<8x128xf32> to vector<8x32xf32>
    %399 = vector.extract_strided_slice %390 {offsets = [0, 64], sizes = [8, 32], strides = [1, 1]} : vector<8x128xf32> to vector<8x32xf32>
    %400 = math.tanh %399 : vector<8x32xf32>
    %401 = arith.mulf %397, %379 : vector<8x32xf32>
    %402 = arith.mulf %396, %400 : vector<8x32xf32>
    %403 = arith.addf %401, %402 : vector<8x32xf32>
    %404 = math.tanh %403 : vector<8x32xf32>
    %405 = arith.mulf %398, %404 : vector<8x32xf32>
    %406 = tpu.concatenate %405, %375 in 1 : vector<8x32xf32>, vector<8x32xf32> -> vector<8x64xf32>
    %c0_127 = arith.constant 0 : index
    %c0_128 = arith.constant 0 : index
    %407 = vector.load %arg10[%c0_127, %c0_128] : memref<64x128xf32, #tpu.memory_space<vmem>>, vector<64x128xf32>
    %cst_129 = arith.constant dense<0.000000e+00> : vector<8x128xf32>
    %408 = tpu.matmul %406, %407, %cst_129 {dimension_numbers = #tpu.dot_dimension_numbers<[1], [0], [0], [1], [0, 0, 1, 1], [], []>} : vector<8x64xf32>, vector<64x128xf32>, vector<8x128xf32> -> vector<8x128xf32>
    %c0_130 = arith.constant 0 : index
    %c0_131 = arith.constant 0 : index
    %409 = vector.load %arg11[%c0_130, %c0_131] : memref<1x128xf32, #tpu.memory_space<vmem>>, vector<1x128xf32>
    %410 = vector.broadcast %409 : vector<1x128xf32> to vector<8x128xf32>
    %411 = arith.addf %408, %410 : vector<8x128xf32>
    %412 = arith.negf %411 : vector<8x128xf32>
    %413 = math.exp %412 : vector<8x128xf32>
    %cst_132 = arith.constant 1.000000e+00 : f32
    %414 = vector.broadcast %cst_132 : f32 to vector<8x128xf32>
    %415 = arith.addf %414, %413 : vector<8x128xf32>
    %416 = arith.divf %414, %415 : vector<8x128xf32>
    %417 = vector.extract_strided_slice %416 {offsets = [0, 0], sizes = [8, 32], strides = [1, 1]} : vector<8x128xf32> to vector<8x32xf32>
    %418 = vector.extract_strided_slice %416 {offsets = [0, 32], sizes = [8, 32], strides = [1, 1]} : vector<8x128xf32> to vector<8x32xf32>
    %419 = vector.extract_strided_slice %416 {offsets = [0, 96], sizes = [8, 32], strides = [1, 1]} : vector<8x128xf32> to vector<8x32xf32>
    %420 = vector.extract_strided_slice %411 {offsets = [0, 64], sizes = [8, 32], strides = [1, 1]} : vector<8x128xf32> to vector<8x32xf32>
    %421 = math.tanh %420 : vector<8x32xf32>
    %422 = arith.mulf %418, %383 : vector<8x32xf32>
    %423 = arith.mulf %417, %421 : vector<8x32xf32>
    %424 = arith.addf %422, %423 : vector<8x32xf32>
    %425 = math.tanh %424 : vector<8x32xf32>
    %426 = arith.mulf %419, %425 : vector<8x32xf32>
    %cst_133 = arith.constant -5.000000e+01 : f32
    %cst_134 = arith.constant 5.000000e+01 : f32
    %427 = vector.broadcast %cst_133 : f32 to vector<8x32xf32>
    %428 = arith.maximumf %427, %405 : vector<8x32xf32>
    %429 = vector.broadcast %cst_134 : f32 to vector<8x32xf32>
    %430 = arith.minimumf %429, %428 : vector<8x32xf32>
    %cst_135 = arith.constant -5.000000e+01 : f32
    %cst_136 = arith.constant 5.000000e+01 : f32
    %431 = vector.broadcast %cst_135 : f32 to vector<8x32xf32>
    %432 = arith.maximumf %431, %426 : vector<8x32xf32>
    %433 = vector.broadcast %cst_136 : f32 to vector<8x32xf32>
    %434 = arith.minimumf %433, %432 : vector<8x32xf32>
    %cst_137 = arith.constant -5.000000e+01 : f32
    %cst_138 = arith.constant 5.000000e+01 : f32
    %435 = vector.broadcast %cst_137 : f32 to vector<8x32xf32>
    %436 = arith.maximumf %435, %403 : vector<8x32xf32>
    %437 = vector.broadcast %cst_138 : f32 to vector<8x32xf32>
    %438 = arith.minimumf %437, %436 : vector<8x32xf32>
    %cst_139 = arith.constant -5.000000e+01 : f32
    %cst_140 = arith.constant 5.000000e+01 : f32
    %439 = vector.broadcast %cst_139 : f32 to vector<8x32xf32>
    %440 = arith.maximumf %439, %424 : vector<8x32xf32>
    %441 = vector.broadcast %cst_140 : f32 to vector<8x32xf32>
    %442 = arith.minimumf %441, %440 : vector<8x32xf32>
    %443 = vector.extract_strided_slice %19 {offsets = [8, 0], sizes = [8, 128], strides = [1, 1]} : vector<72x128xf32> to vector<8x128xf32>
    %c16_141 = arith.constant 16 : index
    %c0_142 = arith.constant 0 : index
    %444 = vector.load %arg8[%c16_141, %c0_142] : memref<48x128xf32, #tpu.memory_space<vmem>>, vector<32x128xf32>
    %cst_143 = arith.constant dense<0.000000e+00> : vector<8x128xf32>
    %445 = tpu.matmul %430, %444, %cst_143 {dimension_numbers = #tpu.dot_dimension_numbers<[1], [0], [0], [1], [0, 0, 1, 1], [], []>} : vector<8x32xf32>, vector<32x128xf32>, vector<8x128xf32> -> vector<8x128xf32>
    %446 = arith.addf %443, %445 : vector<8x128xf32>
    %c0_144 = arith.constant 0 : index
    %c0_145 = arith.constant 0 : index
    %447 = vector.load %arg9[%c0_144, %c0_145] : memref<1x128xf32, #tpu.memory_space<vmem>>, vector<1x128xf32>
    %448 = vector.broadcast %447 : vector<1x128xf32> to vector<8x128xf32>
    %449 = arith.addf %446, %448 : vector<8x128xf32>
    %450 = arith.negf %449 : vector<8x128xf32>
    %451 = math.exp %450 : vector<8x128xf32>
    %cst_146 = arith.constant 1.000000e+00 : f32
    %452 = vector.broadcast %cst_146 : f32 to vector<8x128xf32>
    %453 = arith.addf %452, %451 : vector<8x128xf32>
    %454 = arith.divf %452, %453 : vector<8x128xf32>
    %455 = vector.extract_strided_slice %454 {offsets = [0, 0], sizes = [8, 32], strides = [1, 1]} : vector<8x128xf32> to vector<8x32xf32>
    %456 = vector.extract_strided_slice %454 {offsets = [0, 32], sizes = [8, 32], strides = [1, 1]} : vector<8x128xf32> to vector<8x32xf32>
    %457 = vector.extract_strided_slice %454 {offsets = [0, 96], sizes = [8, 32], strides = [1, 1]} : vector<8x128xf32> to vector<8x32xf32>
    %458 = vector.extract_strided_slice %449 {offsets = [0, 64], sizes = [8, 32], strides = [1, 1]} : vector<8x128xf32> to vector<8x32xf32>
    %459 = math.tanh %458 : vector<8x32xf32>
    %460 = arith.mulf %456, %438 : vector<8x32xf32>
    %461 = arith.mulf %455, %459 : vector<8x32xf32>
    %462 = arith.addf %460, %461 : vector<8x32xf32>
    %463 = math.tanh %462 : vector<8x32xf32>
    %464 = arith.mulf %457, %463 : vector<8x32xf32>
    %465 = tpu.concatenate %464, %434 in 1 : vector<8x32xf32>, vector<8x32xf32> -> vector<8x64xf32>
    %c0_147 = arith.constant 0 : index
    %c0_148 = arith.constant 0 : index
    %466 = vector.load %arg10[%c0_147, %c0_148] : memref<64x128xf32, #tpu.memory_space<vmem>>, vector<64x128xf32>
    %cst_149 = arith.constant dense<0.000000e+00> : vector<8x128xf32>
    %467 = tpu.matmul %465, %466, %cst_149 {dimension_numbers = #tpu.dot_dimension_numbers<[1], [0], [0], [1], [0, 0, 1, 1], [], []>} : vector<8x64xf32>, vector<64x128xf32>, vector<8x128xf32> -> vector<8x128xf32>
    %c0_150 = arith.constant 0 : index
    %c0_151 = arith.constant 0 : index
    %468 = vector.load %arg11[%c0_150, %c0_151] : memref<1x128xf32, #tpu.memory_space<vmem>>, vector<1x128xf32>
    %469 = vector.broadcast %468 : vector<1x128xf32> to vector<8x128xf32>
    %470 = arith.addf %467, %469 : vector<8x128xf32>
    %471 = arith.negf %470 : vector<8x128xf32>
    %472 = math.exp %471 : vector<8x128xf32>
    %cst_152 = arith.constant 1.000000e+00 : f32
    %473 = vector.broadcast %cst_152 : f32 to vector<8x128xf32>
    %474 = arith.addf %473, %472 : vector<8x128xf32>
    %475 = arith.divf %473, %474 : vector<8x128xf32>
    %476 = vector.extract_strided_slice %475 {offsets = [0, 0], sizes = [8, 32], strides = [1, 1]} : vector<8x128xf32> to vector<8x32xf32>
    %477 = vector.extract_strided_slice %475 {offsets = [0, 32], sizes = [8, 32], strides = [1, 1]} : vector<8x128xf32> to vector<8x32xf32>
    %478 = vector.extract_strided_slice %475 {offsets = [0, 96], sizes = [8, 32], strides = [1, 1]} : vector<8x128xf32> to vector<8x32xf32>
    %479 = vector.extract_strided_slice %470 {offsets = [0, 64], sizes = [8, 32], strides = [1, 1]} : vector<8x128xf32> to vector<8x32xf32>
    %480 = math.tanh %479 : vector<8x32xf32>
    %481 = arith.mulf %477, %442 : vector<8x32xf32>
    %482 = arith.mulf %476, %480 : vector<8x32xf32>
    %483 = arith.addf %481, %482 : vector<8x32xf32>
    %484 = math.tanh %483 : vector<8x32xf32>
    %485 = arith.mulf %478, %484 : vector<8x32xf32>
    %cst_153 = arith.constant -5.000000e+01 : f32
    %cst_154 = arith.constant 5.000000e+01 : f32
    %486 = vector.broadcast %cst_153 : f32 to vector<8x32xf32>
    %487 = arith.maximumf %486, %464 : vector<8x32xf32>
    %488 = vector.broadcast %cst_154 : f32 to vector<8x32xf32>
    %489 = arith.minimumf %488, %487 : vector<8x32xf32>
    %cst_155 = arith.constant -5.000000e+01 : f32
    %cst_156 = arith.constant 5.000000e+01 : f32
    %490 = vector.broadcast %cst_155 : f32 to vector<8x32xf32>
    %491 = arith.maximumf %490, %485 : vector<8x32xf32>
    %492 = vector.broadcast %cst_156 : f32 to vector<8x32xf32>
    %493 = arith.minimumf %492, %491 : vector<8x32xf32>
    %cst_157 = arith.constant -5.000000e+01 : f32
    %cst_158 = arith.constant 5.000000e+01 : f32
    %494 = vector.broadcast %cst_157 : f32 to vector<8x32xf32>
    %495 = arith.maximumf %494, %462 : vector<8x32xf32>
    %496 = vector.broadcast %cst_158 : f32 to vector<8x32xf32>
    %497 = arith.minimumf %496, %495 : vector<8x32xf32>
    %cst_159 = arith.constant -5.000000e+01 : f32
    %cst_160 = arith.constant 5.000000e+01 : f32
    %498 = vector.broadcast %cst_159 : f32 to vector<8x32xf32>
    %499 = arith.maximumf %498, %483 : vector<8x32xf32>
    %500 = vector.broadcast %cst_160 : f32 to vector<8x32xf32>
    %501 = arith.minimumf %500, %499 : vector<8x32xf32>
    %502 = vector.extract_strided_slice %19 {offsets = [16, 0], sizes = [8, 128], strides = [1, 1]} : vector<72x128xf32> to vector<8x128xf32>
    %c16_161 = arith.constant 16 : index
    %c0_162 = arith.constant 0 : index
    %503 = vector.load %arg8[%c16_161, %c0_162] : memref<48x128xf32, #tpu.memory_space<vmem>>, vector<32x128xf32>
    %cst_163 = arith.constant dense<0.000000e+00> : vector<8x128xf32>
    %504 = tpu.matmul %489, %503, %cst_163 {dimension_numbers = #tpu.dot_dimension_numbers<[1], [0], [0], [1], [0, 0, 1, 1], [], []>} : vector<8x32xf32>, vector<32x128xf32>, vector<8x128xf32> -> vector<8x128xf32>
    %505 = arith.addf %502, %504 : vector<8x128xf32>
    %c0_164 = arith.constant 0 : index
    %c0_165 = arith.constant 0 : index
    %506 = vector.load %arg9[%c0_164, %c0_165] : memref<1x128xf32, #tpu.memory_space<vmem>>, vector<1x128xf32>
    %507 = vector.broadcast %506 : vector<1x128xf32> to vector<8x128xf32>
    %508 = arith.addf %505, %507 : vector<8x128xf32>
    %509 = arith.negf %508 : vector<8x128xf32>
    %510 = math.exp %509 : vector<8x128xf32>
    %cst_166 = arith.constant 1.000000e+00 : f32
    %511 = vector.broadcast %cst_166 : f32 to vector<8x128xf32>
    %512 = arith.addf %511, %510 : vector<8x128xf32>
    %513 = arith.divf %511, %512 : vector<8x128xf32>
    %514 = vector.extract_strided_slice %513 {offsets = [0, 0], sizes = [8, 32], strides = [1, 1]} : vector<8x128xf32> to vector<8x32xf32>
    %515 = vector.extract_strided_slice %513 {offsets = [0, 32], sizes = [8, 32], strides = [1, 1]} : vector<8x128xf32> to vector<8x32xf32>
    %516 = vector.extract_strided_slice %513 {offsets = [0, 96], sizes = [8, 32], strides = [1, 1]} : vector<8x128xf32> to vector<8x32xf32>
    %517 = vector.extract_strided_slice %508 {offsets = [0, 64], sizes = [8, 32], strides = [1, 1]} : vector<8x128xf32> to vector<8x32xf32>
    %518 = math.tanh %517 : vector<8x32xf32>
    %519 = arith.mulf %515, %497 : vector<8x32xf32>
    %520 = arith.mulf %514, %518 : vector<8x32xf32>
    %521 = arith.addf %519, %520 : vector<8x32xf32>
    %522 = math.tanh %521 : vector<8x32xf32>
    %523 = arith.mulf %516, %522 : vector<8x32xf32>
    %524 = tpu.concatenate %523, %493 in 1 : vector<8x32xf32>, vector<8x32xf32> -> vector<8x64xf32>
    %c0_167 = arith.constant 0 : index
    %c0_168 = arith.constant 0 : index
    %525 = vector.load %arg10[%c0_167, %c0_168] : memref<64x128xf32, #tpu.memory_space<vmem>>, vector<64x128xf32>
    %cst_169 = arith.constant dense<0.000000e+00> : vector<8x128xf32>
    %526 = tpu.matmul %524, %525, %cst_169 {dimension_numbers = #tpu.dot_dimension_numbers<[1], [0], [0], [1], [0, 0, 1, 1], [], []>} : vector<8x64xf32>, vector<64x128xf32>, vector<8x128xf32> -> vector<8x128xf32>
    %c0_170 = arith.constant 0 : index
    %c0_171 = arith.constant 0 : index
    %527 = vector.load %arg11[%c0_170, %c0_171] : memref<1x128xf32, #tpu.memory_space<vmem>>, vector<1x128xf32>
    %528 = vector.broadcast %527 : vector<1x128xf32> to vector<8x128xf32>
    %529 = arith.addf %526, %528 : vector<8x128xf32>
    %530 = arith.negf %529 : vector<8x128xf32>
    %531 = math.exp %530 : vector<8x128xf32>
    %cst_172 = arith.constant 1.000000e+00 : f32
    %532 = vector.broadcast %cst_172 : f32 to vector<8x128xf32>
    %533 = arith.addf %532, %531 : vector<8x128xf32>
    %534 = arith.divf %532, %533 : vector<8x128xf32>
    %535 = vector.extract_strided_slice %534 {offsets = [0, 0], sizes = [8, 32], strides = [1, 1]} : vector<8x128xf32> to vector<8x32xf32>
    %536 = vector.extract_strided_slice %534 {offsets = [0, 32], sizes = [8, 32], strides = [1, 1]} : vector<8x128xf32> to vector<8x32xf32>
    %537 = vector.extract_strided_slice %534 {offsets = [0, 96], sizes = [8, 32], strides = [1, 1]} : vector<8x128xf32> to vector<8x32xf32>
    %538 = vector.extract_strided_slice %529 {offsets = [0, 64], sizes = [8, 32], strides = [1, 1]} : vector<8x128xf32> to vector<8x32xf32>
    %539 = math.tanh %538 : vector<8x32xf32>
    %540 = arith.mulf %536, %501 : vector<8x32xf32>
    %541 = arith.mulf %535, %539 : vector<8x32xf32>
    %542 = arith.addf %540, %541 : vector<8x32xf32>
    %543 = math.tanh %542 : vector<8x32xf32>
    %544 = arith.mulf %537, %543 : vector<8x32xf32>
    %cst_173 = arith.constant -5.000000e+01 : f32
    %cst_174 = arith.constant 5.000000e+01 : f32
    %545 = vector.broadcast %cst_173 : f32 to vector<8x32xf32>
    %546 = arith.maximumf %545, %523 : vector<8x32xf32>
    %547 = vector.broadcast %cst_174 : f32 to vector<8x32xf32>
    %548 = arith.minimumf %547, %546 : vector<8x32xf32>
    %cst_175 = arith.constant -5.000000e+01 : f32
    %cst_176 = arith.constant 5.000000e+01 : f32
    %549 = vector.broadcast %cst_175 : f32 to vector<8x32xf32>
    %550 = arith.maximumf %549, %544 : vector<8x32xf32>
    %551 = vector.broadcast %cst_176 : f32 to vector<8x32xf32>
    %552 = arith.minimumf %551, %550 : vector<8x32xf32>
    %cst_177 = arith.constant -5.000000e+01 : f32
    %cst_178 = arith.constant 5.000000e+01 : f32
    %553 = vector.broadcast %cst_177 : f32 to vector<8x32xf32>
    %554 = arith.maximumf %553, %521 : vector<8x32xf32>
    %555 = vector.broadcast %cst_178 : f32 to vector<8x32xf32>
    %556 = arith.minimumf %555, %554 : vector<8x32xf32>
    %cst_179 = arith.constant -5.000000e+01 : f32
    %cst_180 = arith.constant 5.000000e+01 : f32
    %557 = vector.broadcast %cst_179 : f32 to vector<8x32xf32>
    %558 = arith.maximumf %557, %542 : vector<8x32xf32>
    %559 = vector.broadcast %cst_180 : f32 to vector<8x32xf32>
    %560 = arith.minimumf %559, %558 : vector<8x32xf32>
    %561 = vector.extract_strided_slice %19 {offsets = [24, 0], sizes = [8, 128], strides = [1, 1]} : vector<72x128xf32> to vector<8x128xf32>
    %c16_181 = arith.constant 16 : index
    %c0_182 = arith.constant 0 : index
    %562 = vector.load %arg8[%c16_181, %c0_182] : memref<48x128xf32, #tpu.memory_space<vmem>>, vector<32x128xf32>
    %cst_183 = arith.constant dense<0.000000e+00> : vector<8x128xf32>
    %563 = tpu.matmul %548, %562, %cst_183 {dimension_numbers = #tpu.dot_dimension_numbers<[1], [0], [0], [1], [0, 0, 1, 1], [], []>} : vector<8x32xf32>, vector<32x128xf32>, vector<8x128xf32> -> vector<8x128xf32>
    %564 = arith.addf %561, %563 : vector<8x128xf32>
    %c0_184 = arith.constant 0 : index
    %c0_185 = arith.constant 0 : index
    %565 = vector.load %arg9[%c0_184, %c0_185] : memref<1x128xf32, #tpu.memory_space<vmem>>, vector<1x128xf32>
    %566 = vector.broadcast %565 : vector<1x128xf32> to vector<8x128xf32>
    %567 = arith.addf %564, %566 : vector<8x128xf32>
    %568 = arith.negf %567 : vector<8x128xf32>
    %569 = math.exp %568 : vector<8x128xf32>
    %cst_186 = arith.constant 1.000000e+00 : f32
    %570 = vector.broadcast %cst_186 : f32 to vector<8x128xf32>
    %571 = arith.addf %570, %569 : vector<8x128xf32>
    %572 = arith.divf %570, %571 : vector<8x128xf32>
    %573 = vector.extract_strided_slice %572 {offsets = [0, 0], sizes = [8, 32], strides = [1, 1]} : vector<8x128xf32> to vector<8x32xf32>
    %574 = vector.extract_strided_slice %572 {offsets = [0, 32], sizes = [8, 32], strides = [1, 1]} : vector<8x128xf32> to vector<8x32xf32>
    %575 = vector.extract_strided_slice %572 {offsets = [0, 96], sizes = [8, 32], strides = [1, 1]} : vector<8x128xf32> to vector<8x32xf32>
    %576 = vector.extract_strided_slice %567 {offsets = [0, 64], sizes = [8, 32], strides = [1, 1]} : vector<8x128xf32> to vector<8x32xf32>
    %577 = math.tanh %576 : vector<8x32xf32>
    %578 = arith.mulf %574, %556 : vector<8x32xf32>
    %579 = arith.mulf %573, %577 : vector<8x32xf32>
    %580 = arith.addf %578, %579 : vector<8x32xf32>
    %581 = math.tanh %580 : vector<8x32xf32>
    %582 = arith.mulf %575, %581 : vector<8x32xf32>
    %583 = tpu.concatenate %582, %552 in 1 : vector<8x32xf32>, vector<8x32xf32> -> vector<8x64xf32>
    %c0_187 = arith.constant 0 : index
    %c0_188 = arith.constant 0 : index
    %584 = vector.load %arg10[%c0_187, %c0_188] : memref<64x128xf32, #tpu.memory_space<vmem>>, vector<64x128xf32>
    %cst_189 = arith.constant dense<0.000000e+00> : vector<8x128xf32>
    %585 = tpu.matmul %583, %584, %cst_189 {dimension_numbers = #tpu.dot_dimension_numbers<[1], [0], [0], [1], [0, 0, 1, 1], [], []>} : vector<8x64xf32>, vector<64x128xf32>, vector<8x128xf32> -> vector<8x128xf32>
    %c0_190 = arith.constant 0 : index
    %c0_191 = arith.constant 0 : index
    %586 = vector.load %arg11[%c0_190, %c0_191] : memref<1x128xf32, #tpu.memory_space<vmem>>, vector<1x128xf32>
    %587 = vector.broadcast %586 : vector<1x128xf32> to vector<8x128xf32>
    %588 = arith.addf %585, %587 : vector<8x128xf32>
    %589 = arith.negf %588 : vector<8x128xf32>
    %590 = math.exp %589 : vector<8x128xf32>
    %cst_192 = arith.constant 1.000000e+00 : f32
    %591 = vector.broadcast %cst_192 : f32 to vector<8x128xf32>
    %592 = arith.addf %591, %590 : vector<8x128xf32>
    %593 = arith.divf %591, %592 : vector<8x128xf32>
    %594 = vector.extract_strided_slice %593 {offsets = [0, 0], sizes = [8, 32], strides = [1, 1]} : vector<8x128xf32> to vector<8x32xf32>
    %595 = vector.extract_strided_slice %593 {offsets = [0, 32], sizes = [8, 32], strides = [1, 1]} : vector<8x128xf32> to vector<8x32xf32>
    %596 = vector.extract_strided_slice %593 {offsets = [0, 96], sizes = [8, 32], strides = [1, 1]} : vector<8x128xf32> to vector<8x32xf32>
    %597 = vector.extract_strided_slice %588 {offsets = [0, 64], sizes = [8, 32], strides = [1, 1]} : vector<8x128xf32> to vector<8x32xf32>
    %598 = math.tanh %597 : vector<8x32xf32>
    %599 = arith.mulf %595, %560 : vector<8x32xf32>
    %600 = arith.mulf %594, %598 : vector<8x32xf32>
    %601 = arith.addf %599, %600 : vector<8x32xf32>
    %602 = math.tanh %601 : vector<8x32xf32>
    %603 = arith.mulf %596, %602 : vector<8x32xf32>
    %cst_193 = arith.constant -5.000000e+01 : f32
    %cst_194 = arith.constant 5.000000e+01 : f32
    %604 = vector.broadcast %cst_193 : f32 to vector<8x32xf32>
    %605 = arith.maximumf %604, %582 : vector<8x32xf32>
    %606 = vector.broadcast %cst_194 : f32 to vector<8x32xf32>
    %607 = arith.minimumf %606, %605 : vector<8x32xf32>
    %cst_195 = arith.constant -5.000000e+01 : f32
    %cst_196 = arith.constant 5.000000e+01 : f32
    %608 = vector.broadcast %cst_195 : f32 to vector<8x32xf32>
    %609 = arith.maximumf %608, %603 : vector<8x32xf32>
    %610 = vector.broadcast %cst_196 : f32 to vector<8x32xf32>
    %611 = arith.minimumf %610, %609 : vector<8x32xf32>
    %cst_197 = arith.constant -5.000000e+01 : f32
    %cst_198 = arith.constant 5.000000e+01 : f32
    %612 = vector.broadcast %cst_197 : f32 to vector<8x32xf32>
    %613 = arith.maximumf %612, %580 : vector<8x32xf32>
    %614 = vector.broadcast %cst_198 : f32 to vector<8x32xf32>
    %615 = arith.minimumf %614, %613 : vector<8x32xf32>
    %cst_199 = arith.constant -5.000000e+01 : f32
    %cst_200 = arith.constant 5.000000e+01 : f32
    %616 = vector.broadcast %cst_199 : f32 to vector<8x32xf32>
    %617 = arith.maximumf %616, %601 : vector<8x32xf32>
    %618 = vector.broadcast %cst_200 : f32 to vector<8x32xf32>
    %619 = arith.minimumf %618, %617 : vector<8x32xf32>
    %620 = vector.extract_strided_slice %19 {offsets = [32, 0], sizes = [8, 128], strides = [1, 1]} : vector<72x128xf32> to vector<8x128xf32>
    %c16_201 = arith.constant 16 : index
    %c0_202 = arith.constant 0 : index
    %621 = vector.load %arg8[%c16_201, %c0_202] : memref<48x128xf32, #tpu.memory_space<vmem>>, vector<32x128xf32>
    %cst_203 = arith.constant dense<0.000000e+00> : vector<8x128xf32>
    %622 = tpu.matmul %607, %621, %cst_203 {dimension_numbers = #tpu.dot_dimension_numbers<[1], [0], [0], [1], [0, 0, 1, 1], [], []>} : vector<8x32xf32>, vector<32x128xf32>, vector<8x128xf32> -> vector<8x128xf32>
    %623 = arith.addf %620, %622 : vector<8x128xf32>
    %c0_204 = arith.constant 0 : index
    %c0_205 = arith.constant 0 : index
    %624 = vector.load %arg9[%c0_204, %c0_205] : memref<1x128xf32, #tpu.memory_space<vmem>>, vector<1x128xf32>
    %625 = vector.broadcast %624 : vector<1x128xf32> to vector<8x128xf32>
    %626 = arith.addf %623, %625 : vector<8x128xf32>
    %627 = arith.negf %626 : vector<8x128xf32>
    %628 = math.exp %627 : vector<8x128xf32>
    %cst_206 = arith.constant 1.000000e+00 : f32
    %629 = vector.broadcast %cst_206 : f32 to vector<8x128xf32>
    %630 = arith.addf %629, %628 : vector<8x128xf32>
    %631 = arith.divf %629, %630 : vector<8x128xf32>
    %632 = vector.extract_strided_slice %631 {offsets = [0, 0], sizes = [8, 32], strides = [1, 1]} : vector<8x128xf32> to vector<8x32xf32>
    %633 = vector.extract_strided_slice %631 {offsets = [0, 32], sizes = [8, 32], strides = [1, 1]} : vector<8x128xf32> to vector<8x32xf32>
    %634 = vector.extract_strided_slice %631 {offsets = [0, 96], sizes = [8, 32], strides = [1, 1]} : vector<8x128xf32> to vector<8x32xf32>
    %635 = vector.extract_strided_slice %626 {offsets = [0, 64], sizes = [8, 32], strides = [1, 1]} : vector<8x128xf32> to vector<8x32xf32>
    %636 = math.tanh %635 : vector<8x32xf32>
    %637 = arith.mulf %633, %615 : vector<8x32xf32>
    %638 = arith.mulf %632, %636 : vector<8x32xf32>
    %639 = arith.addf %637, %638 : vector<8x32xf32>
    %640 = math.tanh %639 : vector<8x32xf32>
    %641 = arith.mulf %634, %640 : vector<8x32xf32>
    %642 = tpu.concatenate %641, %611 in 1 : vector<8x32xf32>, vector<8x32xf32> -> vector<8x64xf32>
    %c0_207 = arith.constant 0 : index
    %c0_208 = arith.constant 0 : index
    %643 = vector.load %arg10[%c0_207, %c0_208] : memref<64x128xf32, #tpu.memory_space<vmem>>, vector<64x128xf32>
    %cst_209 = arith.constant dense<0.000000e+00> : vector<8x128xf32>
    %644 = tpu.matmul %642, %643, %cst_209 {dimension_numbers = #tpu.dot_dimension_numbers<[1], [0], [0], [1], [0, 0, 1, 1], [], []>} : vector<8x64xf32>, vector<64x128xf32>, vector<8x128xf32> -> vector<8x128xf32>
    %c0_210 = arith.constant 0 : index
    %c0_211 = arith.constant 0 : index
    %645 = vector.load %arg11[%c0_210, %c0_211] : memref<1x128xf32, #tpu.memory_space<vmem>>, vector<1x128xf32>
    %646 = vector.broadcast %645 : vector<1x128xf32> to vector<8x128xf32>
    %647 = arith.addf %644, %646 : vector<8x128xf32>
    %648 = arith.negf %647 : vector<8x128xf32>
    %649 = math.exp %648 : vector<8x128xf32>
    %cst_212 = arith.constant 1.000000e+00 : f32
    %650 = vector.broadcast %cst_212 : f32 to vector<8x128xf32>
    %651 = arith.addf %650, %649 : vector<8x128xf32>
    %652 = arith.divf %650, %651 : vector<8x128xf32>
    %653 = vector.extract_strided_slice %652 {offsets = [0, 0], sizes = [8, 32], strides = [1, 1]} : vector<8x128xf32> to vector<8x32xf32>
    %654 = vector.extract_strided_slice %652 {offsets = [0, 32], sizes = [8, 32], strides = [1, 1]} : vector<8x128xf32> to vector<8x32xf32>
    %655 = vector.extract_strided_slice %652 {offsets = [0, 96], sizes = [8, 32], strides = [1, 1]} : vector<8x128xf32> to vector<8x32xf32>
    %656 = vector.extract_strided_slice %647 {offsets = [0, 64], sizes = [8, 32], strides = [1, 1]} : vector<8x128xf32> to vector<8x32xf32>
    %657 = math.tanh %656 : vector<8x32xf32>
    %658 = arith.mulf %654, %619 : vector<8x32xf32>
    %659 = arith.mulf %653, %657 : vector<8x32xf32>
    %660 = arith.addf %658, %659 : vector<8x32xf32>
    %661 = math.tanh %660 : vector<8x32xf32>
    %662 = arith.mulf %655, %661 : vector<8x32xf32>
    %cst_213 = arith.constant -5.000000e+01 : f32
    %cst_214 = arith.constant 5.000000e+01 : f32
    %663 = vector.broadcast %cst_213 : f32 to vector<8x32xf32>
    %664 = arith.maximumf %663, %641 : vector<8x32xf32>
    %665 = vector.broadcast %cst_214 : f32 to vector<8x32xf32>
    %666 = arith.minimumf %665, %664 : vector<8x32xf32>
    %cst_215 = arith.constant -5.000000e+01 : f32
    %cst_216 = arith.constant 5.000000e+01 : f32
    %667 = vector.broadcast %cst_215 : f32 to vector<8x32xf32>
    %668 = arith.maximumf %667, %662 : vector<8x32xf32>
    %669 = vector.broadcast %cst_216 : f32 to vector<8x32xf32>
    %670 = arith.minimumf %669, %668 : vector<8x32xf32>
    %cst_217 = arith.constant -5.000000e+01 : f32
    %cst_218 = arith.constant 5.000000e+01 : f32
    %671 = vector.broadcast %cst_217 : f32 to vector<8x32xf32>
    %672 = arith.maximumf %671, %639 : vector<8x32xf32>
    %673 = vector.broadcast %cst_218 : f32 to vector<8x32xf32>
    %674 = arith.minimumf %673, %672 : vector<8x32xf32>
    %cst_219 = arith.constant -5.000000e+01 : f32
    %cst_220 = arith.constant 5.000000e+01 : f32
    %675 = vector.broadcast %cst_219 : f32 to vector<8x32xf32>
    %676 = arith.maximumf %675, %660 : vector<8x32xf32>
    %677 = vector.broadcast %cst_220 : f32 to vector<8x32xf32>
    %678 = arith.minimumf %677, %676 : vector<8x32xf32>
    %679 = vector.extract_strided_slice %19 {offsets = [40, 0], sizes = [8, 128], strides = [1, 1]} : vector<72x128xf32> to vector<8x128xf32>
    %c16_221 = arith.constant 16 : index
    %c0_222 = arith.constant 0 : index
    %680 = vector.load %arg8[%c16_221, %c0_222] : memref<48x128xf32, #tpu.memory_space<vmem>>, vector<32x128xf32>
    %cst_223 = arith.constant dense<0.000000e+00> : vector<8x128xf32>
    %681 = tpu.matmul %666, %680, %cst_223 {dimension_numbers = #tpu.dot_dimension_numbers<[1], [0], [0], [1], [0, 0, 1, 1], [], []>} : vector<8x32xf32>, vector<32x128xf32>, vector<8x128xf32> -> vector<8x128xf32>
    %682 = arith.addf %679, %681 : vector<8x128xf32>
    %c0_224 = arith.constant 0 : index
    %c0_225 = arith.constant 0 : index
    %683 = vector.load %arg9[%c0_224, %c0_225] : memref<1x128xf32, #tpu.memory_space<vmem>>, vector<1x128xf32>
    %684 = vector.broadcast %683 : vector<1x128xf32> to vector<8x128xf32>
    %685 = arith.addf %682, %684 : vector<8x128xf32>
    %686 = arith.negf %685 : vector<8x128xf32>
    %687 = math.exp %686 : vector<8x128xf32>
    %cst_226 = arith.constant 1.000000e+00 : f32
    %688 = vector.broadcast %cst_226 : f32 to vector<8x128xf32>
    %689 = arith.addf %688, %687 : vector<8x128xf32>
    %690 = arith.divf %688, %689 : vector<8x128xf32>
    %691 = vector.extract_strided_slice %690 {offsets = [0, 0], sizes = [8, 32], strides = [1, 1]} : vector<8x128xf32> to vector<8x32xf32>
    %692 = vector.extract_strided_slice %690 {offsets = [0, 32], sizes = [8, 32], strides = [1, 1]} : vector<8x128xf32> to vector<8x32xf32>
    %693 = vector.extract_strided_slice %690 {offsets = [0, 96], sizes = [8, 32], strides = [1, 1]} : vector<8x128xf32> to vector<8x32xf32>
    %694 = vector.extract_strided_slice %685 {offsets = [0, 64], sizes = [8, 32], strides = [1, 1]} : vector<8x128xf32> to vector<8x32xf32>
    %695 = math.tanh %694 : vector<8x32xf32>
    %696 = arith.mulf %692, %674 : vector<8x32xf32>
    %697 = arith.mulf %691, %695 : vector<8x32xf32>
    %698 = arith.addf %696, %697 : vector<8x32xf32>
    %699 = math.tanh %698 : vector<8x32xf32>
    %700 = arith.mulf %693, %699 : vector<8x32xf32>
    %701 = tpu.concatenate %700, %670 in 1 : vector<8x32xf32>, vector<8x32xf32> -> vector<8x64xf32>
    %c0_227 = arith.constant 0 : index
    %c0_228 = arith.constant 0 : index
    %702 = vector.load %arg10[%c0_227, %c0_228] : memref<64x128xf32, #tpu.memory_space<vmem>>, vector<64x128xf32>
    %cst_229 = arith.constant dense<0.000000e+00> : vector<8x128xf32>
    %703 = tpu.matmul %701, %702, %cst_229 {dimension_numbers = #tpu.dot_dimension_numbers<[1], [0], [0], [1], [0, 0, 1, 1], [], []>} : vector<8x64xf32>, vector<64x128xf32>, vector<8x128xf32> -> vector<8x128xf32>
    %c0_230 = arith.constant 0 : index
    %c0_231 = arith.constant 0 : index
    %704 = vector.load %arg11[%c0_230, %c0_231] : memref<1x128xf32, #tpu.memory_space<vmem>>, vector<1x128xf32>
    %705 = vector.broadcast %704 : vector<1x128xf32> to vector<8x128xf32>
    %706 = arith.addf %703, %705 : vector<8x128xf32>
    %707 = arith.negf %706 : vector<8x128xf32>
    %708 = math.exp %707 : vector<8x128xf32>
    %cst_232 = arith.constant 1.000000e+00 : f32
    %709 = vector.broadcast %cst_232 : f32 to vector<8x128xf32>
    %710 = arith.addf %709, %708 : vector<8x128xf32>
    %711 = arith.divf %709, %710 : vector<8x128xf32>
    %712 = vector.extract_strided_slice %711 {offsets = [0, 0], sizes = [8, 32], strides = [1, 1]} : vector<8x128xf32> to vector<8x32xf32>
    %713 = vector.extract_strided_slice %711 {offsets = [0, 32], sizes = [8, 32], strides = [1, 1]} : vector<8x128xf32> to vector<8x32xf32>
    %714 = vector.extract_strided_slice %711 {offsets = [0, 96], sizes = [8, 32], strides = [1, 1]} : vector<8x128xf32> to vector<8x32xf32>
    %715 = vector.extract_strided_slice %706 {offsets = [0, 64], sizes = [8, 32], strides = [1, 1]} : vector<8x128xf32> to vector<8x32xf32>
    %716 = math.tanh %715 : vector<8x32xf32>
    %717 = arith.mulf %713, %678 : vector<8x32xf32>
    %718 = arith.mulf %712, %716 : vector<8x32xf32>
    %719 = arith.addf %717, %718 : vector<8x32xf32>
    %720 = math.tanh %719 : vector<8x32xf32>
    %721 = arith.mulf %714, %720 : vector<8x32xf32>
    %cst_233 = arith.constant -5.000000e+01 : f32
    %cst_234 = arith.constant 5.000000e+01 : f32
    %722 = vector.broadcast %cst_233 : f32 to vector<8x32xf32>
    %723 = arith.maximumf %722, %700 : vector<8x32xf32>
    %724 = vector.broadcast %cst_234 : f32 to vector<8x32xf32>
    %725 = arith.minimumf %724, %723 : vector<8x32xf32>
    %cst_235 = arith.constant -5.000000e+01 : f32
    %cst_236 = arith.constant 5.000000e+01 : f32
    %726 = vector.broadcast %cst_235 : f32 to vector<8x32xf32>
    %727 = arith.maximumf %726, %721 : vector<8x32xf32>
    %728 = vector.broadcast %cst_236 : f32 to vector<8x32xf32>
    %729 = arith.minimumf %728, %727 : vector<8x32xf32>
    %cst_237 = arith.constant -5.000000e+01 : f32
    %cst_238 = arith.constant 5.000000e+01 : f32
    %730 = vector.broadcast %cst_237 : f32 to vector<8x32xf32>
    %731 = arith.maximumf %730, %698 : vector<8x32xf32>
    %732 = vector.broadcast %cst_238 : f32 to vector<8x32xf32>
    %733 = arith.minimumf %732, %731 : vector<8x32xf32>
    %cst_239 = arith.constant -5.000000e+01 : f32
    %cst_240 = arith.constant 5.000000e+01 : f32
    %734 = vector.broadcast %cst_239 : f32 to vector<8x32xf32>
    %735 = arith.maximumf %734, %719 : vector<8x32xf32>
    %736 = vector.broadcast %cst_240 : f32 to vector<8x32xf32>
    %737 = arith.minimumf %736, %735 : vector<8x32xf32>
    %738 = vector.extract_strided_slice %19 {offsets = [48, 0], sizes = [8, 128], strides = [1, 1]} : vector<72x128xf32> to vector<8x128xf32>
    %c16_241 = arith.constant 16 : index
    %c0_242 = arith.constant 0 : index
    %739 = vector.load %arg8[%c16_241, %c0_242] : memref<48x128xf32, #tpu.memory_space<vmem>>, vector<32x128xf32>
    %cst_243 = arith.constant dense<0.000000e+00> : vector<8x128xf32>
    %740 = tpu.matmul %725, %739, %cst_243 {dimension_numbers = #tpu.dot_dimension_numbers<[1], [0], [0], [1], [0, 0, 1, 1], [], []>} : vector<8x32xf32>, vector<32x128xf32>, vector<8x128xf32> -> vector<8x128xf32>
    %741 = arith.addf %738, %740 : vector<8x128xf32>
    %c0_244 = arith.constant 0 : index
    %c0_245 = arith.constant 0 : index
    %742 = vector.load %arg9[%c0_244, %c0_245] : memref<1x128xf32, #tpu.memory_space<vmem>>, vector<1x128xf32>
    %743 = vector.broadcast %742 : vector<1x128xf32> to vector<8x128xf32>
    %744 = arith.addf %741, %743 : vector<8x128xf32>
    %745 = arith.negf %744 : vector<8x128xf32>
    %746 = math.exp %745 : vector<8x128xf32>
    %cst_246 = arith.constant 1.000000e+00 : f32
    %747 = vector.broadcast %cst_246 : f32 to vector<8x128xf32>
    %748 = arith.addf %747, %746 : vector<8x128xf32>
    %749 = arith.divf %747, %748 : vector<8x128xf32>
    %750 = vector.extract_strided_slice %749 {offsets = [0, 0], sizes = [8, 32], strides = [1, 1]} : vector<8x128xf32> to vector<8x32xf32>
    %751 = vector.extract_strided_slice %749 {offsets = [0, 32], sizes = [8, 32], strides = [1, 1]} : vector<8x128xf32> to vector<8x32xf32>
    %752 = vector.extract_strided_slice %749 {offsets = [0, 96], sizes = [8, 32], strides = [1, 1]} : vector<8x128xf32> to vector<8x32xf32>
    %753 = vector.extract_strided_slice %744 {offsets = [0, 64], sizes = [8, 32], strides = [1, 1]} : vector<8x128xf32> to vector<8x32xf32>
    %754 = math.tanh %753 : vector<8x32xf32>
    %755 = arith.mulf %751, %733 : vector<8x32xf32>
    %756 = arith.mulf %750, %754 : vector<8x32xf32>
    %757 = arith.addf %755, %756 : vector<8x32xf32>
    %758 = math.tanh %757 : vector<8x32xf32>
    %759 = arith.mulf %752, %758 : vector<8x32xf32>
    %760 = tpu.concatenate %759, %729 in 1 : vector<8x32xf32>, vector<8x32xf32> -> vector<8x64xf32>
    %c0_247 = arith.constant 0 : index
    %c0_248 = arith.constant 0 : index
    %761 = vector.load %arg10[%c0_247, %c0_248] : memref<64x128xf32, #tpu.memory_space<vmem>>, vector<64x128xf32>
    %cst_249 = arith.constant dense<0.000000e+00> : vector<8x128xf32>
    %762 = tpu.matmul %760, %761, %cst_249 {dimension_numbers = #tpu.dot_dimension_numbers<[1], [0], [0], [1], [0, 0, 1, 1], [], []>} : vector<8x64xf32>, vector<64x128xf32>, vector<8x128xf32> -> vector<8x128xf32>
    %c0_250 = arith.constant 0 : index
    %c0_251 = arith.constant 0 : index
    %763 = vector.load %arg11[%c0_250, %c0_251] : memref<1x128xf32, #tpu.memory_space<vmem>>, vector<1x128xf32>
    %764 = vector.broadcast %763 : vector<1x128xf32> to vector<8x128xf32>
    %765 = arith.addf %762, %764 : vector<8x128xf32>
    %766 = arith.negf %765 : vector<8x128xf32>
    %767 = math.exp %766 : vector<8x128xf32>
    %cst_252 = arith.constant 1.000000e+00 : f32
    %768 = vector.broadcast %cst_252 : f32 to vector<8x128xf32>
    %769 = arith.addf %768, %767 : vector<8x128xf32>
    %770 = arith.divf %768, %769 : vector<8x128xf32>
    %771 = vector.extract_strided_slice %770 {offsets = [0, 0], sizes = [8, 32], strides = [1, 1]} : vector<8x128xf32> to vector<8x32xf32>
    %772 = vector.extract_strided_slice %770 {offsets = [0, 32], sizes = [8, 32], strides = [1, 1]} : vector<8x128xf32> to vector<8x32xf32>
    %773 = vector.extract_strided_slice %770 {offsets = [0, 96], sizes = [8, 32], strides = [1, 1]} : vector<8x128xf32> to vector<8x32xf32>
    %774 = vector.extract_strided_slice %765 {offsets = [0, 64], sizes = [8, 32], strides = [1, 1]} : vector<8x128xf32> to vector<8x32xf32>
    %775 = math.tanh %774 : vector<8x32xf32>
    %776 = arith.mulf %772, %737 : vector<8x32xf32>
    %777 = arith.mulf %771, %775 : vector<8x32xf32>
    %778 = arith.addf %776, %777 : vector<8x32xf32>
    %779 = math.tanh %778 : vector<8x32xf32>
    %780 = arith.mulf %773, %779 : vector<8x32xf32>
    %cst_253 = arith.constant -5.000000e+01 : f32
    %cst_254 = arith.constant 5.000000e+01 : f32
    %781 = vector.broadcast %cst_253 : f32 to vector<8x32xf32>
    %782 = arith.maximumf %781, %759 : vector<8x32xf32>
    %783 = vector.broadcast %cst_254 : f32 to vector<8x32xf32>
    %784 = arith.minimumf %783, %782 : vector<8x32xf32>
    %cst_255 = arith.constant -5.000000e+01 : f32
    %cst_256 = arith.constant 5.000000e+01 : f32
    %785 = vector.broadcast %cst_255 : f32 to vector<8x32xf32>
    %786 = arith.maximumf %785, %780 : vector<8x32xf32>
    %787 = vector.broadcast %cst_256 : f32 to vector<8x32xf32>
    %788 = arith.minimumf %787, %786 : vector<8x32xf32>
    %cst_257 = arith.constant -5.000000e+01 : f32
    %cst_258 = arith.constant 5.000000e+01 : f32
    %789 = vector.broadcast %cst_257 : f32 to vector<8x32xf32>
    %790 = arith.maximumf %789, %757 : vector<8x32xf32>
    %791 = vector.broadcast %cst_258 : f32 to vector<8x32xf32>
    %792 = arith.minimumf %791, %790 : vector<8x32xf32>
    %cst_259 = arith.constant -5.000000e+01 : f32
    %cst_260 = arith.constant 5.000000e+01 : f32
    %793 = vector.broadcast %cst_259 : f32 to vector<8x32xf32>
    %794 = arith.maximumf %793, %778 : vector<8x32xf32>
    %795 = vector.broadcast %cst_260 : f32 to vector<8x32xf32>
    %796 = arith.minimumf %795, %794 : vector<8x32xf32>
    %797 = vector.extract_strided_slice %19 {offsets = [56, 0], sizes = [8, 128], strides = [1, 1]} : vector<72x128xf32> to vector<8x128xf32>
    %c16_261 = arith.constant 16 : index
    %c0_262 = arith.constant 0 : index
    %798 = vector.load %arg8[%c16_261, %c0_262] : memref<48x128xf32, #tpu.memory_space<vmem>>, vector<32x128xf32>
    %cst_263 = arith.constant dense<0.000000e+00> : vector<8x128xf32>
    %799 = tpu.matmul %784, %798, %cst_263 {dimension_numbers = #tpu.dot_dimension_numbers<[1], [0], [0], [1], [0, 0, 1, 1], [], []>} : vector<8x32xf32>, vector<32x128xf32>, vector<8x128xf32> -> vector<8x128xf32>
    %800 = arith.addf %797, %799 : vector<8x128xf32>
    %c0_264 = arith.constant 0 : index
    %c0_265 = arith.constant 0 : index
    %801 = vector.load %arg9[%c0_264, %c0_265] : memref<1x128xf32, #tpu.memory_space<vmem>>, vector<1x128xf32>
    %802 = vector.broadcast %801 : vector<1x128xf32> to vector<8x128xf32>
    %803 = arith.addf %800, %802 : vector<8x128xf32>
    %804 = arith.negf %803 : vector<8x128xf32>
    %805 = math.exp %804 : vector<8x128xf32>
    %cst_266 = arith.constant 1.000000e+00 : f32
    %806 = vector.broadcast %cst_266 : f32 to vector<8x128xf32>
    %807 = arith.addf %806, %805 : vector<8x128xf32>
    %808 = arith.divf %806, %807 : vector<8x128xf32>
    %809 = vector.extract_strided_slice %808 {offsets = [0, 0], sizes = [8, 32], strides = [1, 1]} : vector<8x128xf32> to vector<8x32xf32>
    %810 = vector.extract_strided_slice %808 {offsets = [0, 32], sizes = [8, 32], strides = [1, 1]} : vector<8x128xf32> to vector<8x32xf32>
    %811 = vector.extract_strided_slice %808 {offsets = [0, 96], sizes = [8, 32], strides = [1, 1]} : vector<8x128xf32> to vector<8x32xf32>
    %812 = vector.extract_strided_slice %803 {offsets = [0, 64], sizes = [8, 32], strides = [1, 1]} : vector<8x128xf32> to vector<8x32xf32>
    %813 = math.tanh %812 : vector<8x32xf32>
    %814 = arith.mulf %810, %792 : vector<8x32xf32>
    %815 = arith.mulf %809, %813 : vector<8x32xf32>
    %816 = arith.addf %814, %815 : vector<8x32xf32>
    %817 = math.tanh %816 : vector<8x32xf32>
    %818 = arith.mulf %811, %817 : vector<8x32xf32>
    %819 = tpu.concatenate %818, %788 in 1 : vector<8x32xf32>, vector<8x32xf32> -> vector<8x64xf32>
    %c0_267 = arith.constant 0 : index
    %c0_268 = arith.constant 0 : index
    %820 = vector.load %arg10[%c0_267, %c0_268] : memref<64x128xf32, #tpu.memory_space<vmem>>, vector<64x128xf32>
    %cst_269 = arith.constant dense<0.000000e+00> : vector<8x128xf32>
    %821 = tpu.matmul %819, %820, %cst_269 {dimension_numbers = #tpu.dot_dimension_numbers<[1], [0], [0], [1], [0, 0, 1, 1], [], []>} : vector<8x64xf32>, vector<64x128xf32>, vector<8x128xf32> -> vector<8x128xf32>
    %c0_270 = arith.constant 0 : index
    %c0_271 = arith.constant 0 : index
    %822 = vector.load %arg11[%c0_270, %c0_271] : memref<1x128xf32, #tpu.memory_space<vmem>>, vector<1x128xf32>
    %823 = vector.broadcast %822 : vector<1x128xf32> to vector<8x128xf32>
    %824 = arith.addf %821, %823 : vector<8x128xf32>
    %825 = arith.negf %824 : vector<8x128xf32>
    %826 = math.exp %825 : vector<8x128xf32>
    %cst_272 = arith.constant 1.000000e+00 : f32
    %827 = vector.broadcast %cst_272 : f32 to vector<8x128xf32>
    %828 = arith.addf %827, %826 : vector<8x128xf32>
    %829 = arith.divf %827, %828 : vector<8x128xf32>
    %830 = vector.extract_strided_slice %829 {offsets = [0, 0], sizes = [8, 32], strides = [1, 1]} : vector<8x128xf32> to vector<8x32xf32>
    %831 = vector.extract_strided_slice %829 {offsets = [0, 32], sizes = [8, 32], strides = [1, 1]} : vector<8x128xf32> to vector<8x32xf32>
    %832 = vector.extract_strided_slice %829 {offsets = [0, 96], sizes = [8, 32], strides = [1, 1]} : vector<8x128xf32> to vector<8x32xf32>
    %833 = vector.extract_strided_slice %824 {offsets = [0, 64], sizes = [8, 32], strides = [1, 1]} : vector<8x128xf32> to vector<8x32xf32>
    %834 = math.tanh %833 : vector<8x32xf32>
    %835 = arith.mulf %831, %796 : vector<8x32xf32>
    %836 = arith.mulf %830, %834 : vector<8x32xf32>
    %837 = arith.addf %835, %836 : vector<8x32xf32>
    %838 = math.tanh %837 : vector<8x32xf32>
    %839 = arith.mulf %832, %838 : vector<8x32xf32>
    %cst_273 = arith.constant -5.000000e+01 : f32
    %cst_274 = arith.constant 5.000000e+01 : f32
    %840 = vector.broadcast %cst_273 : f32 to vector<8x32xf32>
    %841 = arith.maximumf %840, %818 : vector<8x32xf32>
    %842 = vector.broadcast %cst_274 : f32 to vector<8x32xf32>
    %843 = arith.minimumf %842, %841 : vector<8x32xf32>
    %cst_275 = arith.constant -5.000000e+01 : f32
    %cst_276 = arith.constant 5.000000e+01 : f32
    %844 = vector.broadcast %cst_275 : f32 to vector<8x32xf32>
    %845 = arith.maximumf %844, %839 : vector<8x32xf32>
    %846 = vector.broadcast %cst_276 : f32 to vector<8x32xf32>
    %847 = arith.minimumf %846, %845 : vector<8x32xf32>
    %cst_277 = arith.constant -5.000000e+01 : f32
    %cst_278 = arith.constant 5.000000e+01 : f32
    %848 = vector.broadcast %cst_277 : f32 to vector<8x32xf32>
    %849 = arith.maximumf %848, %816 : vector<8x32xf32>
    %850 = vector.broadcast %cst_278 : f32 to vector<8x32xf32>
    %851 = arith.minimumf %850, %849 : vector<8x32xf32>
    %cst_279 = arith.constant -5.000000e+01 : f32
    %cst_280 = arith.constant 5.000000e+01 : f32
    %852 = vector.broadcast %cst_279 : f32 to vector<8x32xf32>
    %853 = arith.maximumf %852, %837 : vector<8x32xf32>
    %854 = vector.broadcast %cst_280 : f32 to vector<8x32xf32>
    %855 = arith.minimumf %854, %853 : vector<8x32xf32>
    %856 = vector.extract_strided_slice %19 {offsets = [64, 0], sizes = [8, 128], strides = [1, 1]} : vector<72x128xf32> to vector<8x128xf32>
    %c16_281 = arith.constant 16 : index
    %c0_282 = arith.constant 0 : index
    %857 = vector.load %arg8[%c16_281, %c0_282] : memref<48x128xf32, #tpu.memory_space<vmem>>, vector<32x128xf32>
    %cst_283 = arith.constant dense<0.000000e+00> : vector<8x128xf32>
    %858 = tpu.matmul %843, %857, %cst_283 {dimension_numbers = #tpu.dot_dimension_numbers<[1], [0], [0], [1], [0, 0, 1, 1], [], []>} : vector<8x32xf32>, vector<32x128xf32>, vector<8x128xf32> -> vector<8x128xf32>
    %859 = arith.addf %856, %858 : vector<8x128xf32>
    %c0_284 = arith.constant 0 : index
    %c0_285 = arith.constant 0 : index
    %860 = vector.load %arg9[%c0_284, %c0_285] : memref<1x128xf32, #tpu.memory_space<vmem>>, vector<1x128xf32>
    %861 = vector.broadcast %860 : vector<1x128xf32> to vector<8x128xf32>
    %862 = arith.addf %859, %861 : vector<8x128xf32>
    %863 = arith.negf %862 : vector<8x128xf32>
    %864 = math.exp %863 : vector<8x128xf32>
    %cst_286 = arith.constant 1.000000e+00 : f32
    %865 = vector.broadcast %cst_286 : f32 to vector<8x128xf32>
    %866 = arith.addf %865, %864 : vector<8x128xf32>
    %867 = arith.divf %865, %866 : vector<8x128xf32>
    %868 = vector.extract_strided_slice %867 {offsets = [0, 0], sizes = [8, 32], strides = [1, 1]} : vector<8x128xf32> to vector<8x32xf32>
    %869 = vector.extract_strided_slice %867 {offsets = [0, 32], sizes = [8, 32], strides = [1, 1]} : vector<8x128xf32> to vector<8x32xf32>
    %870 = vector.extract_strided_slice %867 {offsets = [0, 96], sizes = [8, 32], strides = [1, 1]} : vector<8x128xf32> to vector<8x32xf32>
    %871 = vector.extract_strided_slice %862 {offsets = [0, 64], sizes = [8, 32], strides = [1, 1]} : vector<8x128xf32> to vector<8x32xf32>
    %872 = math.tanh %871 : vector<8x32xf32>
    %873 = arith.mulf %869, %851 : vector<8x32xf32>
    %874 = arith.mulf %868, %872 : vector<8x32xf32>
    %875 = arith.addf %873, %874 : vector<8x32xf32>
    %876 = math.tanh %875 : vector<8x32xf32>
    %877 = arith.mulf %870, %876 : vector<8x32xf32>
    %878 = tpu.concatenate %877, %847 in 1 : vector<8x32xf32>, vector<8x32xf32> -> vector<8x64xf32>
    %c0_287 = arith.constant 0 : index
    %c0_288 = arith.constant 0 : index
    %879 = vector.load %arg10[%c0_287, %c0_288] : memref<64x128xf32, #tpu.memory_space<vmem>>, vector<64x128xf32>
    %cst_289 = arith.constant dense<0.000000e+00> : vector<8x128xf32>
    %880 = tpu.matmul %878, %879, %cst_289 {dimension_numbers = #tpu.dot_dimension_numbers<[1], [0], [0], [1], [0, 0, 1, 1], [], []>} : vector<8x64xf32>, vector<64x128xf32>, vector<8x128xf32> -> vector<8x128xf32>
    %c0_290 = arith.constant 0 : index
    %c0_291 = arith.constant 0 : index
    %881 = vector.load %arg11[%c0_290, %c0_291] : memref<1x128xf32, #tpu.memory_space<vmem>>, vector<1x128xf32>
    %882 = vector.broadcast %881 : vector<1x128xf32> to vector<8x128xf32>
    %883 = arith.addf %880, %882 : vector<8x128xf32>
    %884 = arith.negf %883 : vector<8x128xf32>
    %885 = math.exp %884 : vector<8x128xf32>
    %cst_292 = arith.constant 1.000000e+00 : f32
    %886 = vector.broadcast %cst_292 : f32 to vector<8x128xf32>
    %887 = arith.addf %886, %885 : vector<8x128xf32>
    %888 = arith.divf %886, %887 : vector<8x128xf32>
    %889 = vector.extract_strided_slice %888 {offsets = [0, 0], sizes = [8, 32], strides = [1, 1]} : vector<8x128xf32> to vector<8x32xf32>
    %890 = vector.extract_strided_slice %888 {offsets = [0, 32], sizes = [8, 32], strides = [1, 1]} : vector<8x128xf32> to vector<8x32xf32>
    %891 = vector.extract_strided_slice %888 {offsets = [0, 96], sizes = [8, 32], strides = [1, 1]} : vector<8x128xf32> to vector<8x32xf32>
    %892 = vector.extract_strided_slice %883 {offsets = [0, 64], sizes = [8, 32], strides = [1, 1]} : vector<8x128xf32> to vector<8x32xf32>
    %893 = math.tanh %892 : vector<8x32xf32>
    %894 = arith.mulf %890, %855 : vector<8x32xf32>
    %895 = arith.mulf %889, %893 : vector<8x32xf32>
    %896 = arith.addf %894, %895 : vector<8x32xf32>
    %897 = math.tanh %896 : vector<8x32xf32>
    %898 = arith.mulf %891, %897 : vector<8x32xf32>
    %cst_293 = arith.constant -5.000000e+01 : f32
    %cst_294 = arith.constant 5.000000e+01 : f32
    %899 = vector.broadcast %cst_293 : f32 to vector<8x32xf32>
    %900 = arith.maximumf %899, %877 : vector<8x32xf32>
    %901 = vector.broadcast %cst_294 : f32 to vector<8x32xf32>
    %902 = arith.minimumf %901, %900 : vector<8x32xf32>
    %cst_295 = arith.constant -5.000000e+01 : f32
    %cst_296 = arith.constant 5.000000e+01 : f32
    %903 = vector.broadcast %cst_295 : f32 to vector<8x32xf32>
    %904 = arith.maximumf %903, %898 : vector<8x32xf32>
    %905 = vector.broadcast %cst_296 : f32 to vector<8x32xf32>
    %906 = arith.minimumf %905, %904 : vector<8x32xf32>
    %907 = tpu.concatenate %426, %485, %544, %603, %662, %721, %780, %839, %898 in 0 : vector<8x32xf32>, vector<8x32xf32>, vector<8x32xf32>, vector<8x32xf32>, vector<8x32xf32>, vector<8x32xf32>, vector<8x32xf32>, vector<8x32xf32>, vector<8x32xf32> -> vector<72x32xf32>
    %c0_297 = arith.constant 0 : index
    %c0_298 = arith.constant 0 : index
    %908 = vector.load %arg12[%c0_297, %c0_298] : memref<32x16xf32, #tpu.memory_space<vmem>>, vector<32x16xf32>
    %cst_299 = arith.constant dense<0.000000e+00> : vector<72x16xf32>
    %909 = tpu.matmul %907, %908, %cst_299 {dimension_numbers = #tpu.dot_dimension_numbers<[1], [0], [0], [1], [0, 0, 1, 1], [], []>} : vector<72x32xf32>, vector<32x16xf32>, vector<72x16xf32> -> vector<72x16xf32>
    %c0_300 = arith.constant 0 : index
    %c0_301 = arith.constant 0 : index
    %910 = vector.load %arg13[%c0_300, %c0_301] : memref<1x16xf32, #tpu.memory_space<vmem>>, vector<1x16xf32>
    %911 = vector.broadcast %910 : vector<1x16xf32> to vector<72x16xf32>
    %912 = arith.addf %909, %911 : vector<72x16xf32>
    %c0_302 = arith.constant 0 : index
    %c0_303 = arith.constant 0 : index
    %913 = vector.load %arg14[%c0_302, %c0_303] : memref<72x16xf32, #tpu.memory_space<vmem>>, vector<72x16xf32>
    tpu.vector_store %arg14[%c0_302, %c0_303], %912 {strides = array<i32>} : memref<72x16xf32, #tpu.memory_space<vmem>>, vector<72x16xf32>,
    %c0_304 = arith.constant 0 : index
    %c0_305 = arith.constant 0 : index
    %c0_306 = arith.constant 0 : index
    %914 = vector.load %arg15[%c0_304, %c0_305, %c0_306] : memref<2x8x32xf32, #tpu.memory_space<vmem>>, vector<1x8x32xf32>
    %915 = vector.shape_cast %914 : vector<1x8x32xf32> to vector<8x32xf32>
    %916 = vector.shape_cast %902 : vector<8x32xf32> to vector<1x8x32xf32>
    tpu.vector_store %arg15[%c0_304, %c0_305, %c0_306], %916 {strides = array<i32>} : memref<2x8x32xf32, #tpu.memory_space<vmem>>, vector<1x8x32xf32>,
    %c1 = arith.constant 1 : index
    %c0_307 = arith.constant 0 : index
    %c0_308 = arith.constant 0 : index
    %917 = vector.load %arg15[%c1, %c0_307, %c0_308] : memref<2x8x32xf32, #tpu.memory_space<vmem>>, vector<1x8x32xf32>
    %918 = vector.shape_cast %917 : vector<1x8x32xf32> to vector<8x32xf32>
    %919 = vector.shape_cast %906 : vector<8x32xf32> to vector<1x8x32xf32>
    tpu.vector_store %arg15[%c1, %c0_307, %c0_308], %919 {strides = array<i32>} : memref<2x8x32xf32, #tpu.memory_space<vmem>>, vector<1x8x32xf32>,
    return
  }
}

</mosaic_0001>

<llo_original>
// kernel: seq2seq_forward.1
$region0: #{seq2seq_forward.1}
  #allocation0 [shape = 'u32[]', space=smem, size = 0x4, offset = 0x4, fixed_abs, tag = 'smem constant byte address 0x4 - core index']
  #allocation1 [shape = 'u32[144,128]{1,0:T(1,128)}', space=vmem, size = 0x12000, scoped, tag = 'internal scratch']
  %s0 = inlined_call_operand.vmem [shape: s32[64,1], index: 0, kind: input, shape index: {}]
  %s1 = inlined_call_operand.vmem [shape: s32[72,1], index: 1, kind: input, shape index: {}]
  %s2 = inlined_call_operand.vmem [shape: f32[16,16], index: 2, kind: input, shape index: {}]
  %s3 = inlined_call_operand.vmem [shape: f32[16,16], index: 3, kind: input, shape index: {}]
  %s4 = inlined_call_operand.vmem [shape: f32[48,128], index: 4, kind: input, shape index: {}]
  %s5 = inlined_call_operand.vmem [shape: f32[1,128], index: 5, kind: input, shape index: {}]
  %s6 = inlined_call_operand.vmem [shape: f32[64,128], index: 6, kind: input, shape index: {}]
  %s7 = inlined_call_operand.vmem [shape: f32[1,128], index: 7, kind: input, shape index: {}]
  %s8 = inlined_call_operand.vmem [shape: f32[48,128], index: 8, kind: input, shape index: {}]
  %s9 = inlined_call_operand.vmem [shape: f32[1,128], index: 9, kind: input, shape index: {}]
  %s10 = inlined_call_operand.vmem [shape: f32[64,128], index: 10, kind: input, shape index: {}]
  %s11 = inlined_call_operand.vmem [shape: f32[1,128], index: 11, kind: input, shape index: {}]
  %s12 = inlined_call_operand.vmem [shape: f32[32,16], index: 12, kind: input, shape index: {}]
  %s13 = inlined_call_operand.vmem [shape: f32[1,16], index: 13, kind: input, shape index: {}]
  %s14 = inlined_call_operand.vmem [shape: f32[72,16], index: 14, kind: output, shape index: {0}]
  %s15 = inlined_call_operand.vmem [shape: f32[2,8,32], index: 15, kind: output, shape index: {1}]
  %16 = xla_tuple %s14, %s15
  %s17 = sld [smem:[#allocation0]]
  $region74: #{seq2seq_forward.1} parent=0
    _
  %s19 = ssub.s32 1, %s17
  %s20 = scalar_select 0, %s19, %s17
  // Predicated region
  $region2: #{seq2seq_forward.1} parent=0 // pred_check
    _
  $region3: #{seq2seq_forward.1} parent=0 // pred_check_branch
    %22 = sbr.rel (0) target = $region5
  $region4: #{seq2seq_forward.1} parent=0 // pred_region
    _
  $region5: #{seq2seq_forward.1} parent=0 // pred_fallthru
    _
  // Predicated region
  $region6: #{seq2seq_forward.1} parent=0 // pred_check
    _
  $region7: #{seq2seq_forward.1} parent=0 // pred_check_branch
    %24 = sbr.rel (0) target = $region9
  $region8: #{seq2seq_forward.1} parent=0 // pred_region
    _
  $region9: #{seq2seq_forward.1} parent=0 // pred_fallthru
    _
  // Predicated region
  $region10: #{seq2seq_forward.1} parent=0 // pred_check
    _
  $region11: #{seq2seq_forward.1} parent=0 // pred_check_branch
    %26 = sbr.rel (0) target = $region13
  $region12: #{seq2seq_forward.1} parent=0 // pred_region
    _
  $region13: #{seq2seq_forward.1} parent=0 // pred_fallthru
    _
  // Predicated region
  $region14: #{seq2seq_forward.1} parent=0 // pred_check
    _
  $region15: #{seq2seq_forward.1} parent=0 // pred_check_branch
    %28 = sbr.rel (0) target = $region17
  $region16: #{seq2seq_forward.1} parent=0 // pred_region
    _
  $region17: #{seq2seq_forward.1} parent=0 // pred_fallthru
    _
  // Predicated region
  $region18: #{seq2seq_forward.1} parent=0 // pred_check
    _
  $region19: #{seq2seq_forward.1} parent=0 // pred_check_branch
    %30 = sbr.rel (0) target = $region21
  $region20: #{seq2seq_forward.1} parent=0 // pred_region
    _
  $region21: #{seq2seq_forward.1} parent=0 // pred_fallthru
    _
  // Predicated region
  $region22: #{seq2seq_forward.1} parent=0 // pred_check
    _
  $region23: #{seq2seq_forward.1} parent=0 // pred_check_branch
    %32 = sbr.rel (0) target = $region25
  $region24: #{seq2seq_forward.1} parent=0 // pred_region
    _
  $region25: #{seq2seq_forward.1} parent=0 // pred_fallthru
    _
  // Predicated region
  $region26: #{seq2seq_forward.1} parent=0 // pred_check
    _
  $region27: #{seq2seq_forward.1} parent=0 // pred_check_branch
    %34 = sbr.rel (0) target = $region29
  $region28: #{seq2seq_forward.1} parent=0 // pred_region
    _
  $region29: #{seq2seq_forward.1} parent=0 // pred_fallthru
    _
  // Predicated region
  $region30: #{seq2seq_forward.1} parent=0 // pred_check
    _
  $region31: #{seq2seq_forward.1} parent=0 // pred_check_branch
    %36 = sbr.rel (0) target = $region33
  $region32: #{seq2seq_forward.1} parent=0 // pred_region
    _
  $region33: #{seq2seq_forward.1} parent=0 // pred_fallthru
    _
  // Predicated region
  $region34: #{seq2seq_forward.1} parent=0 // pred_check
    _
  $region35: #{seq2seq_forward.1} parent=0 // pred_check_branch
    %38 = sbr.rel (0) target = $region37
  $region36: #{seq2seq_forward.1} parent=0 // pred_region
    _
  $region37: #{seq2seq_forward.1} parent=0 // pred_fallthru
    _
  // Predicated region
  $region38: #{seq2seq_forward.1} parent=0 // pred_check
    _
  $region39: #{seq2seq_forward.1} parent=0 // pred_check_branch
    %40 = sbr.rel (0) target = $region41
  $region40: #{seq2seq_forward.1} parent=0 // pred_region
    _
  $region41: #{seq2seq_forward.1} parent=0 // pred_fallthru
    _
  // Predicated region
  $region42: #{seq2seq_forward.1} parent=0 // pred_check
    _
  $region43: #{seq2seq_forward.1} parent=0 // pred_check_branch
    %42 = sbr.rel (0) target = $region45
  $region44: #{seq2seq_forward.1} parent=0 // pred_region
    _
  $region45: #{seq2seq_forward.1} parent=0 // pred_fallthru
    _
  // Predicated region
  $region46: #{seq2seq_forward.1} parent=0 // pred_check
    _
  $region47: #{seq2seq_forward.1} parent=0 // pred_check_branch
    %44 = sbr.rel (0) target = $region49
  $region48: #{seq2seq_forward.1} parent=0 // pred_region
    _
  $region49: #{seq2seq_forward.1} parent=0 // pred_fallthru
    _
  // Predicated region
  $region50: #{seq2seq_forward.1} parent=0 // pred_check
    _
  $region51: #{seq2seq_forward.1} parent=0 // pred_check_branch
    %46 = sbr.rel (0) target = $region53
  $region52: #{seq2seq_forward.1} parent=0 // pred_region
    _
  $region53: #{seq2seq_forward.1} parent=0 // pred_fallthru
    _
  // Predicated region
  $region54: #{seq2seq_forward.1} parent=0 // pred_check
    _
  $region55: #{seq2seq_forward.1} parent=0 // pred_check_branch
    %48 = sbr.rel (0) target = $region57
  $region56: #{seq2seq_forward.1} parent=0 // pred_region
    _
  $region57: #{seq2seq_forward.1} parent=0 // pred_fallthru
    _
  %v49 = vld [vmem:[%s2] sm:$0xff]
  %v50 = vld [vmem:[%s2 + $0x8] sm:$0xff]
  %v51 = vld [vmem:[%s4] sm:$0xff]
  %v52 = vld [vmem:[%s4 + $0x8] sm:$0xff]
  %vm53 = vcmask 130048
  %v55 = vsel %vm53, %v49, 0
  %v58 = vsel %vm53, %v50, 0
  %60 = vmatprep.subr.mxu0 0.0
  %61 = vmatpush1.msra.mxu0 %v51
  %62 = vmatprep.subr.mxu0 0.0
  %63 = vmatpush1.msra.mxu0 %v52
  %64 = vmatprep.subr.mxu0 0.0
  %65 = vmatpush1.msra.mxu0 0.0
  %66 = vmatprep.subr.mxu0 0.0
  %67 = vmatpush1.msra.mxu0 0.0
  %68 = vmatprep.subr.mxu0 0.0
  %69 = vmatpush1.msra.mxu0 0.0
  %70 = vmatprep.subr.mxu0 0.0
  %71 = vmatpush1.msra.mxu0 0.0
  %72 = vmatprep.subr.mxu0 0.0
  %73 = vmatpush1.msra.mxu0 0.0
  %74 = vmatprep.subr.mxu0 0.0
  %75 = vmatpush1.msra.mxu0 0.0
  %76 = vmatprep.subr.mxu0 0.0
  %77 = vmatpush1.msra.mxu0 0.0
  %78 = vmatprep.subr.mxu0 0.0
  %79 = vmatpush1.msra.mxu0 0.0
  %80 = vmatprep.subr.mxu0 0.0
  %81 = vmatpush1.msra.mxu0 0.0
  %82 = vmatprep.subr.mxu0 0.0
  %83 = vmatpush1.msra.mxu0 0.0
  %84 = vmatprep.subr.mxu0 0.0
  %85 = vmatpush1.msra.mxu0 0.0
  %86 = vmatprep.subr.mxu0 0.0
  %87 = vmatpush1.msra.mxu0 0.0
  %88 = vmatprep.subr.mxu0 0.0
  %89 = vmatpush1.msra.mxu0 0.0
  %90 = vmatprep.subr.mxu0 0.0
  %91 = vmatpush1.msra.mxu0 0.0
  %92 = vmatprep.subr.mxu0 0.0
  %93 = vmatpush1.msra.mxu0 0.0
  %94 = vmatprep.subr.mxu0 0.0
  %95 = vmatpush1.msra.mxu0 0.0
  %96 = vmatprep.subr.mxu0 0.0
  %97 = vmatpush1.msra.mxu0 0.0
  %98 = vmatprep.subr.mxu0 0.0
  %99 = vmatpush1.msra.mxu0 0.0
  %100 = vmatprep.subr.mxu0 0.0
  %101 = vmatpush1.msra.mxu0 0.0
  %102 = vmatprep.subr.mxu0 0.0
  %103 = vmatpush1.msra.mxu0 0.0
  %104 = vmatprep.subr.mxu0 0.0
  %105 = vmatpush1.msra.mxu0 0.0
  %106 = vmatprep.subr.mxu0 0.0
  %107 = vmatpush1.msra.mxu0 0.0
  %108 = vmatprep.subr.mxu0 0.0
  %109 = vmatpush1.msra.mxu0 0.0
  %110 = vmatprep.subr.mxu0 0.0
  %111 = vmatpush1.msra.mxu0 0.0
  %112 = vmatprep.subr.mxu0 0.0
  %113 = vmatpush1.msra.mxu0 0.0
  %114 = vmatprep.subr.mxu0 0.0
  %115 = vmatpush1.msra.mxu0 0.0
  %116 = vmatprep.subr.mxu0 0.0
  %117 = vmatpush1.msra.mxu0 0.0
  %118 = vmatprep.subr.mxu0 0.0
  %119 = vmatpush1.msra.mxu0 0.0
  %120 = vmatprep.subr.mxu0 0.0
  %121 = vmatpush1.msra.mxu0 0.0
  %122 = vmatprep.subr.mxu0 0.0
  %123 = vmatpush1.msra.mxu0 0.0
  %124 = vmatprep.mubr.f32.mxu0 0.0
  %125 = vmatmul.mubr.f32.gmra.mrb[0].mxu0 %v55
  %v126 = vpop.f32.mrb[0].mxu0
  %v127 = vadd.f32 0.0, %v126
  %v128 = vpop.f32.mrb[0].mxu0
  %129 = vmatprep.mubr.f32.mxu0 0.0
  %130 = vmatmul.mubr.f32.gmra.mrb[0].mxu0 %v58
  %v131 = vpop.f32.mrb[0].mxu0
  %v132 = vadd.f32 0.0, %v131
  %v133 = vpop.f32.mrb[0].mxu0
  %134 = vdwg.mxu0
  %v135 = vld [vmem:[%s3] sm:$0xff]
  %v136 = vld [vmem:[%s3 + $0x8] sm:$0xff]
  %v137 = vld [vmem:[%s8] sm:$0xff]
  %v138 = vld [vmem:[%s8 + $0x8] sm:$0xff]
  %v140 = vsel %vm53, %v135, 0
  %v143 = vsel %vm53, %v136, 0
  %145 = vmatprep.subr.mxu0 0.0
  %146 = vmatpush1.msra.mxu0 %v137
  %147 = vmatprep.subr.mxu0 0.0
  %148 = vmatpush1.msra.mxu0 %v138
  %149 = vmatprep.subr.mxu0 0.0
  %150 = vmatpush1.msra.mxu0 0.0
  %151 = vmatprep.subr.mxu0 0.0
  %152 = vmatpush1.msra.mxu0 0.0
  %153 = vmatprep.subr.mxu0 0.0
  %154 = vmatpush1.msra.mxu0 0.0
  %155 = vmatprep.subr.mxu0 0.0
  %156 = vmatpush1.msra.mxu0 0.0
  %157 = vmatprep.subr.mxu0 0.0
  %158 = vmatpush1.msra.mxu0 0.0
  %159 = vmatprep.subr.mxu0 0.0
  %160 = vmatpush1.msra.mxu0 0.0
  %161 = vmatprep.subr.mxu0 0.0
  %162 = vmatpush1.msra.mxu0 0.0
  %163 = vmatprep.subr.mxu0 0.0
  %164 = vmatpush1.msra.mxu0 0.0
  %165 = vmatprep.subr.mxu0 0.0
  %166 = vmatpush1.msra.mxu0 0.0
  %167 = vmatprep.subr.mxu0 0.0
  %168 = vmatpush1.msra.mxu0 0.0
  %169 = vmatprep.subr.mxu0 0.0
  %170 = vmatpush1.msra.mxu0 0.0
  %171 = vmatprep.subr.mxu0 0.0
  %172 = vmatpush1.msra.mxu0 0.0
  %173 = vmatprep.subr.mxu0 0.0
  %174 = vmatpush1.msra.mxu0 0.0
  %175 = vmatprep.subr.mxu0 0.0
  %176 = vmatpush1.msra.mxu0 0.0
  %177 = vmatprep.subr.mxu0 0.0
  %178 = vmatpush1.msra.mxu0 0.0
  %179 = vmatprep.subr.mxu0 0.0
  %180 = vmatpush1.msra.mxu0 0.0
  %181 = vmatprep.subr.mxu0 0.0
  %182 = vmatpush1.msra.mxu0 0.0
  %183 = vmatprep.subr.mxu0 0.0
  %184 = vmatpush1.msra.mxu0 0.0
  %185 = vmatprep.subr.mxu0 0.0
  %186 = vmatpush1.msra.mxu0 0.0
  %187 = vmatprep.subr.mxu0 0.0
  %188 = vmatpush1.msra.mxu0 0.0
  %189 = vmatprep.subr.mxu0 0.0
  %190 = vmatpush1.msra.mxu0 0.0
  %191 = vmatprep.subr.mxu0 0.0
  %192 = vmatpush1.msra.mxu0 0.0
  %193 = vmatprep.subr.mxu0 0.0
  %194 = vmatpush1.msra.mxu0 0.0
  %195 = vmatprep.subr.mxu0 0.0
  %196 = vmatpush1.msra.mxu0 0.0
  %197 = vmatprep.subr.mxu0 0.0
  %198 = vmatpush1.msra.mxu0 0.0
  %199 = vmatprep.subr.mxu0 0.0
  %200 = vmatpush1.msra.mxu0 0.0
  %201 = vmatprep.subr.mxu0 0.0
  %202 = vmatpush1.msra.mxu0 0.0
  %203 = vmatprep.subr.mxu0 0.0
  %204 = vmatpush1.msra.mxu0 0.0
  %205 = vmatprep.subr.mxu0 0.0
  %206 = vmatpush1.msra.mxu0 0.0
  %207 = vmatprep.subr.mxu0 0.0
  %208 = vmatpush1.msra.mxu0 0.0
  %209 = vmatprep.mubr.f32.mxu0 0.0
  %210 = vmatmul.mubr.f32.gmra.mrb[0].mxu0 %v140
  %v211 = vpop.f32.mrb[0].mxu0
  %v212 = vadd.f32 0.0, %v211
  %v213 = vpop.f32.mrb[0].mxu0
  %214 = vmatprep.mubr.f32.mxu0 0.0
  %215 = vmatmul.mubr.f32.gmra.mrb[0].mxu0 %v143
  %v216 = vpop.f32.mrb[0].mxu0
  %v217 = vadd.f32 0.0, %v216
  %v218 = vpop.f32.mrb[0].mxu0
  %219 = vdwg.mxu0
  %v220 = vld [vmem:[%s0] sm:$0xff]
  %v221 = vld [vmem:[%s0 + $0x8] sm:$0xff]
  %v222 = vld [vmem:[%s0 + $0x10] sm:$0xff]
  %v223 = vld [vmem:[%s0 + $0x18] sm:$0xff]
  %v224 = vld [vmem:[%s0 + $0x20] sm:$0xff]
  %v225 = vld [vmem:[%s0 + $0x28] sm:$0xff]
  %v226 = vld [vmem:[%s0 + $0x30] sm:$0xff]
  %v227 = vld [vmem:[%s0 + $0x38] sm:$0xff]
  %v228 = vlaneseq
  %v229 = vand.u32 %v228, 127
  %230 = vset.pattern.permute.xlu0 0
  %231 = vperm.xlu0 %230, %v220
  %v232 = vpop.permute.xlu0 %231
  %233 = vset.pattern.permute.xlu0 0
  %234 = vperm.xlu0 %233, %v221
  %v235 = vpop.permute.xlu0 %234
  %236 = vset.pattern.permute.xlu0 0
  %237 = vperm.xlu0 %236, %v222
  %v238 = vpop.permute.xlu0 %237
  %239 = vset.pattern.permute.xlu0 0
  %240 = vperm.xlu0 %239, %v223
  %v241 = vpop.permute.xlu0 %240
  %242 = vset.pattern.permute.xlu0 0
  %243 = vperm.xlu0 %242, %v224
  %v244 = vpop.permute.xlu0 %243
  %245 = vset.pattern.permute.xlu0 0
  %246 = vperm.xlu0 %245, %v225
  %v247 = vpop.permute.xlu0 %246
  %248 = vset.pattern.permute.xlu0 0
  %249 = vperm.xlu0 %248, %v226
  %v250 = vpop.permute.xlu0 %249
  %251 = vset.pattern.permute.xlu0 0
  %252 = vperm.xlu0 %251, %v227
  %v253 = vpop.permute.xlu0 %252
  %vm254 = vcmp.eq.s32.totalorder %v232, %v229
  %vm255 = vcmp.eq.s32.totalorder %v235, %v229
  %vm256 = vcmp.eq.s32.totalorder %v238, %v229
  %vm257 = vcmp.eq.s32.totalorder %v241, %v229
  %vm258 = vcmp.eq.s32.totalorder %v244, %v229
  %vm259 = vcmp.eq.s32.totalorder %v247, %v229
  %vm260 = vcmp.eq.s32.totalorder %v250, %v229
  %vm261 = vcmp.eq.s32.totalorder %v253, %v229
  %v262 = vsel %vm254, 1, 0
  %v263 = vsel %vm255, 1, 0
  %v264 = vsel %vm256, 1, 0
  %v265 = vsel %vm257, 1, 0
  %v266 = vsel %vm258, 1, 0
  %v267 = vsel %vm259, 1, 0
  %v268 = vsel %vm260, 1, 0
  %v269 = vsel %vm261, 1, 0
  %v270 = vcvt.s32.f32 %v262
  %v271 = vcvt.s32.f32 %v263
  %v272 = vcvt.s32.f32 %v264
  %v273 = vcvt.s32.f32 %v265
  %v274 = vcvt.s32.f32 %v266
  %v275 = vcvt.s32.f32 %v267
  %v276 = vcvt.s32.f32 %v268
  %v277 = vcvt.s32.f32 %v269
  %v279 = vsel %vm53, %v270, 0
  %v282 = vsel %vm53, %v271, 0
  %v285 = vsel %vm53, %v272, 0
  %v288 = vsel %vm53, %v273, 0
  %v291 = vsel %vm53, %v274, 0
  %v294 = vsel %vm53, %v275, 0
  %v297 = vsel %vm53, %v276, 0
  %v300 = vsel %vm53, %v277, 0
  %302 = vmatprep.subr.mxu0 0.0
  %303 = vmatpush1.msra.mxu0 %v127
  %304 = vmatprep.subr.mxu0 0.0
  %305 = vmatpush1.msra.mxu0 %v132
  %306 = vmatprep.subr.mxu0 0.0
  %307 = vmatpush1.msra.mxu0 0.0
  %308 = vmatprep.subr.mxu0 0.0
  %309 = vmatpush1.msra.mxu0 0.0
  %310 = vmatprep.subr.mxu0 0.0
  %311 = vmatpush1.msra.mxu0 0.0
  %312 = vmatprep.subr.mxu0 0.0
  %313 = vmatpush1.msra.mxu0 0.0
  %314 = vmatprep.subr.mxu0 0.0
  %315 = vmatpush1.msra.mxu0 0.0
  %316 = vmatprep.subr.mxu0 0.0
  %317 = vmatpush1.msra.mxu0 0.0
  %318 = vmatprep.subr.mxu0 0.0
  %319 = vmatpush1.msra.mxu0 0.0
  %320 = vmatprep.subr.mxu0 0.0
  %321 = vmatpush1.msra.mxu0 0.0
  %322 = vmatprep.subr.mxu0 0.0
  %323 = vmatpush1.msra.mxu0 0.0
  %324 = vmatprep.subr.mxu0 0.0
  %325 = vmatpush1.msra.mxu0 0.0
  %326 = vmatprep.subr.mxu0 0.0
  %327 = vmatpush1.msra.mxu0 0.0
  %328 = vmatprep.subr.mxu0 0.0
  %329 = vmatpush1.msra.mxu0 0.0
  %330 = vmatprep.subr.mxu0 0.0
  %331 = vmatpush1.msra.mxu0 0.0
  %332 = vmatprep.subr.mxu0 0.0
  %333 = vmatpush1.msra.mxu0 0.0
  %334 = vmatprep.subr.mxu0 0.0
  %335 = vmatpush1.msra.mxu0 0.0
  %336 = vmatprep.subr.mxu0 0.0
  %337 = vmatpush1.msra.mxu0 0.0
  %338 = vmatprep.subr.mxu0 0.0
  %339 = vmatpush1.msra.mxu0 0.0
  %340 = vmatprep.subr.mxu0 0.0
  %341 = vmatpush1.msra.mxu0 0.0
  %342 = vmatprep.subr.mxu0 0.0
  %343 = vmatpush1.msra.mxu0 0.0
  %344 = vmatprep.subr.mxu0 0.0
  %345 = vmatpush1.msra.mxu0 0.0
  %346 = vmatprep.subr.mxu0 0.0
  %347 = vmatpush1.msra.mxu0 0.0
  %348 = vmatprep.subr.mxu0 0.0
  %349 = vmatpush1.msra.mxu0 0.0
  %350 = vmatprep.subr.mxu0 0.0
  %351 = vmatpush1.msra.mxu0 0.0
  %352 = vmatprep.subr.mxu0 0.0
  %353 = vmatpush1.msra.mxu0 0.0
  %354 = vmatprep.subr.mxu0 0.0
  %355 = vmatpush1.msra.mxu0 0.0
  %356 = vmatprep.subr.mxu0 0.0
  %357 = vmatpush1.msra.mxu0 0.0
  %358 = vmatprep.subr.mxu0 0.0
  %359 = vmatpush1.msra.mxu0 0.0
  %360 = vmatprep.subr.mxu0 0.0
  %361 = vmatpush1.msra.mxu0 0.0
  %362 = vmatprep.subr.mxu0 0.0
  %363 = vmatpush1.msra.mxu0 0.0
  %364 = vmatprep.subr.mxu0 0.0
  %365 = vmatpush1.msra.mxu0 0.0
  %366 = vmatprep.mubr.f32.mxu0 0.0
  %367 = vmatmul.mubr.f32.gmra.mrb[0].mxu0 %v279
  %v368 = vpop.f32.mrb[0].mxu0
  %v369 = vadd.f32 0.0, %v368
  %v370 = vpop.f32.mrb[0].mxu0
  %371 = vmatprep.mubr.f32.mxu0 0.0
  %372 = vmatmul.mubr.f32.gmra.mrb[0].mxu0 %v282
  %v373 = vpop.f32.mrb[0].mxu0
  %v374 = vadd.f32 0.0, %v373
  %v375 = vpop.f32.mrb[0].mxu0
  %376 = vmatprep.mubr.f32.mxu0 0.0
  %377 = vmatmul.mubr.f32.gmra.mrb[0].mxu0 %v285
  %v378 = vpop.f32.mrb[0].mxu0
  %v379 = vadd.f32 0.0, %v378
  %v380 = vpop.f32.mrb[0].mxu0
  %381 = vmatprep.mubr.f32.mxu0 0.0
  %382 = vmatmul.mubr.f32.gmra.mrb[0].mxu0 %v288
  %v383 = vpop.f32.mrb[0].mxu0
  %v384 = vadd.f32 0.0, %v383
  %v385 = vpop.f32.mrb[0].mxu0
  %386 = vmatprep.mubr.f32.mxu0 0.0
  %387 = vmatmul.mubr.f32.gmra.mrb[0].mxu0 %v291
  %v388 = vpop.f32.mrb[0].mxu0
  %v389 = vadd.f32 0.0, %v388
  %v390 = vpop.f32.mrb[0].mxu0
  %391 = vmatprep.mubr.f32.mxu0 0.0
  %392 = vmatmul.mubr.f32.gmra.mrb[0].mxu0 %v294
  %v393 = vpop.f32.mrb[0].mxu0
  %v394 = vadd.f32 0.0, %v393
  %v395 = vpop.f32.mrb[0].mxu0
  %396 = vmatprep.mubr.f32.mxu0 0.0
  %397 = vmatmul.mubr.f32.gmra.mrb[0].mxu0 %v297
  %v398 = vpop.f32.mrb[0].mxu0
  %v399 = vadd.f32 0.0, %v398
  %v400 = vpop.f32.mrb[0].mxu0
  %401 = vmatprep.mubr.f32.mxu0 0.0
  %402 = vmatmul.mubr.f32.gmra.mrb[0].mxu0 %v300
  %v403 = vpop.f32.mrb[0].mxu0
  %v404 = vadd.f32 0.0, %v403
  %v405 = vpop.f32.mrb[0].mxu0
  %406 = vdwg.mxu0
  %v407 = vld [vmem:[%s1] sm:$0xff]
  %v408 = vld [vmem:[%s1 + $0x8] sm:$0xff]
  %v409 = vld [vmem:[%s1 + $0x10] sm:$0xff]
  %v410 = vld [vmem:[%s1 + $0x18] sm:$0xff]
  %v411 = vld [vmem:[%s1 + $0x20] sm:$0xff]
  %v412 = vld [vmem:[%s1 + $0x28] sm:$0xff]
  %v413 = vld [vmem:[%s1 + $0x30] sm:$0xff]
  %v414 = vld [vmem:[%s1 + $0x38] sm:$0xff]
  %v415 = vld [vmem:[%s1 + $0x40] sm:$0xff]
  %416 = vset.pattern.permute.xlu0 0
  %417 = vperm.xlu0 %416, %v407
  %v418 = vpop.permute.xlu0 %417
  %419 = vset.pattern.permute.xlu0 0
  %420 = vperm.xlu0 %419, %v408
  %v421 = vpop.permute.xlu0 %420
  %422 = vset.pattern.permute.xlu0 0
  %423 = vperm.xlu0 %422, %v409
  %v424 = vpop.permute.xlu0 %423
  %425 = vset.pattern.permute.xlu0 0
  %426 = vperm.xlu0 %425, %v410
  %v427 = vpop.permute.xlu0 %426
  %428 = vset.pattern.permute.xlu0 0
  %429 = vperm.xlu0 %428, %v411
  %v430 = vpop.permute.xlu0 %429
  %431 = vset.pattern.permute.xlu0 0
  %432 = vperm.xlu0 %431, %v412
  %v433 = vpop.permute.xlu0 %432
  %434 = vset.pattern.permute.xlu0 0
  %435 = vperm.xlu0 %434, %v413
  %v436 = vpop.permute.xlu0 %435
  %437 = vset.pattern.permute.xlu0 0
  %438 = vperm.xlu0 %437, %v414
  %v439 = vpop.permute.xlu0 %438
  %440 = vset.pattern.permute.xlu0 0
  %441 = vperm.xlu0 %440, %v415
  %v442 = vpop.permute.xlu0 %441
  %vm443 = vcmp.eq.s32.totalorder %v418, %v229
  %vm444 = vcmp.eq.s32.totalorder %v421, %v229
  %vm445 = vcmp.eq.s32.totalorder %v424, %v229
  %vm446 = vcmp.eq.s32.totalorder %v427, %v229
  %vm447 = vcmp.eq.s32.totalorder %v430, %v229
  %vm448 = vcmp.eq.s32.totalorder %v433, %v229
  %vm449 = vcmp.eq.s32.totalorder %v436, %v229
  %vm450 = vcmp.eq.s32.totalorder %v439, %v229
  %vm451 = vcmp.eq.s32.totalorder %v442, %v229
  %v452 = vsel %vm443, 1, 0
  %v453 = vsel %vm444, 1, 0
  %v454 = vsel %vm445, 1, 0
  %v455 = vsel %vm446, 1, 0
  %v456 = vsel %vm447, 1, 0
  %v457 = vsel %vm448, 1, 0
  %v458 = vsel %vm449, 1, 0
  %v459 = vsel %vm450, 1, 0
  %v460 = vsel %vm451, 1, 0
  %v461 = vcvt.s32.f32 %v452
  %v462 = vcvt.s32.f32 %v453
  %v463 = vcvt.s32.f32 %v454
  %v464 = vcvt.s32.f32 %v455
  %v465 = vcvt.s32.f32 %v456
  %v466 = vcvt.s32.f32 %v457
  %v467 = vcvt.s32.f32 %v458
  %v468 = vcvt.s32.f32 %v459
  %v469 = vcvt.s32.f32 %v460
  %v471 = vsel %vm53, %v461, 0
  %v474 = vsel %vm53, %v462, 0
  %v477 = vsel %vm53, %v463, 0
  %v480 = vsel %vm53, %v464, 0
  %v483 = vsel %vm53, %v465, 0
  %v486 = vsel %vm53, %v466, 0
  %v489 = vsel %vm53, %v467, 0
  %v492 = vsel %vm53, %v468, 0
  %v495 = vsel %vm53, %v469, 0
  %497 = vmatprep.subr.mxu0 0.0
  %498 = vmatpush1.msra.mxu0 %v212
  %499 = vmatprep.subr.mxu0 0.0
  %500 = vmatpush1.msra.mxu0 %v217
  %501 = vmatprep.subr.mxu0 0.0
  %502 = vmatpush1.msra.mxu0 0.0
  %503 = vmatprep.subr.mxu0 0.0
  %504 = vmatpush1.msra.mxu0 0.0
  %505 = vmatprep.subr.mxu0 0.0
  %506 = vmatpush1.msra.mxu0 0.0
  %507 = vmatprep.subr.mxu0 0.0
  %508 = vmatpush1.msra.mxu0 0.0
  %509 = vmatprep.subr.mxu0 0.0
  %510 = vmatpush1.msra.mxu0 0.0
  %511 = vmatprep.subr.mxu0 0.0
  %512 = vmatpush1.msra.mxu0 0.0
  %513 = vmatprep.subr.mxu0 0.0
  %514 = vmatpush1.msra.mxu0 0.0
  %515 = vmatprep.subr.mxu0 0.0
  %516 = vmatpush1.msra.mxu0 0.0
  %517 = vmatprep.subr.mxu0 0.0
  %518 = vmatpush1.msra.mxu0 0.0
  %519 = vmatprep.subr.mxu0 0.0
  %520 = vmatpush1.msra.mxu0 0.0
  %521 = vmatprep.subr.mxu0 0.0
  %522 = vmatpush1.msra.mxu0 0.0
  %523 = vmatprep.subr.mxu0 0.0
  %524 = vmatpush1.msra.mxu0 0.0
  %525 = vmatprep.subr.mxu0 0.0
  %526 = vmatpush1.msra.mxu0 0.0
  %527 = vmatprep.subr.mxu0 0.0
  %528 = vmatpush1.msra.mxu0 0.0
  %529 = vmatprep.subr.mxu0 0.0
  %530 = vmatpush1.msra.mxu0 0.0
  %531 = vmatprep.subr.mxu0 0.0
  %532 = vmatpush1.msra.mxu0 0.0
  %533 = vmatprep.subr.mxu0 0.0
  %534 = vmatpush1.msra.mxu0 0.0
  %535 = vmatprep.subr.mxu0 0.0
  %536 = vmatpush1.msra.mxu0 0.0
  %537 = vmatprep.subr.mxu0 0.0
  %538 = vmatpush1.msra.mxu0 0.0
  %539 = vmatprep.subr.mxu0 0.0
  %540 = vmatpush1.msra.mxu0 0.0
  %541 = vmatprep.subr.mxu0 0.0
  %542 = vmatpush1.msra.mxu0 0.0
  %543 = vmatprep.subr.mxu0 0.0
  %544 = vmatpush1.msra.mxu0 0.0
  %545 = vmatprep.subr.mxu0 0.0
  %546 = vmatpush1.msra.mxu0 0.0
  %547 = vmatprep.subr.mxu0 0.0
  %548 = vmatpush1.msra.mxu0 0.0
  %549 = vmatprep.subr.mxu0 0.0
  %550 = vmatpush1.msra.mxu0 0.0
  %551 = vmatprep.subr.mxu0 0.0
  %552 = vmatpush1.msra.mxu0 0.0
  %553 = vmatprep.subr.mxu0 0.0
  %554 = vmatpush1.msra.mxu0 0.0
  %555 = vmatprep.subr.mxu0 0.0
  %556 = vmatpush1.msra.mxu0 0.0
  %557 = vmatprep.subr.mxu0 0.0
  %558 = vmatpush1.msra.mxu0 0.0
  %559 = vmatprep.subr.mxu0 0.0
  %560 = vmatpush1.msra.mxu0 0.0
  %561 = vmatprep.mubr.f32.mxu0 0.0
  %562 = vmatmul.mubr.f32.gmra.mrb[0].mxu0 %v471
  %v563 = vpop.f32.mrb[0].mxu0
  %v564 = vadd.f32 0.0, %v563
  %v565 = vpop.f32.mrb[0].mxu0
  %566 = vmatprep.mubr.f32.mxu0 0.0
  %567 = vmatmul.mubr.f32.gmra.mrb[0].mxu0 %v474
  %v568 = vpop.f32.mrb[0].mxu0
  %v569 = vadd.f32 0.0, %v568
  %v570 = vpop.f32.mrb[0].mxu0
  %571 = vmatprep.mubr.f32.mxu0 0.0
  %572 = vmatmul.mubr.f32.gmra.mrb[0].mxu0 %v477
  %v573 = vpop.f32.mrb[0].mxu0
  %v574 = vadd.f32 0.0, %v573
  %v575 = vpop.f32.mrb[0].mxu0
  %576 = vmatprep.mubr.f32.mxu0 0.0
  %577 = vmatmul.mubr.f32.gmra.mrb[0].mxu0 %v480
  %v578 = vpop.f32.mrb[0].mxu0
  %v579 = vadd.f32 0.0, %v578
  %v580 = vpop.f32.mrb[0].mxu0
  %581 = vmatprep.mubr.f32.mxu0 0.0
  %582 = vmatmul.mubr.f32.gmra.mrb[0].mxu0 %v483
  %v583 = vpop.f32.mrb[0].mxu0
  %v584 = vadd.f32 0.0, %v583
  %v585 = vpop.f32.mrb[0].mxu0
  %586 = vmatprep.mubr.f32.mxu0 0.0
  %587 = vmatmul.mubr.f32.gmra.mrb[0].mxu0 %v486
  %v588 = vpop.f32.mrb[0].mxu0
  %v589 = vadd.f32 0.0, %v588
  %v590 = vpop.f32.mrb[0].mxu0
  %591 = vmatprep.mubr.f32.mxu0 0.0
  %592 = vmatmul.mubr.f32.gmra.mrb[0].mxu0 %v489
  %v593 = vpop.f32.mrb[0].mxu0
  %v594 = vadd.f32 0.0, %v593
  %v595 = vpop.f32.mrb[0].mxu0
  %596 = vmatprep.mubr.f32.mxu0 0.0
  %597 = vmatmul.mubr.f32.gmra.mrb[0].mxu0 %v492
  %v598 = vpop.f32.mrb[0].mxu0
  %v599 = vadd.f32 0.0, %v598
  %v600 = vpop.f32.mrb[0].mxu0
  %601 = vmatprep.mubr.f32.mxu0 0.0
  %602 = vmatmul.mubr.f32.gmra.mrb[0].mxu0 %v495
  %v603 = vpop.f32.mrb[0].mxu0
  %v604 = vadd.f32 0.0, %v603
  %v605 = vpop.f32.mrb[0].mxu0
  %606 = vdwg.mxu0
  %v607 = vld [vmem:[%s4 + $0x10] sm:$0xff]
  %v608 = vld [vmem:[%s4 + $0x18] sm:$0xff]
  %v609 = vld [vmem:[%s4 + $0x20] sm:$0xff]
  %v610 = vld [vmem:[%s4 + $0x28] sm:$0xff]
  %vm611 = vcmask 261120
  %v613 = vsel %vm611, 0.0, 0
  %615 = vmatprep.subr.mxu0 0.0
  %616 = vmatpush1.msra.mxu0 %v607
  %617 = vmatprep.subr.mxu0 0.0
  %618 = vmatpush1.msra.mxu0 %v608
  %619 = vmatprep.subr.mxu0 0.0
  %620 = vmatpush1.msra.mxu0 %v609
  %621 = vmatprep.subr.mxu0 0.0
  %622 = vmatpush1.msra.mxu0 %v610
  %623 = vmatprep.subr.mxu0 0.0
  %624 = vmatpush1.msra.mxu0 0.0
  %625 = vmatprep.subr.mxu0 0.0
  %626 = vmatpush1.msra.mxu0 0.0
  %627 = vmatprep.subr.mxu0 0.0
  %628 = vmatpush1.msra.mxu0 0.0
  %629 = vmatprep.subr.mxu0 0.0
  %630 = vmatpush1.msra.mxu0 0.0
  %631 = vmatprep.subr.mxu0 0.0
  %632 = vmatpush1.msra.mxu0 0.0
  %633 = vmatprep.subr.mxu0 0.0
  %634 = vmatpush1.msra.mxu0 0.0
  %635 = vmatprep.subr.mxu0 0.0
  %636 = vmatpush1.msra.mxu0 0.0
  %637 = vmatprep.subr.mxu0 0.0
  %638 = vmatpush1.msra.mxu0 0.0
  %639 = vmatprep.subr.mxu0 0.0
  %640 = vmatpush1.msra.mxu0 0.0
  %641 = vmatprep.subr.mxu0 0.0
  %642 = vmatpush1.msra.mxu0 0.0
  %643 = vmatprep.subr.mxu0 0.0
  %644 = vmatpush1.msra.mxu0 0.0
  %645 = vmatprep.subr.mxu0 0.0
  %646 = vmatpush1.msra.mxu0 0.0
  %647 = vmatprep.subr.mxu0 0.0
  %648 = vmatpush1.msra.mxu0 0.0
  %649 = vmatprep.subr.mxu0 0.0
  %650 = vmatpush1.msra.mxu0 0.0
  %651 = vmatprep.subr.mxu0 0.0
  %652 = vmatpush1.msra.mxu0 0.0
  %653 = vmatprep.subr.mxu0 0.0
  %654 = vmatpush1.msra.mxu0 0.0
  %655 = vmatprep.subr.mxu0 0.0
  %656 = vmatpush1.msra.mxu0 0.0
  %657 = vmatprep.subr.mxu0 0.0
  %658 = vmatpush1.msra.mxu0 0.0
  %659 = vmatprep.subr.mxu0 0.0
  %660 = vmatpush1.msra.mxu0 0.0
  %661 = vmatprep.subr.mxu0 0.0
  %662 = vmatpush1.msra.mxu0 0.0
  %663 = vmatprep.subr.mxu0 0.0
  %664 = vmatpush1.msra.mxu0 0.0
  %665 = vmatprep.subr.mxu0 0.0
  %666 = vmatpush1.msra.mxu0 0.0
  %667 = vmatprep.subr.mxu0 0.0
  %668 = vmatpush1.msra.mxu0 0.0
  %669 = vmatprep.subr.mxu0 0.0
  %670 = vmatpush1.msra.mxu0 0.0
  %671 = vmatprep.subr.mxu0 0.0
  %672 = vmatpush1.msra.mxu0 0.0
  %673 = vmatprep.subr.mxu0 0.0
  %674 = vmatpush1.msra.mxu0 0.0
  %675 = vmatprep.subr.mxu0 0.0
  %676 = vmatpush1.msra.mxu0 0.0
  %677 = vmatprep.subr.mxu0 0.0
  %678 = vmatpush1.msra.mxu0 0.0
  %679 = vmatprep.mubr.f32.mxu0 0.0
  %680 = vmatmul.mubr.f32.gmra.mrb[0].mxu0 %v613
  %v681 = vpop.f32.mrb[0].mxu0
  %v682 = vadd.f32 0.0, %v681
  %v683 = vpop.f32.mrb[0].mxu0
  %684 = vdwg.mxu0
  %v685 = vadd.f32 %v369, %v682
  %v686 = vld [vmem:[%s5] sm:$0x1]
  %v688 = vlaneseq
  %v689 = vshrl.u32 %v688, 7
  %v690 = vsub.s32 0, %v689
  %v691 = vrot.slane %v686, %v690
  %v693 = vadd.f32 %v685, %v691
  %v694 = vxor.u32 %v693, 2147483648
  %v695 = vmul.f32 %v694, 1.442695
  %v696 = vpow.pop %v695
  %v697 = vadd.f32 %v696, 1.0
  %v698 = vrcp.pop %v697
  %v699 = vmul.f32 1.0, %v698
  %v700 = vtanh.pop %v693
  %v701 = vmul.f32 %v699, 0.0
  %703 = vrot.lane.b32.xlu0 %v700, 64
  %v704 = vpop.permute.xlu0 %703
  %v706 = vmul.f32 %v699, %v704
  %708 = vrot.lane.b32.xlu0 %v706, 32
  %v709 = vpop.permute.xlu0 %708
  %v711 = vadd.f32 %v701, %v709
  %v712 = vtanh.pop %v711
  %714 = vrot.lane.b32.xlu0 %v712, 64
  %v715 = vpop.permute.xlu0 %714
  %v717 = vmul.f32 %v699, %v715
  %719 = vrot.lane.b32.xlu0 %v717, 32
  %v720 = vpop.permute.xlu0 %719
  %v722 = vsel %vm611, %v720, 0.0
  %v723 = vld [vmem:[%s6] sm:$0xff]
  %v724 = vld [vmem:[%s6 + $0x8] sm:$0xff]
  %v725 = vld [vmem:[%s6 + $0x10] sm:$0xff]
  %v726 = vld [vmem:[%s6 + $0x18] sm:$0xff]
  %v727 = vld [vmem:[%s6 + $0x20] sm:$0xff]
  %v728 = vld [vmem:[%s6 + $0x28] sm:$0xff]
  %v729 = vld [vmem:[%s6 + $0x30] sm:$0xff]
  %v730 = vld [vmem:[%s6 + $0x38] sm:$0xff]
  %v731 = vld [vmem:[%s7] sm:$0x1]
  %v733 = vlaneseq
  %v734 = vshrl.u32 %v733, 7
  %v735 = vsub.s32 0, %v734
  %v736 = vrot.slane %v731, %v735
  %vm738 = vcmask 523264
  %v740 = vsel %vm738, %v722, 0
  %742 = vmatprep.subr.mxu0 0.0
  %743 = vmatpush1.msra.mxu0 %v723
  %744 = vmatprep.subr.mxu0 0.0
  %745 = vmatpush1.msra.mxu0 %v724
  %746 = vmatprep.subr.mxu0 0.0
  %747 = vmatpush1.msra.mxu0 %v725
  %748 = vmatprep.subr.mxu0 0.0
  %749 = vmatpush1.msra.mxu0 %v726
  %750 = vmatprep.subr.mxu0 0.0
  %751 = vmatpush1.msra.mxu0 %v727
  %752 = vmatprep.subr.mxu0 0.0
  %753 = vmatpush1.msra.mxu0 %v728
  %754 = vmatprep.subr.mxu0 0.0
  %755 = vmatpush1.msra.mxu0 %v729
  %756 = vmatprep.subr.mxu0 0.0
  %757 = vmatpush1.msra.mxu0 %v730
  %758 = vmatprep.subr.mxu0 0.0
  %759 = vmatpush1.msra.mxu0 0.0
  %760 = vmatprep.subr.mxu0 0.0
  %761 = vmatpush1.msra.mxu0 0.0
  %762 = vmatprep.subr.mxu0 0.0
  %763 = vmatpush1.msra.mxu0 0.0
  %764 = vmatprep.subr.mxu0 0.0
  %765 = vmatpush1.msra.mxu0 0.0
  %766 = vmatprep.subr.mxu0 0.0
  %767 = vmatpush1.msra.mxu0 0.0
  %768 = vmatprep.subr.mxu0 0.0
  %769 = vmatpush1.msra.mxu0 0.0
  %770 = vmatprep.subr.mxu0 0.0
  %771 = vmatpush1.msra.mxu0 0.0
  %772 = vmatprep.subr.mxu0 0.0
  %773 = vmatpush1.msra.mxu0 0.0
  %774 = vmatprep.subr.mxu0 0.0
  %775 = vmatpush1.msra.mxu0 0.0
  %776 = vmatprep.subr.mxu0 0.0
  %777 = vmatpush1.msra.mxu0 0.0
  %778 = vmatprep.subr.mxu0 0.0
  %779 = vmatpush1.msra.mxu0 0.0
  %780 = vmatprep.subr.mxu0 0.0
  %781 = vmatpush1.msra.mxu0 0.0
  %782 = vmatprep.subr.mxu0 0.0
  %783 = vmatpush1.msra.mxu0 0.0
  %784 = vmatprep.subr.mxu0 0.0
  %785 = vmatpush1.msra.mxu0 0.0
  %786 = vmatprep.subr.mxu0 0.0
  %787 = vmatpush1.msra.mxu0 0.0
  %788 = vmatprep.subr.mxu0 0.0
  %789 = vmatpush1.msra.mxu0 0.0
  %790 = vmatprep.subr.mxu0 0.0
  %791 = vmatpush1.msra.mxu0 0.0
  %792 = vmatprep.subr.mxu0 0.0
  %793 = vmatpush1.msra.mxu0 0.0
  %794 = vmatprep.subr.mxu0 0.0
  %795 = vmatpush1.msra.mxu0 0.0
  %796 = vmatprep.subr.mxu0 0.0
  %797 = vmatpush1.msra.mxu0 0.0
  %798 = vmatprep.subr.mxu0 0.0
  %799 = vmatpush1.msra.mxu0 0.0
  %800 = vmatprep.subr.mxu0 0.0
  %801 = vmatpush1.msra.mxu0 0.0
  %802 = vmatprep.subr.mxu0 0.0
  %803 = vmatpush1.msra.mxu0 0.0
  %804 = vmatprep.subr.mxu0 0.0
  %805 = vmatpush1.msra.mxu0 0.0
  %806 = vmatprep.mubr.f32.mxu0 0.0
  %807 = vmatmul.mubr.f32.gmra.mrb[0].mxu0 %v740
  %v808 = vpop.f32.mrb[0].mxu0
  %v809 = vadd.f32 %v736, %v808
  %v810 = vpop.f32.mrb[0].mxu0
  %811 = vdwg.mxu0
  %v812 = vxor.u32 %v809, 2147483648
  %v813 = vmul.f32 %v812, 1.442695
  %v814 = vpow.pop %v813
  %v815 = vadd.f32 %v814, 1.0
  %v816 = vrcp.pop %v815
  %v817 = vmul.f32 1.0, %v816
  %v818 = vtanh.pop %v809
  %v819 = vmul.f32 %v817, 0.0
  %821 = vrot.lane.b32.xlu0 %v818, 64
  %v822 = vpop.permute.xlu0 %821
  %v824 = vmul.f32 %v817, %v822
  %826 = vrot.lane.b32.xlu0 %v824, 32
  %v827 = vpop.permute.xlu0 %826
  %v829 = vadd.f32 %v819, %v827
  %v830 = vtanh.pop %v829
  %832 = vrot.lane.b32.xlu0 %v830, 64
  %v833 = vpop.permute.xlu0 %832
  %v835 = vmul.f32 %v817, %v833
  %v836 = vsel %vm611, %v720, 0
  %838 = vmatprep.subr.mxu0 0.0
  %839 = vmatpush1.msra.mxu0 %v607
  %840 = vmatprep.subr.mxu0 0.0
  %841 = vmatpush1.msra.mxu0 %v608
  %842 = vmatprep.subr.mxu0 0.0
  %843 = vmatpush1.msra.mxu0 %v609
  %844 = vmatprep.subr.mxu0 0.0
  %845 = vmatpush1.msra.mxu0 %v610
  %846 = vmatprep.subr.mxu0 0.0
  %847 = vmatpush1.msra.mxu0 0.0
  %848 = vmatprep.subr.mxu0 0.0
  %849 = vmatpush1.msra.mxu0 0.0
  %850 = vmatprep.subr.mxu0 0.0
  %851 = vmatpush1.msra.mxu0 0.0
  %852 = vmatprep.subr.mxu0 0.0
  %853 = vmatpush1.msra.mxu0 0.0
  %854 = vmatprep.subr.mxu0 0.0
  %855 = vmatpush1.msra.mxu0 0.0
  %856 = vmatprep.subr.mxu0 0.0
  %857 = vmatpush1.msra.mxu0 0.0
  %858 = vmatprep.subr.mxu0 0.0
  %859 = vmatpush1.msra.mxu0 0.0
  %860 = vmatprep.subr.mxu0 0.0
  %861 = vmatpush1.msra.mxu0 0.0
  %862 = vmatprep.subr.mxu0 0.0
  %863 = vmatpush1.msra.mxu0 0.0
  %864 = vmatprep.subr.mxu0 0.0
  %865 = vmatpush1.msra.mxu0 0.0
  %866 = vmatprep.subr.mxu0 0.0
  %867 = vmatpush1.msra.mxu0 0.0
  %868 = vmatprep.subr.mxu0 0.0
  %869 = vmatpush1.msra.mxu0 0.0
  %870 = vmatprep.subr.mxu0 0.0
  %871 = vmatpush1.msra.mxu0 0.0
  %872 = vmatprep.subr.mxu0 0.0
  %873 = vmatpush1.msra.mxu0 0.0
  %874 = vmatprep.subr.mxu0 0.0
  %875 = vmatpush1.msra.mxu0 0.0
  %876 = vmatprep.subr.mxu0 0.0
  %877 = vmatpush1.msra.mxu0 0.0
  %878 = vmatprep.subr.mxu0 0.0
  %879 = vmatpush1.msra.mxu0 0.0
  %880 = vmatprep.subr.mxu0 0.0
  %881 = vmatpush1.msra.mxu0 0.0
  %882 = vmatprep.subr.mxu0 0.0
  %883 = vmatpush1.msra.mxu0 0.0
  %884 = vmatprep.subr.mxu0 0.0
  %885 = vmatpush1.msra.mxu0 0.0
  %886 = vmatprep.subr.mxu0 0.0
  %887 = vmatpush1.msra.mxu0 0.0
  %888 = vmatprep.subr.mxu0 0.0
  %889 = vmatpush1.msra.mxu0 0.0
  %890 = vmatprep.subr.mxu0 0.0
  %891 = vmatpush1.msra.mxu0 0.0
  %892 = vmatprep.subr.mxu0 0.0
  %893 = vmatpush1.msra.mxu0 0.0
  %894 = vmatprep.subr.mxu0 0.0
  %895 = vmatpush1.msra.mxu0 0.0
  %896 = vmatprep.subr.mxu0 0.0
  %897 = vmatpush1.msra.mxu0 0.0
  %898 = vmatprep.subr.mxu0 0.0
  %899 = vmatpush1.msra.mxu0 0.0
  %900 = vmatprep.subr.mxu0 0.0
  %901 = vmatpush1.msra.mxu0 0.0
  %902 = vmatprep.mubr.f32.mxu0 0.0
  %903 = vmatmul.mubr.f32.gmra.mrb[0].mxu0 %v836
  %v904 = vpop.f32.mrb[0].mxu0
  %v905 = vadd.f32 0.0, %v904
  %v906 = vpop.f32.mrb[0].mxu0
  %907 = vdwg.mxu0
  %v908 = vadd.f32 %v374, %v905
  %v909 = vadd.f32 %v908, %v691
  %v910 = vxor.u32 %v909, 2147483648
  %v911 = vmul.f32 %v910, 1.442695
  %v912 = vpow.pop %v911
  %v913 = vadd.f32 %v912, 1.0
  %v914 = vrcp.pop %v913
  %v915 = vmul.f32 1.0, %v914
  %v916 = vtanh.pop %v909
  %v917 = vmul.f32 %v915, %v711
  %919 = vrot.lane.b32.xlu0 %v916, 64
  %v920 = vpop.permute.xlu0 %919
  %v922 = vmul.f32 %v915, %v920
  %924 = vrot.lane.b32.xlu0 %v922, 32
  %v925 = vpop.permute.xlu0 %924
  %v927 = vadd.f32 %v917, %v925
  %v928 = vtanh.pop %v927
  %930 = vrot.lane.b32.xlu0 %v928, 64
  %v931 = vpop.permute.xlu0 %930
  %v933 = vmul.f32 %v915, %v931
  %935 = vrot.lane.b32.xlu0 %v933, 32
  %v936 = vpop.permute.xlu0 %935
  %939 = vrot.lane.b32.xlu0 %v835, 64
  %v940 = vpop.permute.xlu0 %939
  %v942 = vsel %vm611, %v936, %v940
  %v944 = vsel %vm738, %v942, 0
  %946 = vmatprep.subr.mxu0 0.0
  %947 = vmatpush1.msra.mxu0 %v723
  %948 = vmatprep.subr.mxu0 0.0
  %949 = vmatpush1.msra.mxu0 %v724
  %950 = vmatprep.subr.mxu0 0.0
  %951 = vmatpush1.msra.mxu0 %v725
  %952 = vmatprep.subr.mxu0 0.0
  %953 = vmatpush1.msra.mxu0 %v726
  %954 = vmatprep.subr.mxu0 0.0
  %955 = vmatpush1.msra.mxu0 %v727
  %956 = vmatprep.subr.mxu0 0.0
  %957 = vmatpush1.msra.mxu0 %v728
  %958 = vmatprep.subr.mxu0 0.0
  %959 = vmatpush1.msra.mxu0 %v729
  %960 = vmatprep.subr.mxu0 0.0
  %961 = vmatpush1.msra.mxu0 %v730
  %962 = vmatprep.subr.mxu0 0.0
  %963 = vmatpush1.msra.mxu0 0.0
  %964 = vmatprep.subr.mxu0 0.0
  %965 = vmatpush1.msra.mxu0 0.0
  %966 = vmatprep.subr.mxu0 0.0
  %967 = vmatpush1.msra.mxu0 0.0
  %968 = vmatprep.subr.mxu0 0.0
  %969 = vmatpush1.msra.mxu0 0.0
  %970 = vmatprep.subr.mxu0 0.0
  %971 = vmatpush1.msra.mxu0 0.0
  %972 = vmatprep.subr.mxu0 0.0
  %973 = vmatpush1.msra.mxu0 0.0
  %974 = vmatprep.subr.mxu0 0.0
  %975 = vmatpush1.msra.mxu0 0.0
  %976 = vmatprep.subr.mxu0 0.0
  %977 = vmatpush1.msra.mxu0 0.0
  %978 = vmatprep.subr.mxu0 0.0
  %979 = vmatpush1.msra.mxu0 0.0
  %980 = vmatprep.subr.mxu0 0.0
  %981 = vmatpush1.msra.mxu0 0.0
  %982 = vmatprep.subr.mxu0 0.0
  %983 = vmatpush1.msra.mxu0 0.0
  %984 = vmatprep.subr.mxu0 0.0
  %985 = vmatpush1.msra.mxu0 0.0
  %986 = vmatprep.subr.mxu0 0.0
  %987 = vmatpush1.msra.mxu0 0.0
  %988 = vmatprep.subr.mxu0 0.0
  %989 = vmatpush1.msra.mxu0 0.0
  %990 = vmatprep.subr.mxu0 0.0
  %991 = vmatpush1.msra.mxu0 0.0
  %992 = vmatprep.subr.mxu0 0.0
  %993 = vmatpush1.msra.mxu0 0.0
  %994 = vmatprep.subr.mxu0 0.0
  %995 = vmatpush1.msra.mxu0 0.0
  %996 = vmatprep.subr.mxu0 0.0
  %997 = vmatpush1.msra.mxu0 0.0
  %998 = vmatprep.subr.mxu0 0.0
  %999 = vmatpush1.msra.mxu0 0.0
  %1000 = vmatprep.subr.mxu0 0.0
  %1001 = vmatpush1.msra.mxu0 0.0
  %1002 = vmatprep.subr.mxu0 0.0
  %1003 = vmatpush1.msra.mxu0 0.0
  %1004 = vmatprep.subr.mxu0 0.0
  %1005 = vmatpush1.msra.mxu0 0.0
  %1006 = vmatprep.subr.mxu0 0.0
  %1007 = vmatpush1.msra.mxu0 0.0
  %1008 = vmatprep.subr.mxu0 0.0
  %1009 = vmatpush1.msra.mxu0 0.0
  %1010 = vmatprep.mubr.f32.mxu0 0.0
  %1011 = vmatmul.mubr.f32.gmra.mrb[0].mxu0 %v944
  %v1012 = vpop.f32.mrb[0].mxu0
  %v1013 = vadd.f32 %v736, %v1012
  %v1014 = vpop.f32.mrb[0].mxu0
  %1015 = vdwg.mxu0
  %v1016 = vxor.u32 %v1013, 2147483648
  %v1017 = vmul.f32 %v1016, 1.442695
  %v1018 = vpow.pop %v1017
  %v1019 = vadd.f32 %v1018, 1.0
  %v1020 = vrcp.pop %v1019
  %v1021 = vmul.f32 1.0, %v1020
  %v1022 = vtanh.pop %v1013
  %v1023 = vmul.f32 %v1021, %v829
  %1025 = vrot.lane.b32.xlu0 %v1022, 64
  %v1026 = vpop.permute.xlu0 %1025
  %v1028 = vmul.f32 %v1021, %v1026
  %1030 = vrot.lane.b32.xlu0 %v1028, 32
  %v1031 = vpop.permute.xlu0 %1030
  %v1033 = vadd.f32 %v1023, %v1031
  %v1034 = vtanh.pop %v1033
  %1036 = vrot.lane.b32.xlu0 %v1034, 64
  %v1037 = vpop.permute.xlu0 %1036
  %v1039 = vmul.f32 %v1021, %v1037
  %v1040 = vsel %vm611, %v936, 0
  %1042 = vmatprep.subr.mxu0 0.0
  %1043 = vmatpush1.msra.mxu0 %v607
  %1044 = vmatprep.subr.mxu0 0.0
  %1045 = vmatpush1.msra.mxu0 %v608
  %1046 = vmatprep.subr.mxu0 0.0
  %1047 = vmatpush1.msra.mxu0 %v609
  %1048 = vmatprep.subr.mxu0 0.0
  %1049 = vmatpush1.msra.mxu0 %v610
  %1050 = vmatprep.subr.mxu0 0.0
  %1051 = vmatpush1.msra.mxu0 0.0
  %1052 = vmatprep.subr.mxu0 0.0
  %1053 = vmatpush1.msra.mxu0 0.0
  %1054 = vmatprep.subr.mxu0 0.0
  %1055 = vmatpush1.msra.mxu0 0.0
  %1056 = vmatprep.subr.mxu0 0.0
  %1057 = vmatpush1.msra.mxu0 0.0
  %1058 = vmatprep.subr.mxu0 0.0
  %1059 = vmatpush1.msra.mxu0 0.0
  %1060 = vmatprep.subr.mxu0 0.0
  %1061 = vmatpush1.msra.mxu0 0.0
  %1062 = vmatprep.subr.mxu0 0.0
  %1063 = vmatpush1.msra.mxu0 0.0
  %1064 = vmatprep.subr.mxu0 0.0
  %1065 = vmatpush1.msra.mxu0 0.0
  %1066 = vmatprep.subr.mxu0 0.0
  %1067 = vmatpush1.msra.mxu0 0.0
  %1068 = vmatprep.subr.mxu0 0.0
  %1069 = vmatpush1.msra.mxu0 0.0
  %1070 = vmatprep.subr.mxu0 0.0
  %1071 = vmatpush1.msra.mxu0 0.0
  %1072 = vmatprep.subr.mxu0 0.0
  %1073 = vmatpush1.msra.mxu0 0.0
  %1074 = vmatprep.subr.mxu0 0.0
  %1075 = vmatpush1.msra.mxu0 0.0
  %1076 = vmatprep.subr.mxu0 0.0
  %1077 = vmatpush1.msra.mxu0 0.0
  %1078 = vmatprep.subr.mxu0 0.0
  %1079 = vmatpush1.msra.mxu0 0.0
  %1080 = vmatprep.subr.mxu0 0.0
  %1081 = vmatpush1.msra.mxu0 0.0
  %1082 = vmatprep.subr.mxu0 0.0
  %1083 = vmatpush1.msra.mxu0 0.0
  %1084 = vmatprep.subr.mxu0 0.0
  %1085 = vmatpush1.msra.mxu0 0.0
  %1086 = vmatprep.subr.mxu0 0.0
  %1087 = vmatpush1.msra.mxu0 0.0
  %1088 = vmatprep.subr.mxu0 0.0
  %1089 = vmatpush1.msra.mxu0 0.0
  %1090 = vmatprep.subr.mxu0 0.0
  %1091 = vmatpush1.msra.mxu0 0.0
  %1092 = vmatprep.subr.mxu0 0.0
  %1093 = vmatpush1.msra.mxu0 0.0
  %1094 = vmatprep.subr.mxu0 0.0
  %1095 = vmatpush1.msra.mxu0 0.0
  %1096 = vmatprep.subr.mxu0 0.0
  %1097 = vmatpush1.msra.mxu0 0.0
  %1098 = vmatprep.subr.mxu0 0.0
  %1099 = vmatpush1.msra.mxu0 0.0
  %1100 = vmatprep.subr.mxu0 0.0
  %1101 = vmatpush1.msra.mxu0 0.0
  %1102 = vmatprep.subr.mxu0 0.0
  %1103 = vmatpush1.msra.mxu0 0.0
  %1104 = vmatprep.subr.mxu0 0.0
  %1105 = vmatpush1.msra.mxu0 0.0
  %1106 = vmatprep.mubr.f32.mxu0 0.0
  %1107 = vmatmul.mubr.f32.gmra.mrb[0].mxu0 %v1040
  %v1108 = vpop.f32.mrb[0].mxu0
  %v1109 = vadd.f32 0.0, %v1108
  %v1110 = vpop.f32.mrb[0].mxu0
  %1111 = vdwg.mxu0
  %v1112 = vadd.f32 %v379, %v1109
  %v1113 = vadd.f32 %v1112, %v691
  %v1114 = vxor.u32 %v1113, 2147483648
  %v1115 = vmul.f32 %v1114, 1.442695
  %v1116 = vpow.pop %v1115
  %v1117 = vadd.f32 %v1116, 1.0
  %v1118 = vrcp.pop %v1117
  %v1119 = vmul.f32 1.0, %v1118
  %v1120 = vtanh.pop %v1113
  %v1121 = vmul.f32 %v1119, %v927
  %1123 = vrot.lane.b32.xlu0 %v1120, 64
  %v1124 = vpop.permute.xlu0 %1123
  %v1126 = vmul.f32 %v1119, %v1124
  %1128 = vrot.lane.b32.xlu0 %v1126, 32
  %v1129 = vpop.permute.xlu0 %1128
  %v1131 = vadd.f32 %v1121, %v1129
  %v1132 = vtanh.pop %v1131
  %1134 = vrot.lane.b32.xlu0 %v1132, 64
  %v1135 = vpop.permute.xlu0 %1134
  %v1137 = vmul.f32 %v1119, %v1135
  %1139 = vrot.lane.b32.xlu0 %v1137, 32
  %v1140 = vpop.permute.xlu0 %1139
  %1143 = vrot.lane.b32.xlu0 %v1039, 64
  %v1144 = vpop.permute.xlu0 %1143
  %v1146 = vsel %vm611, %v1140, %v1144
  %v1148 = vsel %vm738, %v1146, 0
  %1150 = vmatprep.subr.mxu0 0.0
  %1151 = vmatpush1.msra.mxu0 %v723
  %1152 = vmatprep.subr.mxu0 0.0
  %1153 = vmatpush1.msra.mxu0 %v724
  %1154 = vmatprep.subr.mxu0 0.0
  %1155 = vmatpush1.msra.mxu0 %v725
  %1156 = vmatprep.subr.mxu0 0.0
  %1157 = vmatpush1.msra.mxu0 %v726
  %1158 = vmatprep.subr.mxu0 0.0
  %1159 = vmatpush1.msra.mxu0 %v727
  %1160 = vmatprep.subr.mxu0 0.0
  %1161 = vmatpush1.msra.mxu0 %v728
  %1162 = vmatprep.subr.mxu0 0.0
  %1163 = vmatpush1.msra.mxu0 %v729
  %1164 = vmatprep.subr.mxu0 0.0
  %1165 = vmatpush1.msra.mxu0 %v730
  %1166 = vmatprep.subr.mxu0 0.0
  %1167 = vmatpush1.msra.mxu0 0.0
  %1168 = vmatprep.subr.mxu0 0.0
  %1169 = vmatpush1.msra.mxu0 0.0
  %1170 = vmatprep.subr.mxu0 0.0
  %1171 = vmatpush1.msra.mxu0 0.0
  %1172 = vmatprep.subr.mxu0 0.0
  %1173 = vmatpush1.msra.mxu0 0.0
  %1174 = vmatprep.subr.mxu0 0.0
  %1175 = vmatpush1.msra.mxu0 0.0
  %1176 = vmatprep.subr.mxu0 0.0
  %1177 = vmatpush1.msra.mxu0 0.0
  %1178 = vmatprep.subr.mxu0 0.0
  %1179 = vmatpush1.msra.mxu0 0.0
  %1180 = vmatprep.subr.mxu0 0.0
  %1181 = vmatpush1.msra.mxu0 0.0
  %1182 = vmatprep.subr.mxu0 0.0
  %1183 = vmatpush1.msra.mxu0 0.0
  %1184 = vmatprep.subr.mxu0 0.0
  %1185 = vmatpush1.msra.mxu0 0.0
  %1186 = vmatprep.subr.mxu0 0.0
  %1187 = vmatpush1.msra.mxu0 0.0
  %1188 = vmatprep.subr.mxu0 0.0
  %1189 = vmatpush1.msra.mxu0 0.0
  %1190 = vmatprep.subr.mxu0 0.0
  %1191 = vmatpush1.msra.mxu0 0.0
  %1192 = vmatprep.subr.mxu0 0.0
  %1193 = vmatpush1.msra.mxu0 0.0
  %1194 = vmatprep.subr.mxu0 0.0
  %1195 = vmatpush1.msra.mxu0 0.0
  %1196 = vmatprep.subr.mxu0 0.0
  %1197 = vmatpush1.msra.mxu0 0.0
  %1198 = vmatprep.subr.mxu0 0.0
  %1199 = vmatpush1.msra.mxu0 0.0
  %1200 = vmatprep.subr.mxu0 0.0
  %1201 = vmatpush1.msra.mxu0 0.0
  %1202 = vmatprep.subr.mxu0 0.0
  %1203 = vmatpush1.msra.mxu0 0.0
  %1204 = vmatprep.subr.mxu0 0.0
  %1205 = vmatpush1.msra.mxu0 0.0
  %1206 = vmatprep.subr.mxu0 0.0
  %1207 = vmatpush1.msra.mxu0 0.0
  %1208 = vmatprep.subr.mxu0 0.0
  %1209 = vmatpush1.msra.mxu0 0.0
  %1210 = vmatprep.subr.mxu0 0.0
  %1211 = vmatpush1.msra.mxu0 0.0
  %1212 = vmatprep.subr.mxu0 0.0
  %1213 = vmatpush1.msra.mxu0 0.0
  %1214 = vmatprep.mubr.f32.mxu0 0.0
  %1215 = vmatmul.mubr.f32.gmra.mrb[0].mxu0 %v1148
  %v1216 = vpop.f32.mrb[0].mxu0
  %v1217 = vadd.f32 %v736, %v1216
  %v1218 = vpop.f32.mrb[0].mxu0
  %1219 = vdwg.mxu0
  %v1220 = vxor.u32 %v1217, 2147483648
  %v1221 = vmul.f32 %v1220, 1.442695
  %v1222 = vpow.pop %v1221
  %v1223 = vadd.f32 %v1222, 1.0
  %v1224 = vrcp.pop %v1223
  %v1225 = vmul.f32 1.0, %v1224
  %v1226 = vtanh.pop %v1217
  %v1227 = vmul.f32 %v1225, %v1033
  %1229 = vrot.lane.b32.xlu0 %v1226, 64
  %v1230 = vpop.permute.xlu0 %1229
  %v1232 = vmul.f32 %v1225, %v1230
  %1234 = vrot.lane.b32.xlu0 %v1232, 32
  %v1235 = vpop.permute.xlu0 %1234
  %v1237 = vadd.f32 %v1227, %v1235
  %v1238 = vtanh.pop %v1237
  %1240 = vrot.lane.b32.xlu0 %v1238, 64
  %v1241 = vpop.permute.xlu0 %1240
  %v1243 = vmul.f32 %v1225, %v1241
  %v1244 = vsel %vm611, %v1140, 0
  %1246 = vmatprep.subr.mxu0 0.0
  %1247 = vmatpush1.msra.mxu0 %v607
  %1248 = vmatprep.subr.mxu0 0.0
  %1249 = vmatpush1.msra.mxu0 %v608
  %1250 = vmatprep.subr.mxu0 0.0
  %1251 = vmatpush1.msra.mxu0 %v609
  %1252 = vmatprep.subr.mxu0 0.0
  %1253 = vmatpush1.msra.mxu0 %v610
  %1254 = vmatprep.subr.mxu0 0.0
  %1255 = vmatpush1.msra.mxu0 0.0
  %1256 = vmatprep.subr.mxu0 0.0
  %1257 = vmatpush1.msra.mxu0 0.0
  %1258 = vmatprep.subr.mxu0 0.0
  %1259 = vmatpush1.msra.mxu0 0.0
  %1260 = vmatprep.subr.mxu0 0.0
  %1261 = vmatpush1.msra.mxu0 0.0
  %1262 = vmatprep.subr.mxu0 0.0
  %1263 = vmatpush1.msra.mxu0 0.0
  %1264 = vmatprep.subr.mxu0 0.0
  %1265 = vmatpush1.msra.mxu0 0.0
  %1266 = vmatprep.subr.mxu0 0.0
  %1267 = vmatpush1.msra.mxu0 0.0
  %1268 = vmatprep.subr.mxu0 0.0
  %1269 = vmatpush1.msra.mxu0 0.0
  %1270 = vmatprep.subr.mxu0 0.0
  %1271 = vmatpush1.msra.mxu0 0.0
  %1272 = vmatprep.subr.mxu0 0.0
  %1273 = vmatpush1.msra.mxu0 0.0
  %1274 = vmatprep.subr.mxu0 0.0
  %1275 = vmatpush1.msra.mxu0 0.0
  %1276 = vmatprep.subr.mxu0 0.0
  %1277 = vmatpush1.msra.mxu0 0.0
  %1278 = vmatprep.subr.mxu0 0.0
  %1279 = vmatpush1.msra.mxu0 0.0
  %1280 = vmatprep.subr.mxu0 0.0
  %1281 = vmatpush1.msra.mxu0 0.0
  %1282 = vmatprep.subr.mxu0 0.0
  %1283 = vmatpush1.msra.mxu0 0.0
  %1284 = vmatprep.subr.mxu0 0.0
  %1285 = vmatpush1.msra.mxu0 0.0
  %1286 = vmatprep.subr.mxu0 0.0
  %1287 = vmatpush1.msra.mxu0 0.0
  %1288 = vmatprep.subr.mxu0 0.0
  %1289 = vmatpush1.msra.mxu0 0.0
  %1290 = vmatprep.subr.mxu0 0.0
  %1291 = vmatpush1.msra.mxu0 0.0
  %1292 = vmatprep.subr.mxu0 0.0
  %1293 = vmatpush1.msra.mxu0 0.0
  %1294 = vmatprep.subr.mxu0 0.0
  %1295 = vmatpush1.msra.mxu0 0.0
  %1296 = vmatprep.subr.mxu0 0.0
  %1297 = vmatpush1.msra.mxu0 0.0
  %1298 = vmatprep.subr.mxu0 0.0
  %1299 = vmatpush1.msra.mxu0 0.0
  %1300 = vmatprep.subr.mxu0 0.0
  %1301 = vmatpush1.msra.mxu0 0.0
  %1302 = vmatprep.subr.mxu0 0.0
  %1303 = vmatpush1.msra.mxu0 0.0
  %1304 = vmatprep.subr.mxu0 0.0
  %1305 = vmatpush1.msra.mxu0 0.0
  %1306 = vmatprep.subr.mxu0 0.0
  %1307 = vmatpush1.msra.mxu0 0.0
  %1308 = vmatprep.subr.mxu0 0.0
  %1309 = vmatpush1.msra.mxu0 0.0
  %1310 = vmatprep.mubr.f32.mxu0 0.0
  %1311 = vmatmul.mubr.f32.gmra.mrb[0].mxu0 %v1244
  %v1312 = vpop.f32.mrb[0].mxu0
  %v1313 = vadd.f32 0.0, %v1312
  %v1314 = vpop.f32.mrb[0].mxu0
  %1315 = vdwg.mxu0
  %v1316 = vadd.f32 %v384, %v1313
  %v1317 = vadd.f32 %v1316, %v691
  %v1318 = vxor.u32 %v1317, 2147483648
  %v1319 = vmul.f32 %v1318, 1.442695
  %v1320 = vpow.pop %v1319
  %v1321 = vadd.f32 %v1320, 1.0
  %v1322 = vrcp.pop %v1321
  %v1323 = vmul.f32 1.0, %v1322
  %v1324 = vtanh.pop %v1317
  %v1325 = vmul.f32 %v1323, %v1131
  %1327 = vrot.lane.b32.xlu0 %v1324, 64
  %v1328 = vpop.permute.xlu0 %1327
  %v1330 = vmul.f32 %v1323, %v1328
  %1332 = vrot.lane.b32.xlu0 %v1330, 32
  %v1333 = vpop.permute.xlu0 %1332
  %v1335 = vadd.f32 %v1325, %v1333
  %v1336 = vtanh.pop %v1335
  %1338 = vrot.lane.b32.xlu0 %v1336, 64
  %v1339 = vpop.permute.xlu0 %1338
  %v1341 = vmul.f32 %v1323, %v1339
  %1343 = vrot.lane.b32.xlu0 %v1341, 32
  %v1344 = vpop.permute.xlu0 %1343
  %1347 = vrot.lane.b32.xlu0 %v1243, 64
  %v1348 = vpop.permute.xlu0 %1347
  %v1350 = vsel %vm611, %v1344, %v1348
  %v1352 = vsel %vm738, %v1350, 0
  %1354 = vmatprep.subr.mxu0 0.0
  %1355 = vmatpush1.msra.mxu0 %v723
  %1356 = vmatprep.subr.mxu0 0.0
  %1357 = vmatpush1.msra.mxu0 %v724
  %1358 = vmatprep.subr.mxu0 0.0
  %1359 = vmatpush1.msra.mxu0 %v725
  %1360 = vmatprep.subr.mxu0 0.0
  %1361 = vmatpush1.msra.mxu0 %v726
  %1362 = vmatprep.subr.mxu0 0.0
  %1363 = vmatpush1.msra.mxu0 %v727
  %1364 = vmatprep.subr.mxu0 0.0
  %1365 = vmatpush1.msra.mxu0 %v728
  %1366 = vmatprep.subr.mxu0 0.0
  %1367 = vmatpush1.msra.mxu0 %v729
  %1368 = vmatprep.subr.mxu0 0.0
  %1369 = vmatpush1.msra.mxu0 %v730
  %1370 = vmatprep.subr.mxu0 0.0
  %1371 = vmatpush1.msra.mxu0 0.0
  %1372 = vmatprep.subr.mxu0 0.0
  %1373 = vmatpush1.msra.mxu0 0.0
  %1374 = vmatprep.subr.mxu0 0.0
  %1375 = vmatpush1.msra.mxu0 0.0
  %1376 = vmatprep.subr.mxu0 0.0
  %1377 = vmatpush1.msra.mxu0 0.0
  %1378 = vmatprep.subr.mxu0 0.0
  %1379 = vmatpush1.msra.mxu0 0.0
  %1380 = vmatprep.subr.mxu0 0.0
  %1381 = vmatpush1.msra.mxu0 0.0
  %1382 = vmatprep.subr.mxu0 0.0
  %1383 = vmatpush1.msra.mxu0 0.0
  %1384 = vmatprep.subr.mxu0 0.0
  %1385 = vmatpush1.msra.mxu0 0.0
  %1386 = vmatprep.subr.mxu0 0.0
  %1387 = vmatpush1.msra.mxu0 0.0
  %1388 = vmatprep.subr.mxu0 0.0
  %1389 = vmatpush1.msra.mxu0 0.0
  %1390 = vmatprep.subr.mxu0 0.0
  %1391 = vmatpush1.msra.mxu0 0.0
  %1392 = vmatprep.subr.mxu0 0.0
  %1393 = vmatpush1.msra.mxu0 0.0
  %1394 = vmatprep.subr.mxu0 0.0
  %1395 = vmatpush1.msra.mxu0 0.0
  %1396 = vmatprep.subr.mxu0 0.0
  %1397 = vmatpush1.msra.mxu0 0.0
  %1398 = vmatprep.subr.mxu0 0.0
  %1399 = vmatpush1.msra.mxu0 0.0
  %1400 = vmatprep.subr.mxu0 0.0
  %1401 = vmatpush1.msra.mxu0 0.0
  %1402 = vmatprep.subr.mxu0 0.0
  %1403 = vmatpush1.msra.mxu0 0.0
  %1404 = vmatprep.subr.mxu0 0.0
  %1405 = vmatpush1.msra.mxu0 0.0
  %1406 = vmatprep.subr.mxu0 0.0
  %1407 = vmatpush1.msra.mxu0 0.0
  %1408 = vmatprep.subr.mxu0 0.0
  %1409 = vmatpush1.msra.mxu0 0.0
  %1410 = vmatprep.subr.mxu0 0.0
  %1411 = vmatpush1.msra.mxu0 0.0
  %1412 = vmatprep.subr.mxu0 0.0
  %1413 = vmatpush1.msra.mxu0 0.0
  %1414 = vmatprep.subr.mxu0 0.0
  %1415 = vmatpush1.msra.mxu0 0.0
  %1416 = vmatprep.subr.mxu0 0.0
  %1417 = vmatpush1.msra.mxu0 0.0
  %1418 = vmatprep.mubr.f32.mxu0 0.0
  %1419 = vmatmul.mubr.f32.gmra.mrb[0].mxu0 %v1352
  %v1420 = vpop.f32.mrb[0].mxu0
  %v1421 = vadd.f32 %v736, %v1420
  %v1422 = vpop.f32.mrb[0].mxu0
  %1423 = vdwg.mxu0
  %v1424 = vxor.u32 %v1421, 2147483648
  %v1425 = vmul.f32 %v1424, 1.442695
  %v1426 = vpow.pop %v1425
  %v1427 = vadd.f32 %v1426, 1.0
  %v1428 = vrcp.pop %v1427
  %v1429 = vmul.f32 1.0, %v1428
  %v1430 = vtanh.pop %v1421
  %v1431 = vmul.f32 %v1429, %v1237
  %1433 = vrot.lane.b32.xlu0 %v1430, 64
  %v1434 = vpop.permute.xlu0 %1433
  %v1436 = vmul.f32 %v1429, %v1434
  %1438 = vrot.lane.b32.xlu0 %v1436, 32
  %v1439 = vpop.permute.xlu0 %1438
  %v1441 = vadd.f32 %v1431, %v1439
  %v1442 = vtanh.pop %v1441
  %1444 = vrot.lane.b32.xlu0 %v1442, 64
  %v1445 = vpop.permute.xlu0 %1444
  %v1447 = vmul.f32 %v1429, %v1445
  %v1448 = vsel %vm611, %v1344, 0
  %1450 = vmatprep.subr.mxu0 0.0
  %1451 = vmatpush1.msra.mxu0 %v607
  %1452 = vmatprep.subr.mxu0 0.0
  %1453 = vmatpush1.msra.mxu0 %v608
  %1454 = vmatprep.subr.mxu0 0.0
  %1455 = vmatpush1.msra.mxu0 %v609
  %1456 = vmatprep.subr.mxu0 0.0
  %1457 = vmatpush1.msra.mxu0 %v610
  %1458 = vmatprep.subr.mxu0 0.0
  %1459 = vmatpush1.msra.mxu0 0.0
  %1460 = vmatprep.subr.mxu0 0.0
  %1461 = vmatpush1.msra.mxu0 0.0
  %1462 = vmatprep.subr.mxu0 0.0
  %1463 = vmatpush1.msra.mxu0 0.0
  %1464 = vmatprep.subr.mxu0 0.0
  %1465 = vmatpush1.msra.mxu0 0.0
  %1466 = vmatprep.subr.mxu0 0.0
  %1467 = vmatpush1.msra.mxu0 0.0
  %1468 = vmatprep.subr.mxu0 0.0
  %1469 = vmatpush1.msra.mxu0 0.0
  %1470 = vmatprep.subr.mxu0 0.0
  %1471 = vmatpush1.msra.mxu0 0.0
  %1472 = vmatprep.subr.mxu0 0.0
  %1473 = vmatpush1.msra.mxu0 0.0
  %1474 = vmatprep.subr.mxu0 0.0
  %1475 = vmatpush1.msra.mxu0 0.0
  %1476 = vmatprep.subr.mxu0 0.0
  %1477 = vmatpush1.msra.mxu0 0.0
  %1478 = vmatprep.subr.mxu0 0.0
  %1479 = vmatpush1.msra.mxu0 0.0
  %1480 = vmatprep.subr.mxu0 0.0
  %1481 = vmatpush1.msra.mxu0 0.0
  %1482 = vmatprep.subr.mxu0 0.0
  %1483 = vmatpush1.msra.mxu0 0.0
  %1484 = vmatprep.subr.mxu0 0.0
  %1485 = vmatpush1.msra.mxu0 0.0
  %1486 = vmatprep.subr.mxu0 0.0
  %1487 = vmatpush1.msra.mxu0 0.0
  %1488 = vmatprep.subr.mxu0 0.0
  %1489 = vmatpush1.msra.mxu0 0.0
  %1490 = vmatprep.subr.mxu0 0.0
  %1491 = vmatpush1.msra.mxu0 0.0
  %1492 = vmatprep.subr.mxu0 0.0
  %1493 = vmatpush1.msra.mxu0 0.0
  %1494 = vmatprep.subr.mxu0 0.0
  %1495 = vmatpush1.msra.mxu0 0.0
  %1496 = vmatprep.subr.mxu0 0.0
  %1497 = vmatpush1.msra.mxu0 0.0
  %1498 = vmatprep.subr.mxu0 0.0
  %1499 = vmatpush1.msra.mxu0 0.0
  %1500 = vmatprep.subr.mxu0 0.0
  %1501 = vmatpush1.msra.mxu0 0.0
  %1502 = vmatprep.subr.mxu0 0.0
  %1503 = vmatpush1.msra.mxu0 0.0
  %1504 = vmatprep.subr.mxu0 0.0
  %1505 = vmatpush1.msra.mxu0 0.0
  %1506 = vmatprep.subr.mxu0 0.0
  %1507 = vmatpush1.msra.mxu0 0.0
  %1508 = vmatprep.subr.mxu0 0.0
  %1509 = vmatpush1.msra.mxu0 0.0
  %1510 = vmatprep.subr.mxu0 0.0
  %1511 = vmatpush1.msra.mxu0 0.0
  %1512 = vmatprep.subr.mxu0 0.0
  %1513 = vmatpush1.msra.mxu0 0.0
  %1514 = vmatprep.mubr.f32.mxu0 0.0
  %1515 = vmatmul.mubr.f32.gmra.mrb[0].mxu0 %v1448
  %v1516 = vpop.f32.mrb[0].mxu0
  %v1517 = vadd.f32 0.0, %v1516
  %v1518 = vpop.f32.mrb[0].mxu0
  %1519 = vdwg.mxu0
  %v1520 = vadd.f32 %v389, %v1517
  %v1521 = vadd.f32 %v1520, %v691
  %v1522 = vxor.u32 %v1521, 2147483648
  %v1523 = vmul.f32 %v1522, 1.442695
  %v1524 = vpow.pop %v1523
  %v1525 = vadd.f32 %v1524, 1.0
  %v1526 = vrcp.pop %v1525
  %v1527 = vmul.f32 1.0, %v1526
  %v1528 = vtanh.pop %v1521
  %v1529 = vmul.f32 %v1527, %v1335
  %1531 = vrot.lane.b32.xlu0 %v1528, 64
  %v1532 = vpop.permute.xlu0 %1531
  %v1534 = vmul.f32 %v1527, %v1532
  %1536 = vrot.lane.b32.xlu0 %v1534, 32
  %v1537 = vpop.permute.xlu0 %1536
  %v1539 = vadd.f32 %v1529, %v1537
  %v1540 = vtanh.pop %v1539
  %1542 = vrot.lane.b32.xlu0 %v1540, 64
  %v1543 = vpop.permute.xlu0 %1542
  %v1545 = vmul.f32 %v1527, %v1543
  %1547 = vrot.lane.b32.xlu0 %v1545, 32
  %v1548 = vpop.permute.xlu0 %1547
  %1551 = vrot.lane.b32.xlu0 %v1447, 64
  %v1552 = vpop.permute.xlu0 %1551
  %v1554 = vsel %vm611, %v1548, %v1552
  %v1556 = vsel %vm738, %v1554, 0
  %1558 = vmatprep.subr.mxu0 0.0
  %1559 = vmatpush1.msra.mxu0 %v723
  %1560 = vmatprep.subr.mxu0 0.0
  %1561 = vmatpush1.msra.mxu0 %v724
  %1562 = vmatprep.subr.mxu0 0.0
  %1563 = vmatpush1.msra.mxu0 %v725
  %1564 = vmatprep.subr.mxu0 0.0
  %1565 = vmatpush1.msra.mxu0 %v726
  %1566 = vmatprep.subr.mxu0 0.0
  %1567 = vmatpush1.msra.mxu0 %v727
  %1568 = vmatprep.subr.mxu0 0.0
  %1569 = vmatpush1.msra.mxu0 %v728
  %1570 = vmatprep.subr.mxu0 0.0
  %1571 = vmatpush1.msra.mxu0 %v729
  %1572 = vmatprep.subr.mxu0 0.0
  %1573 = vmatpush1.msra.mxu0 %v730
  %1574 = vmatprep.subr.mxu0 0.0
  %1575 = vmatpush1.msra.mxu0 0.0
  %1576 = vmatprep.subr.mxu0 0.0
  %1577 = vmatpush1.msra.mxu0 0.0
  %1578 = vmatprep.subr.mxu0 0.0
  %1579 = vmatpush1.msra.mxu0 0.0
  %1580 = vmatprep.subr.mxu0 0.0
  %1581 = vmatpush1.msra.mxu0 0.0
  %1582 = vmatprep.subr.mxu0 0.0
  %1583 = vmatpush1.msra.mxu0 0.0
  %1584 = vmatprep.subr.mxu0 0.0
  %1585 = vmatpush1.msra.mxu0 0.0
  %1586 = vmatprep.subr.mxu0 0.0
  %1587 = vmatpush1.msra.mxu0 0.0
  %1588 = vmatprep.subr.mxu0 0.0
  %1589 = vmatpush1.msra.mxu0 0.0
  %1590 = vmatprep.subr.mxu0 0.0
  %1591 = vmatpush1.msra.mxu0 0.0
  %1592 = vmatprep.subr.mxu0 0.0
  %1593 = vmatpush1.msra.mxu0 0.0
  %1594 = vmatprep.subr.mxu0 0.0
  %1595 = vmatpush1.msra.mxu0 0.0
  %1596 = vmatprep.subr.mxu0 0.0
  %1597 = vmatpush1.msra.mxu0 0.0
  %1598 = vmatprep.subr.mxu0 0.0
  %1599 = vmatpush1.msra.mxu0 0.0
  %1600 = vmatprep.subr.mxu0 0.0
  %1601 = vmatpush1.msra.mxu0 0.0
  %1602 = vmatprep.subr.mxu0 0.0
  %1603 = vmatpush1.msra.mxu0 0.0
  %1604 = vmatprep.subr.mxu0 0.0
  %1605 = vmatpush1.msra.mxu0 0.0
  %1606 = vmatprep.subr.mxu0 0.0
  %1607 = vmatpush1.msra.mxu0 0.0
  %1608 = vmatprep.subr.mxu0 0.0
  %1609 = vmatpush1.msra.mxu0 0.0
  %1610 = vmatprep.subr.mxu0 0.0
  %1611 = vmatpush1.msra.mxu0 0.0
  %1612 = vmatprep.subr.mxu0 0.0
  %1613 = vmatpush1.msra.mxu0 0.0
  %1614 = vmatprep.subr.mxu0 0.0
  %1615 = vmatpush1.msra.mxu0 0.0
  %1616 = vmatprep.subr.mxu0 0.0
  %1617 = vmatpush1.msra.mxu0 0.0
  %1618 = vmatprep.subr.mxu0 0.0
  %1619 = vmatpush1.msra.mxu0 0.0
  %1620 = vmatprep.subr.mxu0 0.0
  %1621 = vmatpush1.msra.mxu0 0.0
  %1622 = vmatprep.mubr.f32.mxu0 0.0
  %1623 = vmatmul.mubr.f32.gmra.mrb[0].mxu0 %v1556
  %v1624 = vpop.f32.mrb[0].mxu0
  %v1625 = vadd.f32 %v736, %v1624
  %v1626 = vpop.f32.mrb[0].mxu0
  %1627 = vdwg.mxu0
  %v1628 = vxor.u32 %v1625, 2147483648
  %v1629 = vmul.f32 %v1628, 1.442695
  %v1630 = vpow.pop %v1629
  %v1631 = vadd.f32 %v1630, 1.0
  %v1632 = vrcp.pop %v1631
  %v1633 = vmul.f32 1.0, %v1632
  %v1634 = vtanh.pop %v1625
  %v1635 = vmul.f32 %v1633, %v1441
  %1637 = vrot.lane.b32.xlu0 %v1634, 64
  %v1638 = vpop.permute.xlu0 %1637
  %v1640 = vmul.f32 %v1633, %v1638
  %1642 = vrot.lane.b32.xlu0 %v1640, 32
  %v1643 = vpop.permute.xlu0 %1642
  %v1645 = vadd.f32 %v1635, %v1643
  %v1646 = vtanh.pop %v1645
  %1648 = vrot.lane.b32.xlu0 %v1646, 64
  %v1649 = vpop.permute.xlu0 %1648
  %v1651 = vmul.f32 %v1633, %v1649
  %v1652 = vsel %vm611, %v1548, 0
  %1654 = vmatprep.subr.mxu0 0.0
  %1655 = vmatpush1.msra.mxu0 %v607
  %1656 = vmatprep.subr.mxu0 0.0
  %1657 = vmatpush1.msra.mxu0 %v608
  %1658 = vmatprep.subr.mxu0 0.0
  %1659 = vmatpush1.msra.mxu0 %v609
  %1660 = vmatprep.subr.mxu0 0.0
  %1661 = vmatpush1.msra.mxu0 %v610
  %1662 = vmatprep.subr.mxu0 0.0
  %1663 = vmatpush1.msra.mxu0 0.0
  %1664 = vmatprep.subr.mxu0 0.0
  %1665 = vmatpush1.msra.mxu0 0.0
  %1666 = vmatprep.subr.mxu0 0.0
  %1667 = vmatpush1.msra.mxu0 0.0
  %1668 = vmatprep.subr.mxu0 0.0
  %1669 = vmatpush1.msra.mxu0 0.0
  %1670 = vmatprep.subr.mxu0 0.0
  %1671 = vmatpush1.msra.mxu0 0.0
  %1672 = vmatprep.subr.mxu0 0.0
  %1673 = vmatpush1.msra.mxu0 0.0
  %1674 = vmatprep.subr.mxu0 0.0
  %1675 = vmatpush1.msra.mxu0 0.0
  %1676 = vmatprep.subr.mxu0 0.0
  %1677 = vmatpush1.msra.mxu0 0.0
  %1678 = vmatprep.subr.mxu0 0.0
  %1679 = vmatpush1.msra.mxu0 0.0
  %1680 = vmatprep.subr.mxu0 0.0
  %1681 = vmatpush1.msra.mxu0 0.0
  %1682 = vmatprep.subr.mxu0 0.0
  %1683 = vmatpush1.msra.mxu0 0.0
  %1684 = vmatprep.subr.mxu0 0.0
  %1685 = vmatpush1.msra.mxu0 0.0
  %1686 = vmatprep.subr.mxu0 0.0
  %1687 = vmatpush1.msra.mxu0 0.0
  %1688 = vmatprep.subr.mxu0 0.0
  %1689 = vmatpush1.msra.mxu0 0.0
  %1690 = vmatprep.subr.mxu0 0.0
  %1691 = vmatpush1.msra.mxu0 0.0
  %1692 = vmatprep.subr.mxu0 0.0
  %1693 = vmatpush1.msra.mxu0 0.0
  %1694 = vmatprep.subr.mxu0 0.0
  %1695 = vmatpush1.msra.mxu0 0.0
  %1696 = vmatprep.subr.mxu0 0.0
  %1697 = vmatpush1.msra.mxu0 0.0
  %1698 = vmatprep.subr.mxu0 0.0
  %1699 = vmatpush1.msra.mxu0 0.0
  %1700 = vmatprep.subr.mxu0 0.0
  %1701 = vmatpush1.msra.mxu0 0.0
  %1702 = vmatprep.subr.mxu0 0.0
  %1703 = vmatpush1.msra.mxu0 0.0
  %1704 = vmatprep.subr.mxu0 0.0
  %1705 = vmatpush1.msra.mxu0 0.0
  %1706 = vmatprep.subr.mxu0 0.0
  %1707 = vmatpush1.msra.mxu0 0.0
  %1708 = vmatprep.subr.mxu0 0.0
  %1709 = vmatpush1.msra.mxu0 0.0
  %1710 = vmatprep.subr.mxu0 0.0
  %1711 = vmatpush1.msra.mxu0 0.0
  %1712 = vmatprep.subr.mxu0 0.0
  %1713 = vmatpush1.msra.mxu0 0.0
  %1714 = vmatprep.subr.mxu0 0.0
  %1715 = vmatpush1.msra.mxu0 0.0
  %1716 = vmatprep.subr.mxu0 0.0
  %1717 = vmatpush1.msra.mxu0 0.0
  %1718 = vmatprep.mubr.f32.mxu0 0.0
  %1719 = vmatmul.mubr.f32.gmra.mrb[0].mxu0 %v1652
  %v1720 = vpop.f32.mrb[0].mxu0
  %v1721 = vadd.f32 0.0, %v1720
  %v1722 = vpop.f32.mrb[0].mxu0
  %1723 = vdwg.mxu0
  %v1724 = vadd.f32 %v394, %v1721
  %v1725 = vadd.f32 %v1724, %v691
  %v1726 = vxor.u32 %v1725, 2147483648
  %v1727 = vmul.f32 %v1726, 1.442695
  %v1728 = vpow.pop %v1727
  %v1729 = vadd.f32 %v1728, 1.0
  %v1730 = vrcp.pop %v1729
  %v1731 = vmul.f32 1.0, %v1730
  %v1732 = vtanh.pop %v1725
  %v1733 = vmul.f32 %v1731, %v1539
  %1735 = vrot.lane.b32.xlu0 %v1732, 64
  %v1736 = vpop.permute.xlu0 %1735
  %v1738 = vmul.f32 %v1731, %v1736
  %1740 = vrot.lane.b32.xlu0 %v1738, 32
  %v1741 = vpop.permute.xlu0 %1740
  %v1743 = vadd.f32 %v1733, %v1741
  %v1744 = vtanh.pop %v1743
  %1746 = vrot.lane.b32.xlu0 %v1744, 64
  %v1747 = vpop.permute.xlu0 %1746
  %v1749 = vmul.f32 %v1731, %v1747
  %1751 = vrot.lane.b32.xlu0 %v1749, 32
  %v1752 = vpop.permute.xlu0 %1751
  %1755 = vrot.lane.b32.xlu0 %v1651, 64
  %v1756 = vpop.permute.xlu0 %1755
  %v1758 = vsel %vm611, %v1752, %v1756
  %v1760 = vsel %vm738, %v1758, 0
  %1762 = vmatprep.subr.mxu0 0.0
  %1763 = vmatpush1.msra.mxu0 %v723
  %1764 = vmatprep.subr.mxu0 0.0
  %1765 = vmatpush1.msra.mxu0 %v724
  %1766 = vmatprep.subr.mxu0 0.0
  %1767 = vmatpush1.msra.mxu0 %v725
  %1768 = vmatprep.subr.mxu0 0.0
  %1769 = vmatpush1.msra.mxu0 %v726
  %1770 = vmatprep.subr.mxu0 0.0
  %1771 = vmatpush1.msra.mxu0 %v727
  %1772 = vmatprep.subr.mxu0 0.0
  %1773 = vmatpush1.msra.mxu0 %v728
  %1774 = vmatprep.subr.mxu0 0.0
  %1775 = vmatpush1.msra.mxu0 %v729
  %1776 = vmatprep.subr.mxu0 0.0
  %1777 = vmatpush1.msra.mxu0 %v730
  %1778 = vmatprep.subr.mxu0 0.0
  %1779 = vmatpush1.msra.mxu0 0.0
  %1780 = vmatprep.subr.mxu0 0.0
  %1781 = vmatpush1.msra.mxu0 0.0
  %1782 = vmatprep.subr.mxu0 0.0
  %1783 = vmatpush1.msra.mxu0 0.0
  %1784 = vmatprep.subr.mxu0 0.0
  %1785 = vmatpush1.msra.mxu0 0.0
  %1786 = vmatprep.subr.mxu0 0.0
  %1787 = vmatpush1.msra.mxu0 0.0
  %1788 = vmatprep.subr.mxu0 0.0
  %1789 = vmatpush1.msra.mxu0 0.0
  %1790 = vmatprep.subr.mxu0 0.0
  %1791 = vmatpush1.msra.mxu0 0.0
  %1792 = vmatprep.subr.mxu0 0.0
  %1793 = vmatpush1.msra.mxu0 0.0
  %1794 = vmatprep.subr.mxu0 0.0
  %1795 = vmatpush1.msra.mxu0 0.0
  %1796 = vmatprep.subr.mxu0 0.0
  %1797 = vmatpush1.msra.mxu0 0.0
  %1798 = vmatprep.subr.mxu0 0.0
  %1799 = vmatpush1.msra.mxu0 0.0
  %1800 = vmatprep.subr.mxu0 0.0
  %1801 = vmatpush1.msra.mxu0 0.0
  %1802 = vmatprep.subr.mxu0 0.0
  %1803 = vmatpush1.msra.mxu0 0.0
  %1804 = vmatprep.subr.mxu0 0.0
  %1805 = vmatpush1.msra.mxu0 0.0
  %1806 = vmatprep.subr.mxu0 0.0
  %1807 = vmatpush1.msra.mxu0 0.0
  %1808 = vmatprep.subr.mxu0 0.0
  %1809 = vmatpush1.msra.mxu0 0.0
  %1810 = vmatprep.subr.mxu0 0.0
  %1811 = vmatpush1.msra.mxu0 0.0
  %1812 = vmatprep.subr.mxu0 0.0
  %1813 = vmatpush1.msra.mxu0 0.0
  %1814 = vmatprep.subr.mxu0 0.0
  %1815 = vmatpush1.msra.mxu0 0.0
  %1816 = vmatprep.subr.mxu0 0.0
  %1817 = vmatpush1.msra.mxu0 0.0
  %1818 = vmatprep.subr.mxu0 0.0
  %1819 = vmatpush1.msra.mxu0 0.0
  %1820 = vmatprep.subr.mxu0 0.0
  %1821 = vmatpush1.msra.mxu0 0.0
  %1822 = vmatprep.subr.mxu0 0.0
  %1823 = vmatpush1.msra.mxu0 0.0
  %1824 = vmatprep.subr.mxu0 0.0
  %1825 = vmatpush1.msra.mxu0 0.0
  %1826 = vmatprep.mubr.f32.mxu0 0.0
  %1827 = vmatmul.mubr.f32.gmra.mrb[0].mxu0 %v1760
  %v1828 = vpop.f32.mrb[0].mxu0
  %v1829 = vadd.f32 %v736, %v1828
  %v1830 = vpop.f32.mrb[0].mxu0
  %1831 = vdwg.mxu0
  %v1832 = vxor.u32 %v1829, 2147483648
  %v1833 = vmul.f32 %v1832, 1.442695
  %v1834 = vpow.pop %v1833
  %v1835 = vadd.f32 %v1834, 1.0
  %v1836 = vrcp.pop %v1835
  %v1837 = vmul.f32 1.0, %v1836
  %v1838 = vtanh.pop %v1829
  %v1839 = vmul.f32 %v1837, %v1645
  %1841 = vrot.lane.b32.xlu0 %v1838, 64
  %v1842 = vpop.permute.xlu0 %1841
  %v1844 = vmul.f32 %v1837, %v1842
  %1846 = vrot.lane.b32.xlu0 %v1844, 32
  %v1847 = vpop.permute.xlu0 %1846
  %v1849 = vadd.f32 %v1839, %v1847
  %v1850 = vtanh.pop %v1849
  %1852 = vrot.lane.b32.xlu0 %v1850, 64
  %v1853 = vpop.permute.xlu0 %1852
  %v1855 = vmul.f32 %v1837, %v1853
  %v1856 = vsel %vm611, %v1752, 0
  %1858 = vmatprep.subr.mxu0 0.0
  %1859 = vmatpush1.msra.mxu0 %v607
  %1860 = vmatprep.subr.mxu0 0.0
  %1861 = vmatpush1.msra.mxu0 %v608
  %1862 = vmatprep.subr.mxu0 0.0
  %1863 = vmatpush1.msra.mxu0 %v609
  %1864 = vmatprep.subr.mxu0 0.0
  %1865 = vmatpush1.msra.mxu0 %v610
  %1866 = vmatprep.subr.mxu0 0.0
  %1867 = vmatpush1.msra.mxu0 0.0
  %1868 = vmatprep.subr.mxu0 0.0
  %1869 = vmatpush1.msra.mxu0 0.0
  %1870 = vmatprep.subr.mxu0 0.0
  %1871 = vmatpush1.msra.mxu0 0.0
  %1872 = vmatprep.subr.mxu0 0.0
  %1873 = vmatpush1.msra.mxu0 0.0
  %1874 = vmatprep.subr.mxu0 0.0
  %1875 = vmatpush1.msra.mxu0 0.0
  %1876 = vmatprep.subr.mxu0 0.0
  %1877 = vmatpush1.msra.mxu0 0.0
  %1878 = vmatprep.subr.mxu0 0.0
  %1879 = vmatpush1.msra.mxu0 0.0
  %1880 = vmatprep.subr.mxu0 0.0
  %1881 = vmatpush1.msra.mxu0 0.0
  %1882 = vmatprep.subr.mxu0 0.0
  %1883 = vmatpush1.msra.mxu0 0.0
  %1884 = vmatprep.subr.mxu0 0.0
  %1885 = vmatpush1.msra.mxu0 0.0
  %1886 = vmatprep.subr.mxu0 0.0
  %1887 = vmatpush1.msra.mxu0 0.0
  %1888 = vmatprep.subr.mxu0 0.0
  %1889 = vmatpush1.msra.mxu0 0.0
  %1890 = vmatprep.subr.mxu0 0.0
  %1891 = vmatpush1.msra.mxu0 0.0
  %1892 = vmatprep.subr.mxu0 0.0
  %1893 = vmatpush1.msra.mxu0 0.0
  %1894 = vmatprep.subr.mxu0 0.0
  %1895 = vmatpush1.msra.mxu0 0.0
  %1896 = vmatprep.subr.mxu0 0.0
  %1897 = vmatpush1.msra.mxu0 0.0
  %1898 = vmatprep.subr.mxu0 0.0
  %1899 = vmatpush1.msra.mxu0 0.0
  %1900 = vmatprep.subr.mxu0 0.0
  %1901 = vmatpush1.msra.mxu0 0.0
  %1902 = vmatprep.subr.mxu0 0.0
  %1903 = vmatpush1.msra.mxu0 0.0
  %1904 = vmatprep.subr.mxu0 0.0
  %1905 = vmatpush1.msra.mxu0 0.0
  %1906 = vmatprep.subr.mxu0 0.0
  %1907 = vmatpush1.msra.mxu0 0.0
  %1908 = vmatprep.subr.mxu0 0.0
  %1909 = vmatpush1.msra.mxu0 0.0
  %1910 = vmatprep.subr.mxu0 0.0
  %1911 = vmatpush1.msra.mxu0 0.0
  %1912 = vmatprep.subr.mxu0 0.0
  %1913 = vmatpush1.msra.mxu0 0.0
  %1914 = vmatprep.subr.mxu0 0.0
  %1915 = vmatpush1.msra.mxu0 0.0
  %1916 = vmatprep.subr.mxu0 0.0
  %1917 = vmatpush1.msra.mxu0 0.0
  %1918 = vmatprep.subr.mxu0 0.0
  %1919 = vmatpush1.msra.mxu0 0.0
  %1920 = vmatprep.subr.mxu0 0.0
  %1921 = vmatpush1.msra.mxu0 0.0
  %1922 = vmatprep.mubr.f32.mxu0 0.0
  %1923 = vmatmul.mubr.f32.gmra.mrb[0].mxu0 %v1856
  %v1924 = vpop.f32.mrb[0].mxu0
  %v1925 = vadd.f32 0.0, %v1924
  %v1926 = vpop.f32.mrb[0].mxu0
  %1927 = vdwg.mxu0
  %v1928 = vadd.f32 %v399, %v1925
  %v1929 = vadd.f32 %v1928, %v691
  %v1930 = vxor.u32 %v1929, 2147483648
  %v1931 = vmul.f32 %v1930, 1.442695
  %v1932 = vpow.pop %v1931
  %v1933 = vadd.f32 %v1932, 1.0
  %v1934 = vrcp.pop %v1933
  %v1935 = vmul.f32 1.0, %v1934
  %v1936 = vtanh.pop %v1929
  %v1937 = vmul.f32 %v1935, %v1743
  %1939 = vrot.lane.b32.xlu0 %v1936, 64
  %v1940 = vpop.permute.xlu0 %1939
  %v1942 = vmul.f32 %v1935, %v1940
  %1944 = vrot.lane.b32.xlu0 %v1942, 32
  %v1945 = vpop.permute.xlu0 %1944
  %v1947 = vadd.f32 %v1937, %v1945
  %v1948 = vtanh.pop %v1947
  %1950 = vrot.lane.b32.xlu0 %v1948, 64
  %v1951 = vpop.permute.xlu0 %1950
  %v1953 = vmul.f32 %v1935, %v1951
  %1955 = vrot.lane.b32.xlu0 %v1953, 32
  %v1956 = vpop.permute.xlu0 %1955
  %1959 = vrot.lane.b32.xlu0 %v1855, 64
  %v1960 = vpop.permute.xlu0 %1959
  %v1962 = vsel %vm611, %v1956, %v1960
  %v1964 = vsel %vm738, %v1962, 0
  %1966 = vmatprep.subr.mxu0 0.0
  %1967 = vmatpush1.msra.mxu0 %v723
  %1968 = vmatprep.subr.mxu0 0.0
  %1969 = vmatpush1.msra.mxu0 %v724
  %1970 = vmatprep.subr.mxu0 0.0
  %1971 = vmatpush1.msra.mxu0 %v725
  %1972 = vmatprep.subr.mxu0 0.0
  %1973 = vmatpush1.msra.mxu0 %v726
  %1974 = vmatprep.subr.mxu0 0.0
  %1975 = vmatpush1.msra.mxu0 %v727
  %1976 = vmatprep.subr.mxu0 0.0
  %1977 = vmatpush1.msra.mxu0 %v728
  %1978 = vmatprep.subr.mxu0 0.0
  %1979 = vmatpush1.msra.mxu0 %v729
  %1980 = vmatprep.subr.mxu0 0.0
  %1981 = vmatpush1.msra.mxu0 %v730
  %1982 = vmatprep.subr.mxu0 0.0
  %1983 = vmatpush1.msra.mxu0 0.0
  %1984 = vmatprep.subr.mxu0 0.0
  %1985 = vmatpush1.msra.mxu0 0.0
  %1986 = vmatprep.subr.mxu0 0.0
  %1987 = vmatpush1.msra.mxu0 0.0
  %1988 = vmatprep.subr.mxu0 0.0
  %1989 = vmatpush1.msra.mxu0 0.0
  %1990 = vmatprep.subr.mxu0 0.0
  %1991 = vmatpush1.msra.mxu0 0.0
  %1992 = vmatprep.subr.mxu0 0.0
  %1993 = vmatpush1.msra.mxu0 0.0
  %1994 = vmatprep.subr.mxu0 0.0
  %1995 = vmatpush1.msra.mxu0 0.0
  %1996 = vmatprep.subr.mxu0 0.0
  %1997 = vmatpush1.msra.mxu0 0.0
  %1998 = vmatprep.subr.mxu0 0.0
  %1999 = vmatpush1.msra.mxu0 0.0
  %2000 = vmatprep.subr.mxu0 0.0
  %2001 = vmatpush1.msra.mxu0 0.0
  %2002 = vmatprep.subr.mxu0 0.0
  %2003 = vmatpush1.msra.mxu0 0.0
  %2004 = vmatprep.subr.mxu0 0.0
  %2005 = vmatpush1.msra.mxu0 0.0
  %2006 = vmatprep.subr.mxu0 0.0
  %2007 = vmatpush1.msra.mxu0 0.0
  %2008 = vmatprep.subr.mxu0 0.0
  %2009 = vmatpush1.msra.mxu0 0.0
  %2010 = vmatprep.subr.mxu0 0.0
  %2011 = vmatpush1.msra.mxu0 0.0
  %2012 = vmatprep.subr.mxu0 0.0
  %2013 = vmatpush1.msra.mxu0 0.0
  %2014 = vmatprep.subr.mxu0 0.0
  %2015 = vmatpush1.msra.mxu0 0.0
  %2016 = vmatprep.subr.mxu0 0.0
  %2017 = vmatpush1.msra.mxu0 0.0
  %2018 = vmatprep.subr.mxu0 0.0
  %2019 = vmatpush1.msra.mxu0 0.0
  %2020 = vmatprep.subr.mxu0 0.0
  %2021 = vmatpush1.msra.mxu0 0.0
  %2022 = vmatprep.subr.mxu0 0.0
  %2023 = vmatpush1.msra.mxu0 0.0
  %2024 = vmatprep.subr.mxu0 0.0
  %2025 = vmatpush1.msra.mxu0 0.0
  %2026 = vmatprep.subr.mxu0 0.0
  %2027 = vmatpush1.msra.mxu0 0.0
  %2028 = vmatprep.subr.mxu0 0.0
  %2029 = vmatpush1.msra.mxu0 0.0
  %2030 = vmatprep.mubr.f32.mxu0 0.0
  %2031 = vmatmul.mubr.f32.gmra.mrb[0].mxu0 %v1964
  %v2032 = vpop.f32.mrb[0].mxu0
  %v2033 = vadd.f32 %v736, %v2032
  %v2034 = vpop.f32.mrb[0].mxu0
  %2035 = vdwg.mxu0
  %v2036 = vxor.u32 %v2033, 2147483648
  %v2037 = vmul.f32 %v2036, 1.442695
  %v2038 = vpow.pop %v2037
  %v2039 = vadd.f32 %v2038, 1.0
  %v2040 = vrcp.pop %v2039
  %v2041 = vmul.f32 1.0, %v2040
  %v2042 = vtanh.pop %v2033
  %v2043 = vmul.f32 %v2041, %v1849
  %2045 = vrot.lane.b32.xlu0 %v2042, 64
  %v2046 = vpop.permute.xlu0 %2045
  %v2048 = vmul.f32 %v2041, %v2046
  %2050 = vrot.lane.b32.xlu0 %v2048, 32
  %v2051 = vpop.permute.xlu0 %2050
  %v2053 = vadd.f32 %v2043, %v2051
  %v2054 = vtanh.pop %v2053
  %2056 = vrot.lane.b32.xlu0 %v2054, 64
  %v2057 = vpop.permute.xlu0 %2056
  %v2059 = vmul.f32 %v2041, %v2057
  %v2060 = vsel %vm611, %v1956, 0
  %2062 = vmatprep.subr.mxu0 0.0
  %2063 = vmatpush1.msra.mxu0 %v607
  %2064 = vmatprep.subr.mxu0 0.0
  %2065 = vmatpush1.msra.mxu0 %v608
  %2066 = vmatprep.subr.mxu0 0.0
  %2067 = vmatpush1.msra.mxu0 %v609
  %2068 = vmatprep.subr.mxu0 0.0
  %2069 = vmatpush1.msra.mxu0 %v610
  %2070 = vmatprep.subr.mxu0 0.0
  %2071 = vmatpush1.msra.mxu0 0.0
  %2072 = vmatprep.subr.mxu0 0.0
  %2073 = vmatpush1.msra.mxu0 0.0
  %2074 = vmatprep.subr.mxu0 0.0
  %2075 = vmatpush1.msra.mxu0 0.0
  %2076 = vmatprep.subr.mxu0 0.0
  %2077 = vmatpush1.msra.mxu0 0.0
  %2078 = vmatprep.subr.mxu0 0.0
  %2079 = vmatpush1.msra.mxu0 0.0
  %2080 = vmatprep.subr.mxu0 0.0
  %2081 = vmatpush1.msra.mxu0 0.0
  %2082 = vmatprep.subr.mxu0 0.0
  %2083 = vmatpush1.msra.mxu0 0.0
  %2084 = vmatprep.subr.mxu0 0.0
  %2085 = vmatpush1.msra.mxu0 0.0
  %2086 = vmatprep.subr.mxu0 0.0
  %2087 = vmatpush1.msra.mxu0 0.0
  %2088 = vmatprep.subr.mxu0 0.0
  %2089 = vmatpush1.msra.mxu0 0.0
  %2090 = vmatprep.subr.mxu0 0.0
  %2091 = vmatpush1.msra.mxu0 0.0
  %2092 = vmatprep.subr.mxu0 0.0
  %2093 = vmatpush1.msra.mxu0 0.0
  %2094 = vmatprep.subr.mxu0 0.0
  %2095 = vmatpush1.msra.mxu0 0.0
  %2096 = vmatprep.subr.mxu0 0.0
  %2097 = vmatpush1.msra.mxu0 0.0
  %2098 = vmatprep.subr.mxu0 0.0
  %2099 = vmatpush1.msra.mxu0 0.0
  %2100 = vmatprep.subr.mxu0 0.0
  %2101 = vmatpush1.msra.mxu0 0.0
  %2102 = vmatprep.subr.mxu0 0.0
  %2103 = vmatpush1.msra.mxu0 0.0
  %2104 = vmatprep.subr.mxu0 0.0
  %2105 = vmatpush1.msra.mxu0 0.0
  %2106 = vmatprep.subr.mxu0 0.0
  %2107 = vmatpush1.msra.mxu0 0.0
  %2108 = vmatprep.subr.mxu0 0.0
  %2109 = vmatpush1.msra.mxu0 0.0
  %2110 = vmatprep.subr.mxu0 0.0
  %2111 = vmatpush1.msra.mxu0 0.0
  %2112 = vmatprep.subr.mxu0 0.0
  %2113 = vmatpush1.msra.mxu0 0.0
  %2114 = vmatprep.subr.mxu0 0.0
  %2115 = vmatpush1.msra.mxu0 0.0
  %2116 = vmatprep.subr.mxu0 0.0
  %2117 = vmatpush1.msra.mxu0 0.0
  %2118 = vmatprep.subr.mxu0 0.0
  %2119 = vmatpush1.msra.mxu0 0.0
  %2120 = vmatprep.subr.mxu0 0.0
  %2121 = vmatpush1.msra.mxu0 0.0
  %2122 = vmatprep.subr.mxu0 0.0
  %2123 = vmatpush1.msra.mxu0 0.0
  %2124 = vmatprep.subr.mxu0 0.0
  %2125 = vmatpush1.msra.mxu0 0.0
  %2126 = vmatprep.mubr.f32.mxu0 0.0
  %2127 = vmatmul.mubr.f32.gmra.mrb[0].mxu0 %v2060
  %v2128 = vpop.f32.mrb[0].mxu0
  %v2129 = vadd.f32 0.0, %v2128
  %v2130 = vpop.f32.mrb[0].mxu0
  %2131 = vdwg.mxu0
  %v2132 = vadd.f32 %v404, %v2129
  %v2133 = vadd.f32 %v2132, %v691
  %v2134 = vxor.u32 %v2133, 2147483648
  %v2135 = vmul.f32 %v2134, 1.442695
  %v2136 = vpow.pop %v2135
  %v2137 = vadd.f32 %v2136, 1.0
  %v2138 = vrcp.pop %v2137
  %v2139 = vmul.f32 1.0, %v2138
  %v2140 = vtanh.pop %v2133
  %v2141 = vmul.f32 %v2139, %v1947
  %2143 = vrot.lane.b32.xlu0 %v2140, 64
  %v2144 = vpop.permute.xlu0 %2143
  %v2146 = vmul.f32 %v2139, %v2144
  %2148 = vrot.lane.b32.xlu0 %v2146, 32
  %v2149 = vpop.permute.xlu0 %2148
  %v2151 = vadd.f32 %v2141, %v2149
  %v2152 = vtanh.pop %v2151
  %2154 = vrot.lane.b32.xlu0 %v2152, 64
  %v2155 = vpop.permute.xlu0 %2154
  %v2157 = vmul.f32 %v2139, %v2155
  %2159 = vrot.lane.b32.xlu0 %v2157, 32
  %v2160 = vpop.permute.xlu0 %2159
  %2163 = vrot.lane.b32.xlu0 %v2059, 64
  %v2164 = vpop.permute.xlu0 %2163
  %v2166 = vsel %vm611, %v2160, %v2164
  %v2168 = vsel %vm738, %v2166, 0
  %2170 = vmatprep.subr.mxu0 0.0
  %2171 = vmatpush1.msra.mxu0 %v723
  %2172 = vmatprep.subr.mxu0 0.0
  %2173 = vmatpush1.msra.mxu0 %v724
  %2174 = vmatprep.subr.mxu0 0.0
  %2175 = vmatpush1.msra.mxu0 %v725
  %2176 = vmatprep.subr.mxu0 0.0
  %2177 = vmatpush1.msra.mxu0 %v726
  %2178 = vmatprep.subr.mxu0 0.0
  %2179 = vmatpush1.msra.mxu0 %v727
  %2180 = vmatprep.subr.mxu0 0.0
  %2181 = vmatpush1.msra.mxu0 %v728
  %2182 = vmatprep.subr.mxu0 0.0
  %2183 = vmatpush1.msra.mxu0 %v729
  %2184 = vmatprep.subr.mxu0 0.0
  %2185 = vmatpush1.msra.mxu0 %v730
  %2186 = vmatprep.subr.mxu0 0.0
  %2187 = vmatpush1.msra.mxu0 0.0
  %2188 = vmatprep.subr.mxu0 0.0
  %2189 = vmatpush1.msra.mxu0 0.0
  %2190 = vmatprep.subr.mxu0 0.0
  %2191 = vmatpush1.msra.mxu0 0.0
  %2192 = vmatprep.subr.mxu0 0.0
  %2193 = vmatpush1.msra.mxu0 0.0
  %2194 = vmatprep.subr.mxu0 0.0
  %2195 = vmatpush1.msra.mxu0 0.0
  %2196 = vmatprep.subr.mxu0 0.0
  %2197 = vmatpush1.msra.mxu0 0.0
  %2198 = vmatprep.subr.mxu0 0.0
  %2199 = vmatpush1.msra.mxu0 0.0
  %2200 = vmatprep.subr.mxu0 0.0
  %2201 = vmatpush1.msra.mxu0 0.0
  %2202 = vmatprep.subr.mxu0 0.0
  %2203 = vmatpush1.msra.mxu0 0.0
  %2204 = vmatprep.subr.mxu0 0.0
  %2205 = vmatpush1.msra.mxu0 0.0
  %2206 = vmatprep.subr.mxu0 0.0
  %2207 = vmatpush1.msra.mxu0 0.0
  %2208 = vmatprep.subr.mxu0 0.0
  %2209 = vmatpush1.msra.mxu0 0.0
  %2210 = vmatprep.subr.mxu0 0.0
  %2211 = vmatpush1.msra.mxu0 0.0
  %2212 = vmatprep.subr.mxu0 0.0
  %2213 = vmatpush1.msra.mxu0 0.0
  %2214 = vmatprep.subr.mxu0 0.0
  %2215 = vmatpush1.msra.mxu0 0.0
  %2216 = vmatprep.subr.mxu0 0.0
  %2217 = vmatpush1.msra.mxu0 0.0
  %2218 = vmatprep.subr.mxu0 0.0
  %2219 = vmatpush1.msra.mxu0 0.0
  %2220 = vmatprep.subr.mxu0 0.0
  %2221 = vmatpush1.msra.mxu0 0.0
  %2222 = vmatprep.subr.mxu0 0.0
  %2223 = vmatpush1.msra.mxu0 0.0
  %2224 = vmatprep.subr.mxu0 0.0
  %2225 = vmatpush1.msra.mxu0 0.0
  %2226 = vmatprep.subr.mxu0 0.0
  %2227 = vmatpush1.msra.mxu0 0.0
  %2228 = vmatprep.subr.mxu0 0.0
  %2229 = vmatpush1.msra.mxu0 0.0
  %2230 = vmatprep.subr.mxu0 0.0
  %2231 = vmatpush1.msra.mxu0 0.0
  %2232 = vmatprep.subr.mxu0 0.0
  %2233 = vmatpush1.msra.mxu0 0.0
  %2234 = vmatprep.mubr.f32.mxu0 0.0
  %2235 = vmatmul.mubr.f32.gmra.mrb[0].mxu0 %v2168
  %v2236 = vpop.f32.mrb[0].mxu0
  %v2237 = vadd.f32 %v736, %v2236
  %v2238 = vpop.f32.mrb[0].mxu0
  %2239 = vdwg.mxu0
  %v2240 = vxor.u32 %v2237, 2147483648
  %v2241 = vmul.f32 %v2240, 1.442695
  %v2242 = vpow.pop %v2241
  %v2243 = vadd.f32 %v2242, 1.0
  %v2244 = vrcp.pop %v2243
  %v2245 = vmul.f32 1.0, %v2244
  %v2246 = vtanh.pop %v2237
  %v2247 = vmul.f32 %v2245, %v2053
  %2249 = vrot.lane.b32.xlu0 %v2246, 64
  %v2250 = vpop.permute.xlu0 %2249
  %v2252 = vmul.f32 %v2245, %v2250
  %2254 = vrot.lane.b32.xlu0 %v2252, 32
  %v2255 = vpop.permute.xlu0 %2254
  %v2257 = vadd.f32 %v2247, %v2255
  %v2258 = vtanh.pop %v2257
  %2260 = vrot.lane.b32.xlu0 %v2258, 64
  %v2261 = vpop.permute.xlu0 %2260
  %v2263 = vmul.f32 %v2245, %v2261
  %v2264 = vmax.f32 %v2157, -50.0
  %v2265 = vmin.f32 %v2264, 50.0
  %v2266 = vmax.f32 %v2263, -50.0
  %v2267 = vmin.f32 %v2266, 50.0
  %v2268 = vmax.f32 %v2151, -50.0
  %v2269 = vmin.f32 %v2268, 50.0
  %v2270 = vmax.f32 %v2257, -50.0
  %v2271 = vmin.f32 %v2270, 50.0
  %v2272 = vld [vmem:[%s8 + $0x10] sm:$0xff]
  %v2273 = vld [vmem:[%s8 + $0x18] sm:$0xff]
  %v2274 = vld [vmem:[%s8 + $0x20] sm:$0xff]
  %v2275 = vld [vmem:[%s8 + $0x28] sm:$0xff]
  %2277 = vrot.lane.b32.xlu0 %v2265, 32
  %v2278 = vpop.permute.xlu0 %2277
  %v2279 = vsel %vm611, %v2278, 0
  %2281 = vmatprep.subr.mxu0 0.0
  %2282 = vmatpush1.msra.mxu0 %v2272
  %2283 = vmatprep.subr.mxu0 0.0
  %2284 = vmatpush1.msra.mxu0 %v2273
  %2285 = vmatprep.subr.mxu0 0.0
  %2286 = vmatpush1.msra.mxu0 %v2274
  %2287 = vmatprep.subr.mxu0 0.0
  %2288 = vmatpush1.msra.mxu0 %v2275
  %2289 = vmatprep.subr.mxu0 0.0
  %2290 = vmatpush1.msra.mxu0 0.0
  %2291 = vmatprep.subr.mxu0 0.0
  %2292 = vmatpush1.msra.mxu0 0.0
  %2293 = vmatprep.subr.mxu0 0.0
  %2294 = vmatpush1.msra.mxu0 0.0
  %2295 = vmatprep.subr.mxu0 0.0
  %2296 = vmatpush1.msra.mxu0 0.0
  %2297 = vmatprep.subr.mxu0 0.0
  %2298 = vmatpush1.msra.mxu0 0.0
  %2299 = vmatprep.subr.mxu0 0.0
  %2300 = vmatpush1.msra.mxu0 0.0
  %2301 = vmatprep.subr.mxu0 0.0
  %2302 = vmatpush1.msra.mxu0 0.0
  %2303 = vmatprep.subr.mxu0 0.0
  %2304 = vmatpush1.msra.mxu0 0.0
  %2305 = vmatprep.subr.mxu0 0.0
  %2306 = vmatpush1.msra.mxu0 0.0
  %2307 = vmatprep.subr.mxu0 0.0
  %2308 = vmatpush1.msra.mxu0 0.0
  %2309 = vmatprep.subr.mxu0 0.0
  %2310 = vmatpush1.msra.mxu0 0.0
  %2311 = vmatprep.subr.mxu0 0.0
  %2312 = vmatpush1.msra.mxu0 0.0
  %2313 = vmatprep.subr.mxu0 0.0
  %2314 = vmatpush1.msra.mxu0 0.0
  %2315 = vmatprep.subr.mxu0 0.0
  %2316 = vmatpush1.msra.mxu0 0.0
  %2317 = vmatprep.subr.mxu0 0.0
  %2318 = vmatpush1.msra.mxu0 0.0
  %2319 = vmatprep.subr.mxu0 0.0
  %2320 = vmatpush1.msra.mxu0 0.0
  %2321 = vmatprep.subr.mxu0 0.0
  %2322 = vmatpush1.msra.mxu0 0.0
  %2323 = vmatprep.subr.mxu0 0.0
  %2324 = vmatpush1.msra.mxu0 0.0
  %2325 = vmatprep.subr.mxu0 0.0
  %2326 = vmatpush1.msra.mxu0 0.0
  %2327 = vmatprep.subr.mxu0 0.0
  %2328 = vmatpush1.msra.mxu0 0.0
  %2329 = vmatprep.subr.mxu0 0.0
  %2330 = vmatpush1.msra.mxu0 0.0
  %2331 = vmatprep.subr.mxu0 0.0
  %2332 = vmatpush1.msra.mxu0 0.0
  %2333 = vmatprep.subr.mxu0 0.0
  %2334 = vmatpush1.msra.mxu0 0.0
  %2335 = vmatprep.subr.mxu0 0.0
  %2336 = vmatpush1.msra.mxu0 0.0
  %2337 = vmatprep.subr.mxu0 0.0
  %2338 = vmatpush1.msra.mxu0 0.0
  %2339 = vmatprep.subr.mxu0 0.0
  %2340 = vmatpush1.msra.mxu0 0.0
  %2341 = vmatprep.subr.mxu0 0.0
  %2342 = vmatpush1.msra.mxu0 0.0
  %2343 = vmatprep.subr.mxu0 0.0
  %2344 = vmatpush1.msra.mxu0 0.0
  %2345 = vmatprep.mubr.f32.mxu0 0.0
  %2346 = vmatmul.mubr.f32.gmra.mrb[0].mxu0 %v2279
  %v2347 = vpop.f32.mrb[0].mxu0
  %v2348 = vadd.f32 0.0, %v2347
  %v2349 = vpop.f32.mrb[0].mxu0
  %2350 = vdwg.mxu0
  %v2351 = vadd.f32 %v564, %v2348
  %v2352 = vld [vmem:[%s9] sm:$0x1]
  %v2354 = vlaneseq
  %v2355 = vshrl.u32 %v2354, 7
  %v2356 = vsub.s32 0, %v2355
  %v2357 = vrot.slane %v2352, %v2356
  %v2359 = vadd.f32 %v2351, %v2357
  %v2360 = vxor.u32 %v2359, 2147483648
  %v2361 = vmul.f32 %v2360, 1.442695
  %v2362 = vpow.pop %v2361
  %v2363 = vadd.f32 %v2362, 1.0
  %v2364 = vrcp.pop %v2363
  %v2365 = vmul.f32 1.0, %v2364
  %v2366 = vtanh.pop %v2359
  %v2367 = vmul.f32 %v2365, %v2269
  %2369 = vrot.lane.b32.xlu0 %v2366, 64
  %v2370 = vpop.permute.xlu0 %2369
  %v2372 = vmul.f32 %v2365, %v2370
  %2374 = vrot.lane.b32.xlu0 %v2372, 32
  %v2375 = vpop.permute.xlu0 %2374
  %v2377 = vadd.f32 %v2367, %v2375
  %v2378 = vtanh.pop %v2377
  %2380 = vrot.lane.b32.xlu0 %v2378, 64
  %v2381 = vpop.permute.xlu0 %2380
  %v2383 = vmul.f32 %v2365, %v2381
  %2385 = vrot.lane.b32.xlu0 %v2383, 32
  %v2386 = vpop.permute.xlu0 %2385
  %2389 = vrot.lane.b32.xlu0 %v2267, 64
  %v2390 = vpop.permute.xlu0 %2389
  %v2392 = vsel %vm611, %v2386, %v2390
  %v2393 = vld [vmem:[%s10] sm:$0xff]
  %v2394 = vld [vmem:[%s10 + $0x8] sm:$0xff]
  %v2395 = vld [vmem:[%s10 + $0x10] sm:$0xff]
  %v2396 = vld [vmem:[%s10 + $0x18] sm:$0xff]
  %v2397 = vld [vmem:[%s10 + $0x20] sm:$0xff]
  %v2398 = vld [vmem:[%s10 + $0x28] sm:$0xff]
  %v2399 = vld [vmem:[%s10 + $0x30] sm:$0xff]
  %v2400 = vld [vmem:[%s10 + $0x38] sm:$0xff]
  %v2401 = vld [vmem:[%s11] sm:$0x1]
  %v2403 = vlaneseq
  %v2404 = vshrl.u32 %v2403, 7
  %v2405 = vsub.s32 0, %v2404
  %v2406 = vrot.slane %v2401, %v2405
  %v2409 = vsel %vm738, %v2392, 0
  %2411 = vmatprep.subr.mxu0 0.0
  %2412 = vmatpush1.msra.mxu0 %v2393
  %2413 = vmatprep.subr.mxu0 0.0
  %2414 = vmatpush1.msra.mxu0 %v2394
  %2415 = vmatprep.subr.mxu0 0.0
  %2416 = vmatpush1.msra.mxu0 %v2395
  %2417 = vmatprep.subr.mxu0 0.0
  %2418 = vmatpush1.msra.mxu0 %v2396
  %2419 = vmatprep.subr.mxu0 0.0
  %2420 = vmatpush1.msra.mxu0 %v2397
  %2421 = vmatprep.subr.mxu0 0.0
  %2422 = vmatpush1.msra.mxu0 %v2398
  %2423 = vmatprep.subr.mxu0 0.0
  %2424 = vmatpush1.msra.mxu0 %v2399
  %2425 = vmatprep.subr.mxu0 0.0
  %2426 = vmatpush1.msra.mxu0 %v2400
  %2427 = vmatprep.subr.mxu0 0.0
  %2428 = vmatpush1.msra.mxu0 0.0
  %2429 = vmatprep.subr.mxu0 0.0
  %2430 = vmatpush1.msra.mxu0 0.0
  %2431 = vmatprep.subr.mxu0 0.0
  %2432 = vmatpush1.msra.mxu0 0.0
  %2433 = vmatprep.subr.mxu0 0.0
  %2434 = vmatpush1.msra.mxu0 0.0
  %2435 = vmatprep.subr.mxu0 0.0
  %2436 = vmatpush1.msra.mxu0 0.0
  %2437 = vmatprep.subr.mxu0 0.0
  %2438 = vmatpush1.msra.mxu0 0.0
  %2439 = vmatprep.subr.mxu0 0.0
  %2440 = vmatpush1.msra.mxu0 0.0
  %2441 = vmatprep.subr.mxu0 0.0
  %2442 = vmatpush1.msra.mxu0 0.0
  %2443 = vmatprep.subr.mxu0 0.0
  %2444 = vmatpush1.msra.mxu0 0.0
  %2445 = vmatprep.subr.mxu0 0.0
  %2446 = vmatpush1.msra.mxu0 0.0
  %2447 = vmatprep.subr.mxu0 0.0
  %2448 = vmatpush1.msra.mxu0 0.0
  %2449 = vmatprep.subr.mxu0 0.0
  %2450 = vmatpush1.msra.mxu0 0.0
  %2451 = vmatprep.subr.mxu0 0.0
  %2452 = vmatpush1.msra.mxu0 0.0
  %2453 = vmatprep.subr.mxu0 0.0
  %2454 = vmatpush1.msra.mxu0 0.0
  %2455 = vmatprep.subr.mxu0 0.0
  %2456 = vmatpush1.msra.mxu0 0.0
  %2457 = vmatprep.subr.mxu0 0.0
  %2458 = vmatpush1.msra.mxu0 0.0
  %2459 = vmatprep.subr.mxu0 0.0
  %2460 = vmatpush1.msra.mxu0 0.0
  %2461 = vmatprep.subr.mxu0 0.0
  %2462 = vmatpush1.msra.mxu0 0.0
  %2463 = vmatprep.subr.mxu0 0.0
  %2464 = vmatpush1.msra.mxu0 0.0
  %2465 = vmatprep.subr.mxu0 0.0
  %2466 = vmatpush1.msra.mxu0 0.0
  %2467 = vmatprep.subr.mxu0 0.0
  %2468 = vmatpush1.msra.mxu0 0.0
  %2469 = vmatprep.subr.mxu0 0.0
  %2470 = vmatpush1.msra.mxu0 0.0
  %2471 = vmatprep.subr.mxu0 0.0
  %2472 = vmatpush1.msra.mxu0 0.0
  %2473 = vmatprep.subr.mxu0 0.0
  %2474 = vmatpush1.msra.mxu0 0.0
  %2475 = vmatprep.mubr.f32.mxu0 0.0
  %2476 = vmatmul.mubr.f32.gmra.mrb[0].mxu0 %v2409
  %v2477 = vpop.f32.mrb[0].mxu0
  %v2478 = vadd.f32 %v2406, %v2477
  %v2479 = vpop.f32.mrb[0].mxu0
  %2480 = vdwg.mxu0
  %v2481 = vxor.u32 %v2478, 2147483648
  %v2482 = vmul.f32 %v2481, 1.442695
  %v2483 = vpow.pop %v2482
  %v2484 = vadd.f32 %v2483, 1.0
  %v2485 = vrcp.pop %v2484
  %v2486 = vmul.f32 1.0, %v2485
  %v2487 = vtanh.pop %v2478
  %v2488 = vmul.f32 %v2486, %v2271
  %2490 = vrot.lane.b32.xlu0 %v2487, 64
  %v2491 = vpop.permute.xlu0 %2490
  %v2493 = vmul.f32 %v2486, %v2491
  %2495 = vrot.lane.b32.xlu0 %v2493, 32
  %v2496 = vpop.permute.xlu0 %2495
  %v2498 = vadd.f32 %v2488, %v2496
  %v2499 = vtanh.pop %v2498
  %2501 = vrot.lane.b32.xlu0 %v2499, 64
  %v2502 = vpop.permute.xlu0 %2501
  %v2504 = vmul.f32 %v2486, %v2502
  %v2505 = vmax.f32 %v2383, -50.0
  %v2506 = vmin.f32 %v2505, 50.0
  %v2507 = vmax.f32 %v2504, -50.0
  %v2508 = vmin.f32 %v2507, 50.0
  %v2509 = vmax.f32 %v2377, -50.0
  %v2510 = vmin.f32 %v2509, 50.0
  %v2511 = vmax.f32 %v2498, -50.0
  %v2512 = vmin.f32 %v2511, 50.0
  %2514 = vrot.lane.b32.xlu0 %v2506, 32
  %v2515 = vpop.permute.xlu0 %2514
  %v2516 = vsel %vm611, %v2515, 0
  %2518 = vmatprep.subr.mxu0 0.0
  %2519 = vmatpush1.msra.mxu0 %v2272
  %2520 = vmatprep.subr.mxu0 0.0
  %2521 = vmatpush1.msra.mxu0 %v2273
  %2522 = vmatprep.subr.mxu0 0.0
  %2523 = vmatpush1.msra.mxu0 %v2274
  %2524 = vmatprep.subr.mxu0 0.0
  %2525 = vmatpush1.msra.mxu0 %v2275
  %2526 = vmatprep.subr.mxu0 0.0
  %2527 = vmatpush1.msra.mxu0 0.0
  %2528 = vmatprep.subr.mxu0 0.0
  %2529 = vmatpush1.msra.mxu0 0.0
  %2530 = vmatprep.subr.mxu0 0.0
  %2531 = vmatpush1.msra.mxu0 0.0
  %2532 = vmatprep.subr.mxu0 0.0
  %2533 = vmatpush1.msra.mxu0 0.0
  %2534 = vmatprep.subr.mxu0 0.0
  %2535 = vmatpush1.msra.mxu0 0.0
  %2536 = vmatprep.subr.mxu0 0.0
  %2537 = vmatpush1.msra.mxu0 0.0
  %2538 = vmatprep.subr.mxu0 0.0
  %2539 = vmatpush1.msra.mxu0 0.0
  %2540 = vmatprep.subr.mxu0 0.0
  %2541 = vmatpush1.msra.mxu0 0.0
  %2542 = vmatprep.subr.mxu0 0.0
  %2543 = vmatpush1.msra.mxu0 0.0
  %2544 = vmatprep.subr.mxu0 0.0
  %2545 = vmatpush1.msra.mxu0 0.0
  %2546 = vmatprep.subr.mxu0 0.0
  %2547 = vmatpush1.msra.mxu0 0.0
  %2548 = vmatprep.subr.mxu0 0.0
  %2549 = vmatpush1.msra.mxu0 0.0
  %2550 = vmatprep.subr.mxu0 0.0
  %2551 = vmatpush1.msra.mxu0 0.0
  %2552 = vmatprep.subr.mxu0 0.0
  %2553 = vmatpush1.msra.mxu0 0.0
  %2554 = vmatprep.subr.mxu0 0.0
  %2555 = vmatpush1.msra.mxu0 0.0
  %2556 = vmatprep.subr.mxu0 0.0
  %2557 = vmatpush1.msra.mxu0 0.0
  %2558 = vmatprep.subr.mxu0 0.0
  %2559 = vmatpush1.msra.mxu0 0.0
  %2560 = vmatprep.subr.mxu0 0.0
  %2561 = vmatpush1.msra.mxu0 0.0
  %2562 = vmatprep.subr.mxu0 0.0
  %2563 = vmatpush1.msra.mxu0 0.0
  %2564 = vmatprep.subr.mxu0 0.0
  %2565 = vmatpush1.msra.mxu0 0.0
  %2566 = vmatprep.subr.mxu0 0.0
  %2567 = vmatpush1.msra.mxu0 0.0
  %2568 = vmatprep.subr.mxu0 0.0
  %2569 = vmatpush1.msra.mxu0 0.0
  %2570 = vmatprep.subr.mxu0 0.0
  %2571 = vmatpush1.msra.mxu0 0.0
  %2572 = vmatprep.subr.mxu0 0.0
  %2573 = vmatpush1.msra.mxu0 0.0
  %2574 = vmatprep.subr.mxu0 0.0
  %2575 = vmatpush1.msra.mxu0 0.0
  %2576 = vmatprep.subr.mxu0 0.0
  %2577 = vmatpush1.msra.mxu0 0.0
  %2578 = vmatprep.subr.mxu0 0.0
  %2579 = vmatpush1.msra.mxu0 0.0
  %2580 = vmatprep.subr.mxu0 0.0
  %2581 = vmatpush1.msra.mxu0 0.0
  %2582 = vmatprep.mubr.f32.mxu0 0.0
  %2583 = vmatmul.mubr.f32.gmra.mrb[0].mxu0 %v2516
  %v2584 = vpop.f32.mrb[0].mxu0
  %v2585 = vadd.f32 0.0, %v2584
  %v2586 = vpop.f32.mrb[0].mxu0
  %2587 = vdwg.mxu0
  %v2588 = vadd.f32 %v569, %v2585
  %v2589 = vadd.f32 %v2588, %v2357
  %v2590 = vxor.u32 %v2589, 2147483648
  %v2591 = vmul.f32 %v2590, 1.442695
  %v2592 = vpow.pop %v2591
  %v2593 = vadd.f32 %v2592, 1.0
  %v2594 = vrcp.pop %v2593
  %v2595 = vmul.f32 1.0, %v2594
  %v2596 = vtanh.pop %v2589
  %v2597 = vmul.f32 %v2595, %v2510
  %2599 = vrot.lane.b32.xlu0 %v2596, 64
  %v2600 = vpop.permute.xlu0 %2599
  %v2602 = vmul.f32 %v2595, %v2600
  %2604 = vrot.lane.b32.xlu0 %v2602, 32
  %v2605 = vpop.permute.xlu0 %2604
  %v2607 = vadd.f32 %v2597, %v2605
  %v2608 = vtanh.pop %v2607
  %2610 = vrot.lane.b32.xlu0 %v2608, 64
  %v2611 = vpop.permute.xlu0 %2610
  %v2613 = vmul.f32 %v2595, %v2611
  %2615 = vrot.lane.b32.xlu0 %v2613, 32
  %v2616 = vpop.permute.xlu0 %2615
  %2619 = vrot.lane.b32.xlu0 %v2508, 64
  %v2620 = vpop.permute.xlu0 %2619
  %v2622 = vsel %vm611, %v2616, %v2620
  %v2624 = vsel %vm738, %v2622, 0
  %2626 = vmatprep.subr.mxu0 0.0
  %2627 = vmatpush1.msra.mxu0 %v2393
  %2628 = vmatprep.subr.mxu0 0.0
  %2629 = vmatpush1.msra.mxu0 %v2394
  %2630 = vmatprep.subr.mxu0 0.0
  %2631 = vmatpush1.msra.mxu0 %v2395
  %2632 = vmatprep.subr.mxu0 0.0
  %2633 = vmatpush1.msra.mxu0 %v2396
  %2634 = vmatprep.subr.mxu0 0.0
  %2635 = vmatpush1.msra.mxu0 %v2397
  %2636 = vmatprep.subr.mxu0 0.0
  %2637 = vmatpush1.msra.mxu0 %v2398
  %2638 = vmatprep.subr.mxu0 0.0
  %2639 = vmatpush1.msra.mxu0 %v2399
  %2640 = vmatprep.subr.mxu0 0.0
  %2641 = vmatpush1.msra.mxu0 %v2400
  %2642 = vmatprep.subr.mxu0 0.0
  %2643 = vmatpush1.msra.mxu0 0.0
  %2644 = vmatprep.subr.mxu0 0.0
  %2645 = vmatpush1.msra.mxu0 0.0
  %2646 = vmatprep.subr.mxu0 0.0
  %2647 = vmatpush1.msra.mxu0 0.0
  %2648 = vmatprep.subr.mxu0 0.0
  %2649 = vmatpush1.msra.mxu0 0.0
  %2650 = vmatprep.subr.mxu0 0.0
  %2651 = vmatpush1.msra.mxu0 0.0
  %2652 = vmatprep.subr.mxu0 0.0
  %2653 = vmatpush1.msra.mxu0 0.0
  %2654 = vmatprep.subr.mxu0 0.0
  %2655 = vmatpush1.msra.mxu0 0.0
  %2656 = vmatprep.subr.mxu0 0.0
  %2657 = vmatpush1.msra.mxu0 0.0
  %2658 = vmatprep.subr.mxu0 0.0
  %2659 = vmatpush1.msra.mxu0 0.0
  %2660 = vmatprep.subr.mxu0 0.0
  %2661 = vmatpush1.msra.mxu0 0.0
  %2662 = vmatprep.subr.mxu0 0.0
  %2663 = vmatpush1.msra.mxu0 0.0
  %2664 = vmatprep.subr.mxu0 0.0
  %2665 = vmatpush1.msra.mxu0 0.0
  %2666 = vmatprep.subr.mxu0 0.0
  %2667 = vmatpush1.msra.mxu0 0.0
  %2668 = vmatprep.subr.mxu0 0.0
  %2669 = vmatpush1.msra.mxu0 0.0
  %2670 = vmatprep.subr.mxu0 0.0
  %2671 = vmatpush1.msra.mxu0 0.0
  %2672 = vmatprep.subr.mxu0 0.0
  %2673 = vmatpush1.msra.mxu0 0.0
  %2674 = vmatprep.subr.mxu0 0.0
  %2675 = vmatpush1.msra.mxu0 0.0
  %2676 = vmatprep.subr.mxu0 0.0
  %2677 = vmatpush1.msra.mxu0 0.0
  %2678 = vmatprep.subr.mxu0 0.0
  %2679 = vmatpush1.msra.mxu0 0.0
  %2680 = vmatprep.subr.mxu0 0.0
  %2681 = vmatpush1.msra.mxu0 0.0
  %2682 = vmatprep.subr.mxu0 0.0
  %2683 = vmatpush1.msra.mxu0 0.0
  %2684 = vmatprep.subr.mxu0 0.0
  %2685 = vmatpush1.msra.mxu0 0.0
  %2686 = vmatprep.subr.mxu0 0.0
  %2687 = vmatpush1.msra.mxu0 0.0
  %2688 = vmatprep.subr.mxu0 0.0
  %2689 = vmatpush1.msra.mxu0 0.0
  %2690 = vmatprep.mubr.f32.mxu0 0.0
  %2691 = vmatmul.mubr.f32.gmra.mrb[0].mxu0 %v2624
  %v2692 = vpop.f32.mrb[0].mxu0
  %v2693 = vadd.f32 %v2406, %v2692
  %v2694 = vpop.f32.mrb[0].mxu0
  %2695 = vdwg.mxu0
  %v2696 = vxor.u32 %v2693, 2147483648
  %v2697 = vmul.f32 %v2696, 1.442695
  %v2698 = vpow.pop %v2697
  %v2699 = vadd.f32 %v2698, 1.0
  %v2700 = vrcp.pop %v2699
  %v2701 = vmul.f32 1.0, %v2700
  %v2702 = vtanh.pop %v2693
  %v2703 = vmul.f32 %v2701, %v2512
  %2705 = vrot.lane.b32.xlu0 %v2702, 64
  %v2706 = vpop.permute.xlu0 %2705
  %v2708 = vmul.f32 %v2701, %v2706
  %2710 = vrot.lane.b32.xlu0 %v2708, 32
  %v2711 = vpop.permute.xlu0 %2710
  %v2713 = vadd.f32 %v2703, %v2711
  %v2714 = vtanh.pop %v2713
  %2716 = vrot.lane.b32.xlu0 %v2714, 64
  %v2717 = vpop.permute.xlu0 %2716
  %v2719 = vmul.f32 %v2701, %v2717
  %v2720 = vmax.f32 %v2613, -50.0
  %v2721 = vmin.f32 %v2720, 50.0
  %v2722 = vmax.f32 %v2719, -50.0
  %v2723 = vmin.f32 %v2722, 50.0
  %v2724 = vmax.f32 %v2607, -50.0
  %v2725 = vmin.f32 %v2724, 50.0
  %v2726 = vmax.f32 %v2713, -50.0
  %v2727 = vmin.f32 %v2726, 50.0
  %2729 = vrot.lane.b32.xlu0 %v2721, 32
  %v2730 = vpop.permute.xlu0 %2729
  %v2731 = vsel %vm611, %v2730, 0
  %2733 = vmatprep.subr.mxu0 0.0
  %2734 = vmatpush1.msra.mxu0 %v2272
  %2735 = vmatprep.subr.mxu0 0.0
  %2736 = vmatpush1.msra.mxu0 %v2273
  %2737 = vmatprep.subr.mxu0 0.0
  %2738 = vmatpush1.msra.mxu0 %v2274
  %2739 = vmatprep.subr.mxu0 0.0
  %2740 = vmatpush1.msra.mxu0 %v2275
  %2741 = vmatprep.subr.mxu0 0.0
  %2742 = vmatpush1.msra.mxu0 0.0
  %2743 = vmatprep.subr.mxu0 0.0
  %2744 = vmatpush1.msra.mxu0 0.0
  %2745 = vmatprep.subr.mxu0 0.0
  %2746 = vmatpush1.msra.mxu0 0.0
  %2747 = vmatprep.subr.mxu0 0.0
  %2748 = vmatpush1.msra.mxu0 0.0
  %2749 = vmatprep.subr.mxu0 0.0
  %2750 = vmatpush1.msra.mxu0 0.0
  %2751 = vmatprep.subr.mxu0 0.0
  %2752 = vmatpush1.msra.mxu0 0.0
  %2753 = vmatprep.subr.mxu0 0.0
  %2754 = vmatpush1.msra.mxu0 0.0
  %2755 = vmatprep.subr.mxu0 0.0
  %2756 = vmatpush1.msra.mxu0 0.0
  %2757 = vmatprep.subr.mxu0 0.0
  %2758 = vmatpush1.msra.mxu0 0.0
  %2759 = vmatprep.subr.mxu0 0.0
  %2760 = vmatpush1.msra.mxu0 0.0
  %2761 = vmatprep.subr.mxu0 0.0
  %2762 = vmatpush1.msra.mxu0 0.0
  %2763 = vmatprep.subr.mxu0 0.0
  %2764 = vmatpush1.msra.mxu0 0.0
  %2765 = vmatprep.subr.mxu0 0.0
  %2766 = vmatpush1.msra.mxu0 0.0
  %2767 = vmatprep.subr.mxu0 0.0
  %2768 = vmatpush1.msra.mxu0 0.0
  %2769 = vmatprep.subr.mxu0 0.0
  %2770 = vmatpush1.msra.mxu0 0.0
  %2771 = vmatprep.subr.mxu0 0.0
  %2772 = vmatpush1.msra.mxu0 0.0
  %2773 = vmatprep.subr.mxu0 0.0
  %2774 = vmatpush1.msra.mxu0 0.0
  %2775 = vmatprep.subr.mxu0 0.0
  %2776 = vmatpush1.msra.mxu0 0.0
  %2777 = vmatprep.subr.mxu0 0.0
  %2778 = vmatpush1.msra.mxu0 0.0
  %2779 = vmatprep.subr.mxu0 0.0
  %2780 = vmatpush1.msra.mxu0 0.0
  %2781 = vmatprep.subr.mxu0 0.0
  %2782 = vmatpush1.msra.mxu0 0.0
  %2783 = vmatprep.subr.mxu0 0.0
  %2784 = vmatpush1.msra.mxu0 0.0
  %2785 = vmatprep.subr.mxu0 0.0
  %2786 = vmatpush1.msra.mxu0 0.0
  %2787 = vmatprep.subr.mxu0 0.0
  %2788 = vmatpush1.msra.mxu0 0.0
  %2789 = vmatprep.subr.mxu0 0.0
  %2790 = vmatpush1.msra.mxu0 0.0
  %2791 = vmatprep.subr.mxu0 0.0
  %2792 = vmatpush1.msra.mxu0 0.0
  %2793 = vmatprep.subr.mxu0 0.0
  %2794 = vmatpush1.msra.mxu0 0.0
  %2795 = vmatprep.subr.mxu0 0.0
  %2796 = vmatpush1.msra.mxu0 0.0
  %2797 = vmatprep.mubr.f32.mxu0 0.0
  %2798 = vmatmul.mubr.f32.gmra.mrb[0].mxu0 %v2731
  %v2799 = vpop.f32.mrb[0].mxu0
  %v2800 = vadd.f32 0.0, %v2799
  %v2801 = vpop.f32.mrb[0].mxu0
  %2802 = vdwg.mxu0
  %v2803 = vadd.f32 %v574, %v2800
  %v2804 = vadd.f32 %v2803, %v2357
  %v2805 = vxor.u32 %v2804, 2147483648
  %v2806 = vmul.f32 %v2805, 1.442695
  %v2807 = vpow.pop %v2806
  %v2808 = vadd.f32 %v2807, 1.0
  %v2809 = vrcp.pop %v2808
  %v2810 = vmul.f32 1.0, %v2809
  %v2811 = vtanh.pop %v2804
  %v2812 = vmul.f32 %v2810, %v2725
  %2814 = vrot.lane.b32.xlu0 %v2811, 64
  %v2815 = vpop.permute.xlu0 %2814
  %v2817 = vmul.f32 %v2810, %v2815
  %2819 = vrot.lane.b32.xlu0 %v2817, 32
  %v2820 = vpop.permute.xlu0 %2819
  %v2822 = vadd.f32 %v2812, %v2820
  %v2823 = vtanh.pop %v2822
  %2825 = vrot.lane.b32.xlu0 %v2823, 64
  %v2826 = vpop.permute.xlu0 %2825
  %v2828 = vmul.f32 %v2810, %v2826
  %2830 = vrot.lane.b32.xlu0 %v2828, 32
  %v2831 = vpop.permute.xlu0 %2830
  %2834 = vrot.lane.b32.xlu0 %v2723, 64
  %v2835 = vpop.permute.xlu0 %2834
  %v2837 = vsel %vm611, %v2831, %v2835
  %v2839 = vsel %vm738, %v2837, 0
  %2841 = vmatprep.subr.mxu0 0.0
  %2842 = vmatpush1.msra.mxu0 %v2393
  %2843 = vmatprep.subr.mxu0 0.0
  %2844 = vmatpush1.msra.mxu0 %v2394
  %2845 = vmatprep.subr.mxu0 0.0
  %2846 = vmatpush1.msra.mxu0 %v2395
  %2847 = vmatprep.subr.mxu0 0.0
  %2848 = vmatpush1.msra.mxu0 %v2396
  %2849 = vmatprep.subr.mxu0 0.0
  %2850 = vmatpush1.msra.mxu0 %v2397
  %2851 = vmatprep.subr.mxu0 0.0
  %2852 = vmatpush1.msra.mxu0 %v2398
  %2853 = vmatprep.subr.mxu0 0.0
  %2854 = vmatpush1.msra.mxu0 %v2399
  %2855 = vmatprep.subr.mxu0 0.0
  %2856 = vmatpush1.msra.mxu0 %v2400
  %2857 = vmatprep.subr.mxu0 0.0
  %2858 = vmatpush1.msra.mxu0 0.0
  %2859 = vmatprep.subr.mxu0 0.0
  %2860 = vmatpush1.msra.mxu0 0.0
  %2861 = vmatprep.subr.mxu0 0.0
  %2862 = vmatpush1.msra.mxu0 0.0
  %2863 = vmatprep.subr.mxu0 0.0
  %2864 = vmatpush1.msra.mxu0 0.0
  %2865 = vmatprep.subr.mxu0 0.0
  %2866 = vmatpush1.msra.mxu0 0.0
  %2867 = vmatprep.subr.mxu0 0.0
  %2868 = vmatpush1.msra.mxu0 0.0
  %2869 = vmatprep.subr.mxu0 0.0
  %2870 = vmatpush1.msra.mxu0 0.0
  %2871 = vmatprep.subr.mxu0 0.0
  %2872 = vmatpush1.msra.mxu0 0.0
  %2873 = vmatprep.subr.mxu0 0.0
  %2874 = vmatpush1.msra.mxu0 0.0
  %2875 = vmatprep.subr.mxu0 0.0
  %2876 = vmatpush1.msra.mxu0 0.0
  %2877 = vmatprep.subr.mxu0 0.0
  %2878 = vmatpush1.msra.mxu0 0.0
  %2879 = vmatprep.subr.mxu0 0.0
  %2880 = vmatpush1.msra.mxu0 0.0
  %2881 = vmatprep.subr.mxu0 0.0
  %2882 = vmatpush1.msra.mxu0 0.0
  %2883 = vmatprep.subr.mxu0 0.0
  %2884 = vmatpush1.msra.mxu0 0.0
  %2885 = vmatprep.subr.mxu0 0.0
  %2886 = vmatpush1.msra.mxu0 0.0
  %2887 = vmatprep.subr.mxu0 0.0
  %2888 = vmatpush1.msra.mxu0 0.0
  %2889 = vmatprep.subr.mxu0 0.0
  %2890 = vmatpush1.msra.mxu0 0.0
  %2891 = vmatprep.subr.mxu0 0.0
  %2892 = vmatpush1.msra.mxu0 0.0
  %2893 = vmatprep.subr.mxu0 0.0
  %2894 = vmatpush1.msra.mxu0 0.0
  %2895 = vmatprep.subr.mxu0 0.0
  %2896 = vmatpush1.msra.mxu0 0.0
  %2897 = vmatprep.subr.mxu0 0.0
  %2898 = vmatpush1.msra.mxu0 0.0
  %2899 = vmatprep.subr.mxu0 0.0
  %2900 = vmatpush1.msra.mxu0 0.0
  %2901 = vmatprep.subr.mxu0 0.0
  %2902 = vmatpush1.msra.mxu0 0.0
  %2903 = vmatprep.subr.mxu0 0.0
  %2904 = vmatpush1.msra.mxu0 0.0
  %2905 = vmatprep.mubr.f32.mxu0 0.0
  %2906 = vmatmul.mubr.f32.gmra.mrb[0].mxu0 %v2839
  %v2907 = vpop.f32.mrb[0].mxu0
  %v2908 = vadd.f32 %v2406, %v2907
  %v2909 = vpop.f32.mrb[0].mxu0
  %2910 = vdwg.mxu0
  %v2911 = vxor.u32 %v2908, 2147483648
  %v2912 = vmul.f32 %v2911, 1.442695
  %v2913 = vpow.pop %v2912
  %v2914 = vadd.f32 %v2913, 1.0
  %v2915 = vrcp.pop %v2914
  %v2916 = vmul.f32 1.0, %v2915
  %v2917 = vtanh.pop %v2908
  %v2918 = vmul.f32 %v2916, %v2727
  %2920 = vrot.lane.b32.xlu0 %v2917, 64
  %v2921 = vpop.permute.xlu0 %2920
  %v2923 = vmul.f32 %v2916, %v2921
  %2925 = vrot.lane.b32.xlu0 %v2923, 32
  %v2926 = vpop.permute.xlu0 %2925
  %v2928 = vadd.f32 %v2918, %v2926
  %v2929 = vtanh.pop %v2928
  %2931 = vrot.lane.b32.xlu0 %v2929, 64
  %v2932 = vpop.permute.xlu0 %2931
  %v2934 = vmul.f32 %v2916, %v2932
  %v2935 = vmax.f32 %v2828, -50.0
  %v2936 = vmin.f32 %v2935, 50.0
  %v2937 = vmax.f32 %v2934, -50.0
  %v2938 = vmin.f32 %v2937, 50.0
  %v2939 = vmax.f32 %v2822, -50.0
  %v2940 = vmin.f32 %v2939, 50.0
  %v2941 = vmax.f32 %v2928, -50.0
  %v2942 = vmin.f32 %v2941, 50.0
  %2944 = vrot.lane.b32.xlu0 %v2936, 32
  %v2945 = vpop.permute.xlu0 %2944
  %v2946 = vsel %vm611, %v2945, 0
  %2948 = vmatprep.subr.mxu0 0.0
  %2949 = vmatpush1.msra.mxu0 %v2272
  %2950 = vmatprep.subr.mxu0 0.0
  %2951 = vmatpush1.msra.mxu0 %v2273
  %2952 = vmatprep.subr.mxu0 0.0
  %2953 = vmatpush1.msra.mxu0 %v2274
  %2954 = vmatprep.subr.mxu0 0.0
  %2955 = vmatpush1.msra.mxu0 %v2275
  %2956 = vmatprep.subr.mxu0 0.0
  %2957 = vmatpush1.msra.mxu0 0.0
  %2958 = vmatprep.subr.mxu0 0.0
  %2959 = vmatpush1.msra.mxu0 0.0
  %2960 = vmatprep.subr.mxu0 0.0
  %2961 = vmatpush1.msra.mxu0 0.0
  %2962 = vmatprep.subr.mxu0 0.0
  %2963 = vmatpush1.msra.mxu0 0.0
  %2964 = vmatprep.subr.mxu0 0.0
  %2965 = vmatpush1.msra.mxu0 0.0
  %2966 = vmatprep.subr.mxu0 0.0
  %2967 = vmatpush1.msra.mxu0 0.0
  %2968 = vmatprep.subr.mxu0 0.0
  %2969 = vmatpush1.msra.mxu0 0.0
  %2970 = vmatprep.subr.mxu0 0.0
  %2971 = vmatpush1.msra.mxu0 0.0
  %2972 = vmatprep.subr.mxu0 0.0
  %2973 = vmatpush1.msra.mxu0 0.0
  %2974 = vmatprep.subr.mxu0 0.0
  %2975 = vmatpush1.msra.mxu0 0.0
  %2976 = vmatprep.subr.mxu0 0.0
  %2977 = vmatpush1.msra.mxu0 0.0
  %2978 = vmatprep.subr.mxu0 0.0
  %2979 = vmatpush1.msra.mxu0 0.0
  %2980 = vmatprep.subr.mxu0 0.0
  %2981 = vmatpush1.msra.mxu0 0.0
  %2982 = vmatprep.subr.mxu0 0.0
  %2983 = vmatpush1.msra.mxu0 0.0
  %2984 = vmatprep.subr.mxu0 0.0
  %2985 = vmatpush1.msra.mxu0 0.0
  %2986 = vmatprep.subr.mxu0 0.0
  %2987 = vmatpush1.msra.mxu0 0.0
  %2988 = vmatprep.subr.mxu0 0.0
  %2989 = vmatpush1.msra.mxu0 0.0
  %2990 = vmatprep.subr.mxu0 0.0
  %2991 = vmatpush1.msra.mxu0 0.0
  %2992 = vmatprep.subr.mxu0 0.0
  %2993 = vmatpush1.msra.mxu0 0.0
  %2994 = vmatprep.subr.mxu0 0.0
  %2995 = vmatpush1.msra.mxu0 0.0
  %2996 = vmatprep.subr.mxu0 0.0
  %2997 = vmatpush1.msra.mxu0 0.0
  %2998 = vmatprep.subr.mxu0 0.0
  %2999 = vmatpush1.msra.mxu0 0.0
  %3000 = vmatprep.subr.mxu0 0.0
  %3001 = vmatpush1.msra.mxu0 0.0
  %3002 = vmatprep.subr.mxu0 0.0
  %3003 = vmatpush1.msra.mxu0 0.0
  %3004 = vmatprep.subr.mxu0 0.0
  %3005 = vmatpush1.msra.mxu0 0.0
  %3006 = vmatprep.subr.mxu0 0.0
  %3007 = vmatpush1.msra.mxu0 0.0
  %3008 = vmatprep.subr.mxu0 0.0
  %3009 = vmatpush1.msra.mxu0 0.0
  %3010 = vmatprep.subr.mxu0 0.0
  %3011 = vmatpush1.msra.mxu0 0.0
  %3012 = vmatprep.mubr.f32.mxu0 0.0
  %3013 = vmatmul.mubr.f32.gmra.mrb[0].mxu0 %v2946
  %v3014 = vpop.f32.mrb[0].mxu0
  %v3015 = vadd.f32 0.0, %v3014
  %v3016 = vpop.f32.mrb[0].mxu0
  %3017 = vdwg.mxu0
  %v3018 = vadd.f32 %v579, %v3015
  %v3019 = vadd.f32 %v3018, %v2357
  %v3020 = vxor.u32 %v3019, 2147483648
  %v3021 = vmul.f32 %v3020, 1.442695
  %v3022 = vpow.pop %v3021
  %v3023 = vadd.f32 %v3022, 1.0
  %v3024 = vrcp.pop %v3023
  %v3025 = vmul.f32 1.0, %v3024
  %v3026 = vtanh.pop %v3019
  %v3027 = vmul.f32 %v3025, %v2940
  %3029 = vrot.lane.b32.xlu0 %v3026, 64
  %v3030 = vpop.permute.xlu0 %3029
  %v3032 = vmul.f32 %v3025, %v3030
  %3034 = vrot.lane.b32.xlu0 %v3032, 32
  %v3035 = vpop.permute.xlu0 %3034
  %v3037 = vadd.f32 %v3027, %v3035
  %v3038 = vtanh.pop %v3037
  %3040 = vrot.lane.b32.xlu0 %v3038, 64
  %v3041 = vpop.permute.xlu0 %3040
  %v3043 = vmul.f32 %v3025, %v3041
  %3045 = vrot.lane.b32.xlu0 %v3043, 32
  %v3046 = vpop.permute.xlu0 %3045
  %3049 = vrot.lane.b32.xlu0 %v2938, 64
  %v3050 = vpop.permute.xlu0 %3049
  %v3052 = vsel %vm611, %v3046, %v3050
  %v3054 = vsel %vm738, %v3052, 0
  %3056 = vmatprep.subr.mxu0 0.0
  %3057 = vmatpush1.msra.mxu0 %v2393
  %3058 = vmatprep.subr.mxu0 0.0
  %3059 = vmatpush1.msra.mxu0 %v2394
  %3060 = vmatprep.subr.mxu0 0.0
  %3061 = vmatpush1.msra.mxu0 %v2395
  %3062 = vmatprep.subr.mxu0 0.0
  %3063 = vmatpush1.msra.mxu0 %v2396
  %3064 = vmatprep.subr.mxu0 0.0
  %3065 = vmatpush1.msra.mxu0 %v2397
  %3066 = vmatprep.subr.mxu0 0.0
  %3067 = vmatpush1.msra.mxu0 %v2398
  %3068 = vmatprep.subr.mxu0 0.0
  %3069 = vmatpush1.msra.mxu0 %v2399
  %3070 = vmatprep.subr.mxu0 0.0
  %3071 = vmatpush1.msra.mxu0 %v2400
  %3072 = vmatprep.subr.mxu0 0.0
  %3073 = vmatpush1.msra.mxu0 0.0
  %3074 = vmatprep.subr.mxu0 0.0
  %3075 = vmatpush1.msra.mxu0 0.0
  %3076 = vmatprep.subr.mxu0 0.0
  %3077 = vmatpush1.msra.mxu0 0.0
  %3078 = vmatprep.subr.mxu0 0.0
  %3079 = vmatpush1.msra.mxu0 0.0
  %3080 = vmatprep.subr.mxu0 0.0
  %3081 = vmatpush1.msra.mxu0 0.0
  %3082 = vmatprep.subr.mxu0 0.0
  %3083 = vmatpush1.msra.mxu0 0.0
  %3084 = vmatprep.subr.mxu0 0.0
  %3085 = vmatpush1.msra.mxu0 0.0
  %3086 = vmatprep.subr.mxu0 0.0
  %3087 = vmatpush1.msra.mxu0 0.0
  %3088 = vmatprep.subr.mxu0 0.0
  %3089 = vmatpush1.msra.mxu0 0.0
  %3090 = vmatprep.subr.mxu0 0.0
  %3091 = vmatpush1.msra.mxu0 0.0
  %3092 = vmatprep.subr.mxu0 0.0
  %3093 = vmatpush1.msra.mxu0 0.0
  %3094 = vmatprep.subr.mxu0 0.0
  %3095 = vmatpush1.msra.mxu0 0.0
  %3096 = vmatprep.subr.mxu0 0.0
  %3097 = vmatpush1.msra.mxu0 0.0
  %3098 = vmatprep.subr.mxu0 0.0
  %3099 = vmatpush1.msra.mxu0 0.0
  %3100 = vmatprep.subr.mxu0 0.0
  %3101 = vmatpush1.msra.mxu0 0.0
  %3102 = vmatprep.subr.mxu0 0.0
  %3103 = vmatpush1.msra.mxu0 0.0
  %3104 = vmatprep.subr.mxu0 0.0
  %3105 = vmatpush1.msra.mxu0 0.0
  %3106 = vmatprep.subr.mxu0 0.0
  %3107 = vmatpush1.msra.mxu0 0.0
  %3108 = vmatprep.subr.mxu0 0.0
  %3109 = vmatpush1.msra.mxu0 0.0
  %3110 = vmatprep.subr.mxu0 0.0
  %3111 = vmatpush1.msra.mxu0 0.0
  %3112 = vmatprep.subr.mxu0 0.0
  %3113 = vmatpush1.msra.mxu0 0.0
  %3114 = vmatprep.subr.mxu0 0.0
  %3115 = vmatpush1.msra.mxu0 0.0
  %3116 = vmatprep.subr.mxu0 0.0
  %3117 = vmatpush1.msra.mxu0 0.0
  %3118 = vmatprep.subr.mxu0 0.0
  %3119 = vmatpush1.msra.mxu0 0.0
  %3120 = vmatprep.mubr.f32.mxu0 0.0
  %3121 = vmatmul.mubr.f32.gmra.mrb[0].mxu0 %v3054
  %v3122 = vpop.f32.mrb[0].mxu0
  %v3123 = vadd.f32 %v2406, %v3122
  %v3124 = vpop.f32.mrb[0].mxu0
  %3125 = vdwg.mxu0
  %v3126 = vxor.u32 %v3123, 2147483648
  %v3127 = vmul.f32 %v3126, 1.442695
  %v3128 = vpow.pop %v3127
  %v3129 = vadd.f32 %v3128, 1.0
  %v3130 = vrcp.pop %v3129
  %v3131 = vmul.f32 1.0, %v3130
  %v3132 = vtanh.pop %v3123
  %v3133 = vmul.f32 %v3131, %v2942
  %3135 = vrot.lane.b32.xlu0 %v3132, 64
  %v3136 = vpop.permute.xlu0 %3135
  %v3138 = vmul.f32 %v3131, %v3136
  %3140 = vrot.lane.b32.xlu0 %v3138, 32
  %v3141 = vpop.permute.xlu0 %3140
  %v3143 = vadd.f32 %v3133, %v3141
  %v3144 = vtanh.pop %v3143
  %3146 = vrot.lane.b32.xlu0 %v3144, 64
  %v3147 = vpop.permute.xlu0 %3146
  %v3149 = vmul.f32 %v3131, %v3147
  %v3150 = vmax.f32 %v3043, -50.0
  %v3151 = vmin.f32 %v3150, 50.0
  %v3152 = vmax.f32 %v3149, -50.0
  %v3153 = vmin.f32 %v3152, 50.0
  %v3154 = vmax.f32 %v3037, -50.0
  %v3155 = vmin.f32 %v3154, 50.0
  %v3156 = vmax.f32 %v3143, -50.0
  %v3157 = vmin.f32 %v3156, 50.0
  %3159 = vrot.lane.b32.xlu0 %v3151, 32
  %v3160 = vpop.permute.xlu0 %3159
  %v3161 = vsel %vm611, %v3160, 0
  %3163 = vmatprep.subr.mxu0 0.0
  %3164 = vmatpush1.msra.mxu0 %v2272
  %3165 = vmatprep.subr.mxu0 0.0
  %3166 = vmatpush1.msra.mxu0 %v2273
  %3167 = vmatprep.subr.mxu0 0.0
  %3168 = vmatpush1.msra.mxu0 %v2274
  %3169 = vmatprep.subr.mxu0 0.0
  %3170 = vmatpush1.msra.mxu0 %v2275
  %3171 = vmatprep.subr.mxu0 0.0
  %3172 = vmatpush1.msra.mxu0 0.0
  %3173 = vmatprep.subr.mxu0 0.0
  %3174 = vmatpush1.msra.mxu0 0.0
  %3175 = vmatprep.subr.mxu0 0.0
  %3176 = vmatpush1.msra.mxu0 0.0
  %3177 = vmatprep.subr.mxu0 0.0
  %3178 = vmatpush1.msra.mxu0 0.0
  %3179 = vmatprep.subr.mxu0 0.0
  %3180 = vmatpush1.msra.mxu0 0.0
  %3181 = vmatprep.subr.mxu0 0.0
  %3182 = vmatpush1.msra.mxu0 0.0
  %3183 = vmatprep.subr.mxu0 0.0
  %3184 = vmatpush1.msra.mxu0 0.0
  %3185 = vmatprep.subr.mxu0 0.0
  %3186 = vmatpush1.msra.mxu0 0.0
  %3187 = vmatprep.subr.mxu0 0.0
  %3188 = vmatpush1.msra.mxu0 0.0
  %3189 = vmatprep.subr.mxu0 0.0
  %3190 = vmatpush1.msra.mxu0 0.0
  %3191 = vmatprep.subr.mxu0 0.0
  %3192 = vmatpush1.msra.mxu0 0.0
  %3193 = vmatprep.subr.mxu0 0.0
  %3194 = vmatpush1.msra.mxu0 0.0
  %3195 = vmatprep.subr.mxu0 0.0
  %3196 = vmatpush1.msra.mxu0 0.0
  %3197 = vmatprep.subr.mxu0 0.0
  %3198 = vmatpush1.msra.mxu0 0.0
  %3199 = vmatprep.subr.mxu0 0.0
  %3200 = vmatpush1.msra.mxu0 0.0
  %3201 = vmatprep.subr.mxu0 0.0
  %3202 = vmatpush1.msra.mxu0 0.0
  %3203 = vmatprep.subr.mxu0 0.0
  %3204 = vmatpush1.msra.mxu0 0.0
  %3205 = vmatprep.subr.mxu0 0.0
  %3206 = vmatpush1.msra.mxu0 0.0
  %3207 = vmatprep.subr.mxu0 0.0
  %3208 = vmatpush1.msra.mxu0 0.0
  %3209 = vmatprep.subr.mxu0 0.0
  %3210 = vmatpush1.msra.mxu0 0.0
  %3211 = vmatprep.subr.mxu0 0.0
  %3212 = vmatpush1.msra.mxu0 0.0
  %3213 = vmatprep.subr.mxu0 0.0
  %3214 = vmatpush1.msra.mxu0 0.0
  %3215 = vmatprep.subr.mxu0 0.0
  %3216 = vmatpush1.msra.mxu0 0.0
  %3217 = vmatprep.subr.mxu0 0.0
  %3218 = vmatpush1.msra.mxu0 0.0
  %3219 = vmatprep.subr.mxu0 0.0
  %3220 = vmatpush1.msra.mxu0 0.0
  %3221 = vmatprep.subr.mxu0 0.0
  %3222 = vmatpush1.msra.mxu0 0.0
  %3223 = vmatprep.subr.mxu0 0.0
  %3224 = vmatpush1.msra.mxu0 0.0
  %3225 = vmatprep.subr.mxu0 0.0
  %3226 = vmatpush1.msra.mxu0 0.0
  %3227 = vmatprep.mubr.f32.mxu0 0.0
  %3228 = vmatmul.mubr.f32.gmra.mrb[0].mxu0 %v3161
  %v3229 = vpop.f32.mrb[0].mxu0
  %v3230 = vadd.f32 0.0, %v3229
  %v3231 = vpop.f32.mrb[0].mxu0
  %3232 = vdwg.mxu0
  %v3233 = vadd.f32 %v584, %v3230
  %v3234 = vadd.f32 %v3233, %v2357
  %v3235 = vxor.u32 %v3234, 2147483648
  %v3236 = vmul.f32 %v3235, 1.442695
  %v3237 = vpow.pop %v3236
  %v3238 = vadd.f32 %v3237, 1.0
  %v3239 = vrcp.pop %v3238
  %v3240 = vmul.f32 1.0, %v3239
  %v3241 = vtanh.pop %v3234
  %v3242 = vmul.f32 %v3240, %v3155
  %3244 = vrot.lane.b32.xlu0 %v3241, 64
  %v3245 = vpop.permute.xlu0 %3244
  %v3247 = vmul.f32 %v3240, %v3245
  %3249 = vrot.lane.b32.xlu0 %v3247, 32
  %v3250 = vpop.permute.xlu0 %3249
  %v3252 = vadd.f32 %v3242, %v3250
  %v3253 = vtanh.pop %v3252
  %3255 = vrot.lane.b32.xlu0 %v3253, 64
  %v3256 = vpop.permute.xlu0 %3255
  %v3258 = vmul.f32 %v3240, %v3256
  %3260 = vrot.lane.b32.xlu0 %v3258, 32
  %v3261 = vpop.permute.xlu0 %3260
  %3264 = vrot.lane.b32.xlu0 %v3153, 64
  %v3265 = vpop.permute.xlu0 %3264
  %v3267 = vsel %vm611, %v3261, %v3265
  %v3269 = vsel %vm738, %v3267, 0
  %3271 = vmatprep.subr.mxu0 0.0
  %3272 = vmatpush1.msra.mxu0 %v2393
  %3273 = vmatprep.subr.mxu0 0.0
  %3274 = vmatpush1.msra.mxu0 %v2394
  %3275 = vmatprep.subr.mxu0 0.0
  %3276 = vmatpush1.msra.mxu0 %v2395
  %3277 = vmatprep.subr.mxu0 0.0
  %3278 = vmatpush1.msra.mxu0 %v2396
  %3279 = vmatprep.subr.mxu0 0.0
  %3280 = vmatpush1.msra.mxu0 %v2397
  %3281 = vmatprep.subr.mxu0 0.0
  %3282 = vmatpush1.msra.mxu0 %v2398
  %3283 = vmatprep.subr.mxu0 0.0
  %3284 = vmatpush1.msra.mxu0 %v2399
  %3285 = vmatprep.subr.mxu0 0.0
  %3286 = vmatpush1.msra.mxu0 %v2400
  %3287 = vmatprep.subr.mxu0 0.0
  %3288 = vmatpush1.msra.mxu0 0.0
  %3289 = vmatprep.subr.mxu0 0.0
  %3290 = vmatpush1.msra.mxu0 0.0
  %3291 = vmatprep.subr.mxu0 0.0
  %3292 = vmatpush1.msra.mxu0 0.0
  %3293 = vmatprep.subr.mxu0 0.0
  %3294 = vmatpush1.msra.mxu0 0.0
  %3295 = vmatprep.subr.mxu0 0.0
  %3296 = vmatpush1.msra.mxu0 0.0
  %3297 = vmatprep.subr.mxu0 0.0
  %3298 = vmatpush1.msra.mxu0 0.0
  %3299 = vmatprep.subr.mxu0 0.0
  %3300 = vmatpush1.msra.mxu0 0.0
  %3301 = vmatprep.subr.mxu0 0.0
  %3302 = vmatpush1.msra.mxu0 0.0
  %3303 = vmatprep.subr.mxu0 0.0
  %3304 = vmatpush1.msra.mxu0 0.0
  %3305 = vmatprep.subr.mxu0 0.0
  %3306 = vmatpush1.msra.mxu0 0.0
  %3307 = vmatprep.subr.mxu0 0.0
  %3308 = vmatpush1.msra.mxu0 0.0
  %3309 = vmatprep.subr.mxu0 0.0
  %3310 = vmatpush1.msra.mxu0 0.0
  %3311 = vmatprep.subr.mxu0 0.0
  %3312 = vmatpush1.msra.mxu0 0.0
  %3313 = vmatprep.subr.mxu0 0.0
  %3314 = vmatpush1.msra.mxu0 0.0
  %3315 = vmatprep.subr.mxu0 0.0
  %3316 = vmatpush1.msra.mxu0 0.0
  %3317 = vmatprep.subr.mxu0 0.0
  %3318 = vmatpush1.msra.mxu0 0.0
  %3319 = vmatprep.subr.mxu0 0.0
  %3320 = vmatpush1.msra.mxu0 0.0
  %3321 = vmatprep.subr.mxu0 0.0
  %3322 = vmatpush1.msra.mxu0 0.0
  %3323 = vmatprep.subr.mxu0 0.0
  %3324 = vmatpush1.msra.mxu0 0.0
  %3325 = vmatprep.subr.mxu0 0.0
  %3326 = vmatpush1.msra.mxu0 0.0
  %3327 = vmatprep.subr.mxu0 0.0
  %3328 = vmatpush1.msra.mxu0 0.0
  %3329 = vmatprep.subr.mxu0 0.0
  %3330 = vmatpush1.msra.mxu0 0.0
  %3331 = vmatprep.subr.mxu0 0.0
  %3332 = vmatpush1.msra.mxu0 0.0
  %3333 = vmatprep.subr.mxu0 0.0
  %3334 = vmatpush1.msra.mxu0 0.0
  %3335 = vmatprep.mubr.f32.mxu0 0.0
  %3336 = vmatmul.mubr.f32.gmra.mrb[0].mxu0 %v3269
  %v3337 = vpop.f32.mrb[0].mxu0
  %v3338 = vadd.f32 %v2406, %v3337
  %v3339 = vpop.f32.mrb[0].mxu0
  %3340 = vdwg.mxu0
  %v3341 = vxor.u32 %v3338, 2147483648
  %v3342 = vmul.f32 %v3341, 1.442695
  %v3343 = vpow.pop %v3342
  %v3344 = vadd.f32 %v3343, 1.0
  %v3345 = vrcp.pop %v3344
  %v3346 = vmul.f32 1.0, %v3345
  %v3347 = vtanh.pop %v3338
  %v3348 = vmul.f32 %v3346, %v3157
  %3350 = vrot.lane.b32.xlu0 %v3347, 64
  %v3351 = vpop.permute.xlu0 %3350
  %v3353 = vmul.f32 %v3346, %v3351
  %3355 = vrot.lane.b32.xlu0 %v3353, 32
  %v3356 = vpop.permute.xlu0 %3355
  %v3358 = vadd.f32 %v3348, %v3356
  %v3359 = vtanh.pop %v3358
  %3361 = vrot.lane.b32.xlu0 %v3359, 64
  %v3362 = vpop.permute.xlu0 %3361
  %v3364 = vmul.f32 %v3346, %v3362
  %v3365 = vmax.f32 %v3258, -50.0
  %v3366 = vmin.f32 %v3365, 50.0
  %v3367 = vmax.f32 %v3364, -50.0
  %v3368 = vmin.f32 %v3367, 50.0
  %v3369 = vmax.f32 %v3252, -50.0
  %v3370 = vmin.f32 %v3369, 50.0
  %v3371 = vmax.f32 %v3358, -50.0
  %v3372 = vmin.f32 %v3371, 50.0
  %3374 = vrot.lane.b32.xlu0 %v3366, 32
  %v3375 = vpop.permute.xlu0 %3374
  %v3376 = vsel %vm611, %v3375, 0
  %3378 = vmatprep.subr.mxu0 0.0
  %3379 = vmatpush1.msra.mxu0 %v2272
  %3380 = vmatprep.subr.mxu0 0.0
  %3381 = vmatpush1.msra.mxu0 %v2273
  %3382 = vmatprep.subr.mxu0 0.0
  %3383 = vmatpush1.msra.mxu0 %v2274
  %3384 = vmatprep.subr.mxu0 0.0
  %3385 = vmatpush1.msra.mxu0 %v2275
  %3386 = vmatprep.subr.mxu0 0.0
  %3387 = vmatpush1.msra.mxu0 0.0
  %3388 = vmatprep.subr.mxu0 0.0
  %3389 = vmatpush1.msra.mxu0 0.0
  %3390 = vmatprep.subr.mxu0 0.0
  %3391 = vmatpush1.msra.mxu0 0.0
  %3392 = vmatprep.subr.mxu0 0.0
  %3393 = vmatpush1.msra.mxu0 0.0
  %3394 = vmatprep.subr.mxu0 0.0
  %3395 = vmatpush1.msra.mxu0 0.0
  %3396 = vmatprep.subr.mxu0 0.0
  %3397 = vmatpush1.msra.mxu0 0.0
  %3398 = vmatprep.subr.mxu0 0.0
  %3399 = vmatpush1.msra.mxu0 0.0
  %3400 = vmatprep.subr.mxu0 0.0
  %3401 = vmatpush1.msra.mxu0 0.0
  %3402 = vmatprep.subr.mxu0 0.0
  %3403 = vmatpush1.msra.mxu0 0.0
  %3404 = vmatprep.subr.mxu0 0.0
  %3405 = vmatpush1.msra.mxu0 0.0
  %3406 = vmatprep.subr.mxu0 0.0
  %3407 = vmatpush1.msra.mxu0 0.0
  %3408 = vmatprep.subr.mxu0 0.0
  %3409 = vmatpush1.msra.mxu0 0.0
  %3410 = vmatprep.subr.mxu0 0.0
  %3411 = vmatpush1.msra.mxu0 0.0
  %3412 = vmatprep.subr.mxu0 0.0
  %3413 = vmatpush1.msra.mxu0 0.0
  %3414 = vmatprep.subr.mxu0 0.0
  %3415 = vmatpush1.msra.mxu0 0.0
  %3416 = vmatprep.subr.mxu0 0.0
  %3417 = vmatpush1.msra.mxu0 0.0
  %3418 = vmatprep.subr.mxu0 0.0
  %3419 = vmatpush1.msra.mxu0 0.0
  %3420 = vmatprep.subr.mxu0 0.0
  %3421 = vmatpush1.msra.mxu0 0.0
  %3422 = vmatprep.subr.mxu0 0.0
  %3423 = vmatpush1.msra.mxu0 0.0
  %3424 = vmatprep.subr.mxu0 0.0
  %3425 = vmatpush1.msra.mxu0 0.0
  %3426 = vmatprep.subr.mxu0 0.0
  %3427 = vmatpush1.msra.mxu0 0.0
  %3428 = vmatprep.subr.mxu0 0.0
  %3429 = vmatpush1.msra.mxu0 0.0
  %3430 = vmatprep.subr.mxu0 0.0
  %3431 = vmatpush1.msra.mxu0 0.0
  %3432 = vmatprep.subr.mxu0 0.0
  %3433 = vmatpush1.msra.mxu0 0.0
  %3434 = vmatprep.subr.mxu0 0.0
  %3435 = vmatpush1.msra.mxu0 0.0
  %3436 = vmatprep.subr.mxu0 0.0
  %3437 = vmatpush1.msra.mxu0 0.0
  %3438 = vmatprep.subr.mxu0 0.0
  %3439 = vmatpush1.msra.mxu0 0.0
  %3440 = vmatprep.subr.mxu0 0.0
  %3441 = vmatpush1.msra.mxu0 0.0
  %3442 = vmatprep.mubr.f32.mxu0 0.0
  %3443 = vmatmul.mubr.f32.gmra.mrb[0].mxu0 %v3376
  %v3444 = vpop.f32.mrb[0].mxu0
  %v3445 = vadd.f32 0.0, %v3444
  %v3446 = vpop.f32.mrb[0].mxu0
  %3447 = vdwg.mxu0
  %v3448 = vadd.f32 %v589, %v3445
  %v3449 = vadd.f32 %v3448, %v2357
  %v3450 = vxor.u32 %v3449, 2147483648
  %v3451 = vmul.f32 %v3450, 1.442695
  %v3452 = vpow.pop %v3451
  %v3453 = vadd.f32 %v3452, 1.0
  %v3454 = vrcp.pop %v3453
  %v3455 = vmul.f32 1.0, %v3454
  %v3456 = vtanh.pop %v3449
  %v3457 = vmul.f32 %v3455, %v3370
  %3459 = vrot.lane.b32.xlu0 %v3456, 64
  %v3460 = vpop.permute.xlu0 %3459
  %v3462 = vmul.f32 %v3455, %v3460
  %3464 = vrot.lane.b32.xlu0 %v3462, 32
  %v3465 = vpop.permute.xlu0 %3464
  %v3467 = vadd.f32 %v3457, %v3465
  %v3468 = vtanh.pop %v3467
  %3470 = vrot.lane.b32.xlu0 %v3468, 64
  %v3471 = vpop.permute.xlu0 %3470
  %v3473 = vmul.f32 %v3455, %v3471
  %3475 = vrot.lane.b32.xlu0 %v3473, 32
  %v3476 = vpop.permute.xlu0 %3475
  %3479 = vrot.lane.b32.xlu0 %v3368, 64
  %v3480 = vpop.permute.xlu0 %3479
  %v3482 = vsel %vm611, %v3476, %v3480
  %v3484 = vsel %vm738, %v3482, 0
  %3486 = vmatprep.subr.mxu0 0.0
  %3487 = vmatpush1.msra.mxu0 %v2393
  %3488 = vmatprep.subr.mxu0 0.0
  %3489 = vmatpush1.msra.mxu0 %v2394
  %3490 = vmatprep.subr.mxu0 0.0
  %3491 = vmatpush1.msra.mxu0 %v2395
  %3492 = vmatprep.subr.mxu0 0.0
  %3493 = vmatpush1.msra.mxu0 %v2396
  %3494 = vmatprep.subr.mxu0 0.0
  %3495 = vmatpush1.msra.mxu0 %v2397
  %3496 = vmatprep.subr.mxu0 0.0
  %3497 = vmatpush1.msra.mxu0 %v2398
  %3498 = vmatprep.subr.mxu0 0.0
  %3499 = vmatpush1.msra.mxu0 %v2399
  %3500 = vmatprep.subr.mxu0 0.0
  %3501 = vmatpush1.msra.mxu0 %v2400
  %3502 = vmatprep.subr.mxu0 0.0
  %3503 = vmatpush1.msra.mxu0 0.0
  %3504 = vmatprep.subr.mxu0 0.0
  %3505 = vmatpush1.msra.mxu0 0.0
  %3506 = vmatprep.subr.mxu0 0.0
  %3507 = vmatpush1.msra.mxu0 0.0
  %3508 = vmatprep.subr.mxu0 0.0
  %3509 = vmatpush1.msra.mxu0 0.0
  %3510 = vmatprep.subr.mxu0 0.0
  %3511 = vmatpush1.msra.mxu0 0.0
  %3512 = vmatprep.subr.mxu0 0.0
  %3513 = vmatpush1.msra.mxu0 0.0
  %3514 = vmatprep.subr.mxu0 0.0
  %3515 = vmatpush1.msra.mxu0 0.0
  %3516 = vmatprep.subr.mxu0 0.0
  %3517 = vmatpush1.msra.mxu0 0.0
  %3518 = vmatprep.subr.mxu0 0.0
  %3519 = vmatpush1.msra.mxu0 0.0
  %3520 = vmatprep.subr.mxu0 0.0
  %3521 = vmatpush1.msra.mxu0 0.0
  %3522 = vmatprep.subr.mxu0 0.0
  %3523 = vmatpush1.msra.mxu0 0.0
  %3524 = vmatprep.subr.mxu0 0.0
  %3525 = vmatpush1.msra.mxu0 0.0
  %3526 = vmatprep.subr.mxu0 0.0
  %3527 = vmatpush1.msra.mxu0 0.0
  %3528 = vmatprep.subr.mxu0 0.0
  %3529 = vmatpush1.msra.mxu0 0.0
  %3530 = vmatprep.subr.mxu0 0.0
  %3531 = vmatpush1.msra.mxu0 0.0
  %3532 = vmatprep.subr.mxu0 0.0
  %3533 = vmatpush1.msra.mxu0 0.0
  %3534 = vmatprep.subr.mxu0 0.0
  %3535 = vmatpush1.msra.mxu0 0.0
  %3536 = vmatprep.subr.mxu0 0.0
  %3537 = vmatpush1.msra.mxu0 0.0
  %3538 = vmatprep.subr.mxu0 0.0
  %3539 = vmatpush1.msra.mxu0 0.0
  %3540 = vmatprep.subr.mxu0 0.0
  %3541 = vmatpush1.msra.mxu0 0.0
  %3542 = vmatprep.subr.mxu0 0.0
  %3543 = vmatpush1.msra.mxu0 0.0
  %3544 = vmatprep.subr.mxu0 0.0
  %3545 = vmatpush1.msra.mxu0 0.0
  %3546 = vmatprep.subr.mxu0 0.0
  %3547 = vmatpush1.msra.mxu0 0.0
  %3548 = vmatprep.subr.mxu0 0.0
  %3549 = vmatpush1.msra.mxu0 0.0
  %3550 = vmatprep.mubr.f32.mxu0 0.0
  %3551 = vmatmul.mubr.f32.gmra.mrb[0].mxu0 %v3484
  %v3552 = vpop.f32.mrb[0].mxu0
  %v3553 = vadd.f32 %v2406, %v3552
  %v3554 = vpop.f32.mrb[0].mxu0
  %3555 = vdwg.mxu0
  %v3556 = vxor.u32 %v3553, 2147483648
  %v3557 = vmul.f32 %v3556, 1.442695
  %v3558 = vpow.pop %v3557
  %v3559 = vadd.f32 %v3558, 1.0
  %v3560 = vrcp.pop %v3559
  %v3561 = vmul.f32 1.0, %v3560
  %v3562 = vtanh.pop %v3553
  %v3563 = vmul.f32 %v3561, %v3372
  %3565 = vrot.lane.b32.xlu0 %v3562, 64
  %v3566 = vpop.permute.xlu0 %3565
  %v3568 = vmul.f32 %v3561, %v3566
  %3570 = vrot.lane.b32.xlu0 %v3568, 32
  %v3571 = vpop.permute.xlu0 %3570
  %v3573 = vadd.f32 %v3563, %v3571
  %v3574 = vtanh.pop %v3573
  %3576 = vrot.lane.b32.xlu0 %v3574, 64
  %v3577 = vpop.permute.xlu0 %3576
  %v3579 = vmul.f32 %v3561, %v3577
  %v3580 = vmax.f32 %v3473, -50.0
  %v3581 = vmin.f32 %v3580, 50.0
  %v3582 = vmax.f32 %v3579, -50.0
  %v3583 = vmin.f32 %v3582, 50.0
  %v3584 = vmax.f32 %v3467, -50.0
  %v3585 = vmin.f32 %v3584, 50.0
  %v3586 = vmax.f32 %v3573, -50.0
  %v3587 = vmin.f32 %v3586, 50.0
  %3589 = vrot.lane.b32.xlu0 %v3581, 32
  %v3590 = vpop.permute.xlu0 %3589
  %v3591 = vsel %vm611, %v3590, 0
  %3593 = vmatprep.subr.mxu0 0.0
  %3594 = vmatpush1.msra.mxu0 %v2272
  %3595 = vmatprep.subr.mxu0 0.0
  %3596 = vmatpush1.msra.mxu0 %v2273
  %3597 = vmatprep.subr.mxu0 0.0
  %3598 = vmatpush1.msra.mxu0 %v2274
  %3599 = vmatprep.subr.mxu0 0.0
  %3600 = vmatpush1.msra.mxu0 %v2275
  %3601 = vmatprep.subr.mxu0 0.0
  %3602 = vmatpush1.msra.mxu0 0.0
  %3603 = vmatprep.subr.mxu0 0.0
  %3604 = vmatpush1.msra.mxu0 0.0
  %3605 = vmatprep.subr.mxu0 0.0
  %3606 = vmatpush1.msra.mxu0 0.0
  %3607 = vmatprep.subr.mxu0 0.0
  %3608 = vmatpush1.msra.mxu0 0.0
  %3609 = vmatprep.subr.mxu0 0.0
  %3610 = vmatpush1.msra.mxu0 0.0
  %3611 = vmatprep.subr.mxu0 0.0
  %3612 = vmatpush1.msra.mxu0 0.0
  %3613 = vmatprep.subr.mxu0 0.0
  %3614 = vmatpush1.msra.mxu0 0.0
  %3615 = vmatprep.subr.mxu0 0.0
  %3616 = vmatpush1.msra.mxu0 0.0
  %3617 = vmatprep.subr.mxu0 0.0
  %3618 = vmatpush1.msra.mxu0 0.0
  %3619 = vmatprep.subr.mxu0 0.0
  %3620 = vmatpush1.msra.mxu0 0.0
  %3621 = vmatprep.subr.mxu0 0.0
  %3622 = vmatpush1.msra.mxu0 0.0
  %3623 = vmatprep.subr.mxu0 0.0
  %3624 = vmatpush1.msra.mxu0 0.0
  %3625 = vmatprep.subr.mxu0 0.0
  %3626 = vmatpush1.msra.mxu0 0.0
  %3627 = vmatprep.subr.mxu0 0.0
  %3628 = vmatpush1.msra.mxu0 0.0
  %3629 = vmatprep.subr.mxu0 0.0
  %3630 = vmatpush1.msra.mxu0 0.0
  %3631 = vmatprep.subr.mxu0 0.0
  %3632 = vmatpush1.msra.mxu0 0.0
  %3633 = vmatprep.subr.mxu0 0.0
  %3634 = vmatpush1.msra.mxu0 0.0
  %3635 = vmatprep.subr.mxu0 0.0
  %3636 = vmatpush1.msra.mxu0 0.0
  %3637 = vmatprep.subr.mxu0 0.0
  %3638 = vmatpush1.msra.mxu0 0.0
  %3639 = vmatprep.subr.mxu0 0.0
  %3640 = vmatpush1.msra.mxu0 0.0
  %3641 = vmatprep.subr.mxu0 0.0
  %3642 = vmatpush1.msra.mxu0 0.0
  %3643 = vmatprep.subr.mxu0 0.0
  %3644 = vmatpush1.msra.mxu0 0.0
  %3645 = vmatprep.subr.mxu0 0.0
  %3646 = vmatpush1.msra.mxu0 0.0
  %3647 = vmatprep.subr.mxu0 0.0
  %3648 = vmatpush1.msra.mxu0 0.0
  %3649 = vmatprep.subr.mxu0 0.0
  %3650 = vmatpush1.msra.mxu0 0.0
  %3651 = vmatprep.subr.mxu0 0.0
  %3652 = vmatpush1.msra.mxu0 0.0
  %3653 = vmatprep.subr.mxu0 0.0
  %3654 = vmatpush1.msra.mxu0 0.0
  %3655 = vmatprep.subr.mxu0 0.0
  %3656 = vmatpush1.msra.mxu0 0.0
  %3657 = vmatprep.mubr.f32.mxu0 0.0
  %3658 = vmatmul.mubr.f32.gmra.mrb[0].mxu0 %v3591
  %v3659 = vpop.f32.mrb[0].mxu0
  %v3660 = vadd.f32 0.0, %v3659
  %v3661 = vpop.f32.mrb[0].mxu0
  %3662 = vdwg.mxu0
  %v3663 = vadd.f32 %v594, %v3660
  %v3664 = vadd.f32 %v3663, %v2357
  %v3665 = vxor.u32 %v3664, 2147483648
  %v3666 = vmul.f32 %v3665, 1.442695
  %v3667 = vpow.pop %v3666
  %v3668 = vadd.f32 %v3667, 1.0
  %v3669 = vrcp.pop %v3668
  %v3670 = vmul.f32 1.0, %v3669
  %v3671 = vtanh.pop %v3664
  %v3672 = vmul.f32 %v3670, %v3585
  %3674 = vrot.lane.b32.xlu0 %v3671, 64
  %v3675 = vpop.permute.xlu0 %3674
  %v3677 = vmul.f32 %v3670, %v3675
  %3679 = vrot.lane.b32.xlu0 %v3677, 32
  %v3680 = vpop.permute.xlu0 %3679
  %v3682 = vadd.f32 %v3672, %v3680
  %v3683 = vtanh.pop %v3682
  %3685 = vrot.lane.b32.xlu0 %v3683, 64
  %v3686 = vpop.permute.xlu0 %3685
  %v3688 = vmul.f32 %v3670, %v3686
  %3690 = vrot.lane.b32.xlu0 %v3688, 32
  %v3691 = vpop.permute.xlu0 %3690
  %3694 = vrot.lane.b32.xlu0 %v3583, 64
  %v3695 = vpop.permute.xlu0 %3694
  %v3697 = vsel %vm611, %v3691, %v3695
  %v3699 = vsel %vm738, %v3697, 0
  %3701 = vmatprep.subr.mxu0 0.0
  %3702 = vmatpush1.msra.mxu0 %v2393
  %3703 = vmatprep.subr.mxu0 0.0
  %3704 = vmatpush1.msra.mxu0 %v2394
  %3705 = vmatprep.subr.mxu0 0.0
  %3706 = vmatpush1.msra.mxu0 %v2395
  %3707 = vmatprep.subr.mxu0 0.0
  %3708 = vmatpush1.msra.mxu0 %v2396
  %3709 = vmatprep.subr.mxu0 0.0
  %3710 = vmatpush1.msra.mxu0 %v2397
  %3711 = vmatprep.subr.mxu0 0.0
  %3712 = vmatpush1.msra.mxu0 %v2398
  %3713 = vmatprep.subr.mxu0 0.0
  %3714 = vmatpush1.msra.mxu0 %v2399
  %3715 = vmatprep.subr.mxu0 0.0
  %3716 = vmatpush1.msra.mxu0 %v2400
  %3717 = vmatprep.subr.mxu0 0.0
  %3718 = vmatpush1.msra.mxu0 0.0
  %3719 = vmatprep.subr.mxu0 0.0
  %3720 = vmatpush1.msra.mxu0 0.0
  %3721 = vmatprep.subr.mxu0 0.0
  %3722 = vmatpush1.msra.mxu0 0.0
  %3723 = vmatprep.subr.mxu0 0.0
  %3724 = vmatpush1.msra.mxu0 0.0
  %3725 = vmatprep.subr.mxu0 0.0
  %3726 = vmatpush1.msra.mxu0 0.0
  %3727 = vmatprep.subr.mxu0 0.0
  %3728 = vmatpush1.msra.mxu0 0.0
  %3729 = vmatprep.subr.mxu0 0.0
  %3730 = vmatpush1.msra.mxu0 0.0
  %3731 = vmatprep.subr.mxu0 0.0
  %3732 = vmatpush1.msra.mxu0 0.0
  %3733 = vmatprep.subr.mxu0 0.0
  %3734 = vmatpush1.msra.mxu0 0.0
  %3735 = vmatprep.subr.mxu0 0.0
  %3736 = vmatpush1.msra.mxu0 0.0
  %3737 = vmatprep.subr.mxu0 0.0
  %3738 = vmatpush1.msra.mxu0 0.0
  %3739 = vmatprep.subr.mxu0 0.0
  %3740 = vmatpush1.msra.mxu0 0.0
  %3741 = vmatprep.subr.mxu0 0.0
  %3742 = vmatpush1.msra.mxu0 0.0
  %3743 = vmatprep.subr.mxu0 0.0
  %3744 = vmatpush1.msra.mxu0 0.0
  %3745 = vmatprep.subr.mxu0 0.0
  %3746 = vmatpush1.msra.mxu0 0.0
  %3747 = vmatprep.subr.mxu0 0.0
  %3748 = vmatpush1.msra.mxu0 0.0
  %3749 = vmatprep.subr.mxu0 0.0
  %3750 = vmatpush1.msra.mxu0 0.0
  %3751 = vmatprep.subr.mxu0 0.0
  %3752 = vmatpush1.msra.mxu0 0.0
  %3753 = vmatprep.subr.mxu0 0.0
  %3754 = vmatpush1.msra.mxu0 0.0
  %3755 = vmatprep.subr.mxu0 0.0
  %3756 = vmatpush1.msra.mxu0 0.0
  %3757 = vmatprep.subr.mxu0 0.0
  %3758 = vmatpush1.msra.mxu0 0.0
  %3759 = vmatprep.subr.mxu0 0.0
  %3760 = vmatpush1.msra.mxu0 0.0
  %3761 = vmatprep.subr.mxu0 0.0
  %3762 = vmatpush1.msra.mxu0 0.0
  %3763 = vmatprep.subr.mxu0 0.0
  %3764 = vmatpush1.msra.mxu0 0.0
  %3765 = vmatprep.mubr.f32.mxu0 0.0
  %3766 = vmatmul.mubr.f32.gmra.mrb[0].mxu0 %v3699
  %v3767 = vpop.f32.mrb[0].mxu0
  %v3768 = vadd.f32 %v2406, %v3767
  %v3769 = vpop.f32.mrb[0].mxu0
  %3770 = vdwg.mxu0
  %v3771 = vxor.u32 %v3768, 2147483648
  %v3772 = vmul.f32 %v3771, 1.442695
  %v3773 = vpow.pop %v3772
  %v3774 = vadd.f32 %v3773, 1.0
  %v3775 = vrcp.pop %v3774
  %v3776 = vmul.f32 1.0, %v3775
  %v3777 = vtanh.pop %v3768
  %v3778 = vmul.f32 %v3776, %v3587
  %3780 = vrot.lane.b32.xlu0 %v3777, 64
  %v3781 = vpop.permute.xlu0 %3780
  %v3783 = vmul.f32 %v3776, %v3781
  %3785 = vrot.lane.b32.xlu0 %v3783, 32
  %v3786 = vpop.permute.xlu0 %3785
  %v3788 = vadd.f32 %v3778, %v3786
  %v3789 = vtanh.pop %v3788
  %3791 = vrot.lane.b32.xlu0 %v3789, 64
  %v3792 = vpop.permute.xlu0 %3791
  %v3794 = vmul.f32 %v3776, %v3792
  %v3795 = vmax.f32 %v3688, -50.0
  %v3796 = vmin.f32 %v3795, 50.0
  %v3797 = vmax.f32 %v3794, -50.0
  %v3798 = vmin.f32 %v3797, 50.0
  %v3799 = vmax.f32 %v3682, -50.0
  %v3800 = vmin.f32 %v3799, 50.0
  %v3801 = vmax.f32 %v3788, -50.0
  %v3802 = vmin.f32 %v3801, 50.0
  %3804 = vrot.lane.b32.xlu0 %v3796, 32
  %v3805 = vpop.permute.xlu0 %3804
  %v3806 = vsel %vm611, %v3805, 0
  %3808 = vmatprep.subr.mxu0 0.0
  %3809 = vmatpush1.msra.mxu0 %v2272
  %3810 = vmatprep.subr.mxu0 0.0
  %3811 = vmatpush1.msra.mxu0 %v2273
  %3812 = vmatprep.subr.mxu0 0.0
  %3813 = vmatpush1.msra.mxu0 %v2274
  %3814 = vmatprep.subr.mxu0 0.0
  %3815 = vmatpush1.msra.mxu0 %v2275
  %3816 = vmatprep.subr.mxu0 0.0
  %3817 = vmatpush1.msra.mxu0 0.0
  %3818 = vmatprep.subr.mxu0 0.0
  %3819 = vmatpush1.msra.mxu0 0.0
  %3820 = vmatprep.subr.mxu0 0.0
  %3821 = vmatpush1.msra.mxu0 0.0
  %3822 = vmatprep.subr.mxu0 0.0
  %3823 = vmatpush1.msra.mxu0 0.0
  %3824 = vmatprep.subr.mxu0 0.0
  %3825 = vmatpush1.msra.mxu0 0.0
  %3826 = vmatprep.subr.mxu0 0.0
  %3827 = vmatpush1.msra.mxu0 0.0
  %3828 = vmatprep.subr.mxu0 0.0
  %3829 = vmatpush1.msra.mxu0 0.0
  %3830 = vmatprep.subr.mxu0 0.0
  %3831 = vmatpush1.msra.mxu0 0.0
  %3832 = vmatprep.subr.mxu0 0.0
  %3833 = vmatpush1.msra.mxu0 0.0
  %3834 = vmatprep.subr.mxu0 0.0
  %3835 = vmatpush1.msra.mxu0 0.0
  %3836 = vmatprep.subr.mxu0 0.0
  %3837 = vmatpush1.msra.mxu0 0.0
  %3838 = vmatprep.subr.mxu0 0.0
  %3839 = vmatpush1.msra.mxu0 0.0
  %3840 = vmatprep.subr.mxu0 0.0
  %3841 = vmatpush1.msra.mxu0 0.0
  %3842 = vmatprep.subr.mxu0 0.0
  %3843 = vmatpush1.msra.mxu0 0.0
  %3844 = vmatprep.subr.mxu0 0.0
  %3845 = vmatpush1.msra.mxu0 0.0
  %3846 = vmatprep.subr.mxu0 0.0
  %3847 = vmatpush1.msra.mxu0 0.0
  %3848 = vmatprep.subr.mxu0 0.0
  %3849 = vmatpush1.msra.mxu0 0.0
  %3850 = vmatprep.subr.mxu0 0.0
  %3851 = vmatpush1.msra.mxu0 0.0
  %3852 = vmatprep.subr.mxu0 0.0
  %3853 = vmatpush1.msra.mxu0 0.0
  %3854 = vmatprep.subr.mxu0 0.0
  %3855 = vmatpush1.msra.mxu0 0.0
  %3856 = vmatprep.subr.mxu0 0.0
  %3857 = vmatpush1.msra.mxu0 0.0
  %3858 = vmatprep.subr.mxu0 0.0
  %3859 = vmatpush1.msra.mxu0 0.0
  %3860 = vmatprep.subr.mxu0 0.0
  %3861 = vmatpush1.msra.mxu0 0.0
  %3862 = vmatprep.subr.mxu0 0.0
  %3863 = vmatpush1.msra.mxu0 0.0
  %3864 = vmatprep.subr.mxu0 0.0
  %3865 = vmatpush1.msra.mxu0 0.0
  %3866 = vmatprep.subr.mxu0 0.0
  %3867 = vmatpush1.msra.mxu0 0.0
  %3868 = vmatprep.subr.mxu0 0.0
  %3869 = vmatpush1.msra.mxu0 0.0
  %3870 = vmatprep.subr.mxu0 0.0
  %3871 = vmatpush1.msra.mxu0 0.0
  %3872 = vmatprep.mubr.f32.mxu0 0.0
  %3873 = vmatmul.mubr.f32.gmra.mrb[0].mxu0 %v3806
  %v3874 = vpop.f32.mrb[0].mxu0
  %v3875 = vadd.f32 0.0, %v3874
  %v3876 = vpop.f32.mrb[0].mxu0
  %3877 = vdwg.mxu0
  %v3878 = vadd.f32 %v599, %v3875
  %v3879 = vadd.f32 %v3878, %v2357
  %v3880 = vxor.u32 %v3879, 2147483648
  %v3881 = vmul.f32 %v3880, 1.442695
  %v3882 = vpow.pop %v3881
  %v3883 = vadd.f32 %v3882, 1.0
  %v3884 = vrcp.pop %v3883
  %v3885 = vmul.f32 1.0, %v3884
  %v3886 = vtanh.pop %v3879
  %v3887 = vmul.f32 %v3885, %v3800
  %3889 = vrot.lane.b32.xlu0 %v3886, 64
  %v3890 = vpop.permute.xlu0 %3889
  %v3892 = vmul.f32 %v3885, %v3890
  %3894 = vrot.lane.b32.xlu0 %v3892, 32
  %v3895 = vpop.permute.xlu0 %3894
  %v3897 = vadd.f32 %v3887, %v3895
  %v3898 = vtanh.pop %v3897
  %3900 = vrot.lane.b32.xlu0 %v3898, 64
  %v3901 = vpop.permute.xlu0 %3900
  %v3903 = vmul.f32 %v3885, %v3901
  %3905 = vrot.lane.b32.xlu0 %v3903, 32
  %v3906 = vpop.permute.xlu0 %3905
  %3909 = vrot.lane.b32.xlu0 %v3798, 64
  %v3910 = vpop.permute.xlu0 %3909
  %v3912 = vsel %vm611, %v3906, %v3910
  %v3914 = vsel %vm738, %v3912, 0
  %3916 = vmatprep.subr.mxu0 0.0
  %3917 = vmatpush1.msra.mxu0 %v2393
  %3918 = vmatprep.subr.mxu0 0.0
  %3919 = vmatpush1.msra.mxu0 %v2394
  %3920 = vmatprep.subr.mxu0 0.0
  %3921 = vmatpush1.msra.mxu0 %v2395
  %3922 = vmatprep.subr.mxu0 0.0
  %3923 = vmatpush1.msra.mxu0 %v2396
  %3924 = vmatprep.subr.mxu0 0.0
  %3925 = vmatpush1.msra.mxu0 %v2397
  %3926 = vmatprep.subr.mxu0 0.0
  %3927 = vmatpush1.msra.mxu0 %v2398
  %3928 = vmatprep.subr.mxu0 0.0
  %3929 = vmatpush1.msra.mxu0 %v2399
  %3930 = vmatprep.subr.mxu0 0.0
  %3931 = vmatpush1.msra.mxu0 %v2400
  %3932 = vmatprep.subr.mxu0 0.0
  %3933 = vmatpush1.msra.mxu0 0.0
  %3934 = vmatprep.subr.mxu0 0.0
  %3935 = vmatpush1.msra.mxu0 0.0
  %3936 = vmatprep.subr.mxu0 0.0
  %3937 = vmatpush1.msra.mxu0 0.0
  %3938 = vmatprep.subr.mxu0 0.0
  %3939 = vmatpush1.msra.mxu0 0.0
  %3940 = vmatprep.subr.mxu0 0.0
  %3941 = vmatpush1.msra.mxu0 0.0
  %3942 = vmatprep.subr.mxu0 0.0
  %3943 = vmatpush1.msra.mxu0 0.0
  %3944 = vmatprep.subr.mxu0 0.0
  %3945 = vmatpush1.msra.mxu0 0.0
  %3946 = vmatprep.subr.mxu0 0.0
  %3947 = vmatpush1.msra.mxu0 0.0
  %3948 = vmatprep.subr.mxu0 0.0
  %3949 = vmatpush1.msra.mxu0 0.0
  %3950 = vmatprep.subr.mxu0 0.0
  %3951 = vmatpush1.msra.mxu0 0.0
  %3952 = vmatprep.subr.mxu0 0.0
  %3953 = vmatpush1.msra.mxu0 0.0
  %3954 = vmatprep.subr.mxu0 0.0
  %3955 = vmatpush1.msra.mxu0 0.0
  %3956 = vmatprep.subr.mxu0 0.0
  %3957 = vmatpush1.msra.mxu0 0.0
  %3958 = vmatprep.subr.mxu0 0.0
  %3959 = vmatpush1.msra.mxu0 0.0
  %3960 = vmatprep.subr.mxu0 0.0
  %3961 = vmatpush1.msra.mxu0 0.0
  %3962 = vmatprep.subr.mxu0 0.0
  %3963 = vmatpush1.msra.mxu0 0.0
  %3964 = vmatprep.subr.mxu0 0.0
  %3965 = vmatpush1.msra.mxu0 0.0
  %3966 = vmatprep.subr.mxu0 0.0
  %3967 = vmatpush1.msra.mxu0 0.0
  %3968 = vmatprep.subr.mxu0 0.0
  %3969 = vmatpush1.msra.mxu0 0.0
  %3970 = vmatprep.subr.mxu0 0.0
  %3971 = vmatpush1.msra.mxu0 0.0
  %3972 = vmatprep.subr.mxu0 0.0
  %3973 = vmatpush1.msra.mxu0 0.0
  %3974 = vmatprep.subr.mxu0 0.0
  %3975 = vmatpush1.msra.mxu0 0.0
  %3976 = vmatprep.subr.mxu0 0.0
  %3977 = vmatpush1.msra.mxu0 0.0
  %3978 = vmatprep.subr.mxu0 0.0
  %3979 = vmatpush1.msra.mxu0 0.0
  %3980 = vmatprep.mubr.f32.mxu0 0.0
  %3981 = vmatmul.mubr.f32.gmra.mrb[0].mxu0 %v3914
  %v3982 = vpop.f32.mrb[0].mxu0
  %v3983 = vadd.f32 %v2406, %v3982
  %v3984 = vpop.f32.mrb[0].mxu0
  %3985 = vdwg.mxu0
  %v3986 = vxor.u32 %v3983, 2147483648
  %v3987 = vmul.f32 %v3986, 1.442695
  %v3988 = vpow.pop %v3987
  %v3989 = vadd.f32 %v3988, 1.0
  %v3990 = vrcp.pop %v3989
  %v3991 = vmul.f32 1.0, %v3990
  %v3992 = vtanh.pop %v3983
  %v3993 = vmul.f32 %v3991, %v3802
  %3995 = vrot.lane.b32.xlu0 %v3992, 64
  %v3996 = vpop.permute.xlu0 %3995
  %v3998 = vmul.f32 %v3991, %v3996
  %4000 = vrot.lane.b32.xlu0 %v3998, 32
  %v4001 = vpop.permute.xlu0 %4000
  %v4003 = vadd.f32 %v3993, %v4001
  %v4004 = vtanh.pop %v4003
  %4006 = vrot.lane.b32.xlu0 %v4004, 64
  %v4007 = vpop.permute.xlu0 %4006
  %v4009 = vmul.f32 %v3991, %v4007
  %v4010 = vmax.f32 %v3903, -50.0
  %v4011 = vmin.f32 %v4010, 50.0
  %v4012 = vmax.f32 %v4009, -50.0
  %v4013 = vmin.f32 %v4012, 50.0
  %v4014 = vmax.f32 %v3897, -50.0
  %v4015 = vmin.f32 %v4014, 50.0
  %v4016 = vmax.f32 %v4003, -50.0
  %v4017 = vmin.f32 %v4016, 50.0
  %4019 = vrot.lane.b32.xlu0 %v4011, 32
  %v4020 = vpop.permute.xlu0 %4019
  %v4021 = vsel %vm611, %v4020, 0
  %4023 = vmatprep.subr.mxu0 0.0
  %4024 = vmatpush1.msra.mxu0 %v2272
  %4025 = vmatprep.subr.mxu0 0.0
  %4026 = vmatpush1.msra.mxu0 %v2273
  %4027 = vmatprep.subr.mxu0 0.0
  %4028 = vmatpush1.msra.mxu0 %v2274
  %4029 = vmatprep.subr.mxu0 0.0
  %4030 = vmatpush1.msra.mxu0 %v2275
  %4031 = vmatprep.subr.mxu0 0.0
  %4032 = vmatpush1.msra.mxu0 0.0
  %4033 = vmatprep.subr.mxu0 0.0
  %4034 = vmatpush1.msra.mxu0 0.0
  %4035 = vmatprep.subr.mxu0 0.0
  %4036 = vmatpush1.msra.mxu0 0.0
  %4037 = vmatprep.subr.mxu0 0.0
  %4038 = vmatpush1.msra.mxu0 0.0
  %4039 = vmatprep.subr.mxu0 0.0
  %4040 = vmatpush1.msra.mxu0 0.0
  %4041 = vmatprep.subr.mxu0 0.0
  %4042 = vmatpush1.msra.mxu0 0.0
  %4043 = vmatprep.subr.mxu0 0.0
  %4044 = vmatpush1.msra.mxu0 0.0
  %4045 = vmatprep.subr.mxu0 0.0
  %4046 = vmatpush1.msra.mxu0 0.0
  %4047 = vmatprep.subr.mxu0 0.0
  %4048 = vmatpush1.msra.mxu0 0.0
  %4049 = vmatprep.subr.mxu0 0.0
  %4050 = vmatpush1.msra.mxu0 0.0
  %4051 = vmatprep.subr.mxu0 0.0
  %4052 = vmatpush1.msra.mxu0 0.0
  %4053 = vmatprep.subr.mxu0 0.0
  %4054 = vmatpush1.msra.mxu0 0.0
  %4055 = vmatprep.subr.mxu0 0.0
  %4056 = vmatpush1.msra.mxu0 0.0
  %4057 = vmatprep.subr.mxu0 0.0
  %4058 = vmatpush1.msra.mxu0 0.0
  %4059 = vmatprep.subr.mxu0 0.0
  %4060 = vmatpush1.msra.mxu0 0.0
  %4061 = vmatprep.subr.mxu0 0.0
  %4062 = vmatpush1.msra.mxu0 0.0
  %4063 = vmatprep.subr.mxu0 0.0
  %4064 = vmatpush1.msra.mxu0 0.0
  %4065 = vmatprep.subr.mxu0 0.0
  %4066 = vmatpush1.msra.mxu0 0.0
  %4067 = vmatprep.subr.mxu0 0.0
  %4068 = vmatpush1.msra.mxu0 0.0
  %4069 = vmatprep.subr.mxu0 0.0
  %4070 = vmatpush1.msra.mxu0 0.0
  %4071 = vmatprep.subr.mxu0 0.0
  %4072 = vmatpush1.msra.mxu0 0.0
  %4073 = vmatprep.subr.mxu0 0.0
  %4074 = vmatpush1.msra.mxu0 0.0
  %4075 = vmatprep.subr.mxu0 0.0
  %4076 = vmatpush1.msra.mxu0 0.0
  %4077 = vmatprep.subr.mxu0 0.0
  %4078 = vmatpush1.msra.mxu0 0.0
  %4079 = vmatprep.subr.mxu0 0.0
  %4080 = vmatpush1.msra.mxu0 0.0
  %4081 = vmatprep.subr.mxu0 0.0
  %4082 = vmatpush1.msra.mxu0 0.0
  %4083 = vmatprep.subr.mxu0 0.0
  %4084 = vmatpush1.msra.mxu0 0.0
  %4085 = vmatprep.subr.mxu0 0.0
  %4086 = vmatpush1.msra.mxu0 0.0
  %4087 = vmatprep.mubr.f32.mxu0 0.0
  %4088 = vmatmul.mubr.f32.gmra.mrb[0].mxu0 %v4021
  %v4089 = vpop.f32.mrb[0].mxu0
  %v4090 = vadd.f32 0.0, %v4089
  %v4091 = vpop.f32.mrb[0].mxu0
  %4092 = vdwg.mxu0
  %v4093 = vadd.f32 %v604, %v4090
  %v4094 = vadd.f32 %v4093, %v2357
  %v4095 = vxor.u32 %v4094, 2147483648
  %v4096 = vmul.f32 %v4095, 1.442695
  %v4097 = vpow.pop %v4096
  %v4098 = vadd.f32 %v4097, 1.0
  %v4099 = vrcp.pop %v4098
  %v4100 = vmul.f32 1.0, %v4099
  %v4101 = vtanh.pop %v4094
  %v4102 = vmul.f32 %v4100, %v4015
  %4104 = vrot.lane.b32.xlu0 %v4101, 64
  %v4105 = vpop.permute.xlu0 %4104
  %v4107 = vmul.f32 %v4100, %v4105
  %4109 = vrot.lane.b32.xlu0 %v4107, 32
  %v4110 = vpop.permute.xlu0 %4109
  %v4112 = vadd.f32 %v4102, %v4110
  %v4113 = vtanh.pop %v4112
  %4115 = vrot.lane.b32.xlu0 %v4113, 64
  %v4116 = vpop.permute.xlu0 %4115
  %v4118 = vmul.f32 %v4100, %v4116
  %4120 = vrot.lane.b32.xlu0 %v4118, 32
  %v4121 = vpop.permute.xlu0 %4120
  %4124 = vrot.lane.b32.xlu0 %v4013, 64
  %v4125 = vpop.permute.xlu0 %4124
  %v4127 = vsel %vm611, %v4121, %v4125
  %v4129 = vsel %vm738, %v4127, 0
  %4131 = vmatprep.subr.mxu0 0.0
  %4132 = vmatpush1.msra.mxu0 %v2393
  %4133 = vmatprep.subr.mxu0 0.0
  %4134 = vmatpush1.msra.mxu0 %v2394
  %4135 = vmatprep.subr.mxu0 0.0
  %4136 = vmatpush1.msra.mxu0 %v2395
  %4137 = vmatprep.subr.mxu0 0.0
  %4138 = vmatpush1.msra.mxu0 %v2396
  %4139 = vmatprep.subr.mxu0 0.0
  %4140 = vmatpush1.msra.mxu0 %v2397
  %4141 = vmatprep.subr.mxu0 0.0
  %4142 = vmatpush1.msra.mxu0 %v2398
  %4143 = vmatprep.subr.mxu0 0.0
  %4144 = vmatpush1.msra.mxu0 %v2399
  %4145 = vmatprep.subr.mxu0 0.0
  %4146 = vmatpush1.msra.mxu0 %v2400
  %4147 = vmatprep.subr.mxu0 0.0
  %4148 = vmatpush1.msra.mxu0 0.0
  %4149 = vmatprep.subr.mxu0 0.0
  %4150 = vmatpush1.msra.mxu0 0.0
  %4151 = vmatprep.subr.mxu0 0.0
  %4152 = vmatpush1.msra.mxu0 0.0
  %4153 = vmatprep.subr.mxu0 0.0
  %4154 = vmatpush1.msra.mxu0 0.0
  %4155 = vmatprep.subr.mxu0 0.0
  %4156 = vmatpush1.msra.mxu0 0.0
  %4157 = vmatprep.subr.mxu0 0.0
  %4158 = vmatpush1.msra.mxu0 0.0
  %4159 = vmatprep.subr.mxu0 0.0
  %4160 = vmatpush1.msra.mxu0 0.0
  %4161 = vmatprep.subr.mxu0 0.0
  %4162 = vmatpush1.msra.mxu0 0.0
  %4163 = vmatprep.subr.mxu0 0.0
  %4164 = vmatpush1.msra.mxu0 0.0
  %4165 = vmatprep.subr.mxu0 0.0
  %4166 = vmatpush1.msra.mxu0 0.0
  %4167 = vmatprep.subr.mxu0 0.0
  %4168 = vmatpush1.msra.mxu0 0.0
  %4169 = vmatprep.subr.mxu0 0.0
  %4170 = vmatpush1.msra.mxu0 0.0
  %4171 = vmatprep.subr.mxu0 0.0
  %4172 = vmatpush1.msra.mxu0 0.0
  %4173 = vmatprep.subr.mxu0 0.0
  %4174 = vmatpush1.msra.mxu0 0.0
  %4175 = vmatprep.subr.mxu0 0.0
  %4176 = vmatpush1.msra.mxu0 0.0
  %4177 = vmatprep.subr.mxu0 0.0
  %4178 = vmatpush1.msra.mxu0 0.0
  %4179 = vmatprep.subr.mxu0 0.0
  %4180 = vmatpush1.msra.mxu0 0.0
  %4181 = vmatprep.subr.mxu0 0.0
  %4182 = vmatpush1.msra.mxu0 0.0
  %4183 = vmatprep.subr.mxu0 0.0
  %4184 = vmatpush1.msra.mxu0 0.0
  %4185 = vmatprep.subr.mxu0 0.0
  %4186 = vmatpush1.msra.mxu0 0.0
  %4187 = vmatprep.subr.mxu0 0.0
  %4188 = vmatpush1.msra.mxu0 0.0
  %4189 = vmatprep.subr.mxu0 0.0
  %4190 = vmatpush1.msra.mxu0 0.0
  %4191 = vmatprep.subr.mxu0 0.0
  %4192 = vmatpush1.msra.mxu0 0.0
  %4193 = vmatprep.subr.mxu0 0.0
  %4194 = vmatpush1.msra.mxu0 0.0
  %4195 = vmatprep.mubr.f32.mxu0 0.0
  %4196 = vmatmul.mubr.f32.gmra.mrb[0].mxu0 %v4129
  %v4197 = vpop.f32.mrb[0].mxu0
  %v4198 = vadd.f32 %v2406, %v4197
  %v4199 = vpop.f32.mrb[0].mxu0
  %4200 = vdwg.mxu0
  %v4201 = vxor.u32 %v4198, 2147483648
  %v4202 = vmul.f32 %v4201, 1.442695
  %v4203 = vpow.pop %v4202
  %v4204 = vadd.f32 %v4203, 1.0
  %v4205 = vrcp.pop %v4204
  %v4206 = vmul.f32 1.0, %v4205
  %v4207 = vtanh.pop %v4198
  %v4208 = vmul.f32 %v4206, %v4017
  %4210 = vrot.lane.b32.xlu0 %v4207, 64
  %v4211 = vpop.permute.xlu0 %4210
  %v4213 = vmul.f32 %v4206, %v4211
  %4215 = vrot.lane.b32.xlu0 %v4213, 32
  %v4216 = vpop.permute.xlu0 %4215
  %v4218 = vadd.f32 %v4208, %v4216
  %v4219 = vtanh.pop %v4218
  %4221 = vrot.lane.b32.xlu0 %v4219, 64
  %v4222 = vpop.permute.xlu0 %4221
  %v4224 = vmul.f32 %v4206, %v4222
  %v4225 = vmax.f32 %v4118, -50.0
  %v4226 = vmin.f32 %v4225, 50.0
  %v4227 = vmax.f32 %v4224, -50.0
  %v4228 = vmin.f32 %v4227, 50.0
  %v4229 = vld [vmem:[%s12] sm:$0xff]
  %v4230 = vld [vmem:[%s12 + $0x8] sm:$0xff]
  %v4231 = vld [vmem:[%s12 + $0x10] sm:$0xff]
  %v4232 = vld [vmem:[%s12 + $0x18] sm:$0xff]
  %v4233 = vld [vmem:[%s13] sm:$0x1]
  %v4235 = vlaneseq
  %v4236 = vshrl.u32 %v4235, 7
  %v4237 = vsub.s32 0, %v4236
  %v4238 = vrot.slane %v4233, %v4237
  %4249 = vrot.lane.b32.xlu0 %v2504, 32
  %v4250 = vpop.permute.xlu0 %4249
  %4251 = vrot.lane.b32.xlu0 %v2719, 32
  %v4252 = vpop.permute.xlu0 %4251
  %4253 = vrot.lane.b32.xlu0 %v2934, 32
  %v4254 = vpop.permute.xlu0 %4253
  %4255 = vrot.lane.b32.xlu0 %v3149, 32
  %v4256 = vpop.permute.xlu0 %4255
  %4257 = vrot.lane.b32.xlu0 %v3364, 32
  %v4258 = vpop.permute.xlu0 %4257
  %4259 = vrot.lane.b32.xlu0 %v3579, 32
  %v4260 = vpop.permute.xlu0 %4259
  %4261 = vrot.lane.b32.xlu0 %v3794, 32
  %v4262 = vpop.permute.xlu0 %4261
  %4263 = vrot.lane.b32.xlu0 %v4009, 32
  %v4264 = vpop.permute.xlu0 %4263
  %4265 = vrot.lane.b32.xlu0 %v4224, 32
  %v4266 = vpop.permute.xlu0 %4265
  %v4267 = vsel %vm611, %v4250, 0
  %v4269 = vsel %vm611, %v4252, 0
  %v4271 = vsel %vm611, %v4254, 0
  %v4273 = vsel %vm611, %v4256, 0
  %v4275 = vsel %vm611, %v4258, 0
  %v4277 = vsel %vm611, %v4260, 0
  %v4279 = vsel %vm611, %v4262, 0
  %v4281 = vsel %vm611, %v4264, 0
  %v4283 = vsel %vm611, %v4266, 0
  %4285 = vmatprep.subr.mxu0 0.0
  %4286 = vmatpush1.msra.mxu0 %v4229
  %4287 = vmatprep.subr.mxu0 0.0
  %4288 = vmatpush1.msra.mxu0 %v4230
  %4289 = vmatprep.subr.mxu0 0.0
  %4290 = vmatpush1.msra.mxu0 %v4231
  %4291 = vmatprep.subr.mxu0 0.0
  %4292 = vmatpush1.msra.mxu0 %v4232
  %4293 = vmatprep.subr.mxu0 0.0
  %4294 = vmatpush1.msra.mxu0 0.0
  %4295 = vmatprep.subr.mxu0 0.0
  %4296 = vmatpush1.msra.mxu0 0.0
  %4297 = vmatprep.subr.mxu0 0.0
  %4298 = vmatpush1.msra.mxu0 0.0
  %4299 = vmatprep.subr.mxu0 0.0
  %4300 = vmatpush1.msra.mxu0 0.0
  %4301 = vmatprep.subr.mxu0 0.0
  %4302 = vmatpush1.msra.mxu0 0.0
  %4303 = vmatprep.subr.mxu0 0.0
  %4304 = vmatpush1.msra.mxu0 0.0
  %4305 = vmatprep.subr.mxu0 0.0
  %4306 = vmatpush1.msra.mxu0 0.0
  %4307 = vmatprep.subr.mxu0 0.0
  %4308 = vmatpush1.msra.mxu0 0.0
  %4309 = vmatprep.subr.mxu0 0.0
  %4310 = vmatpush1.msra.mxu0 0.0
  %4311 = vmatprep.subr.mxu0 0.0
  %4312 = vmatpush1.msra.mxu0 0.0
  %4313 = vmatprep.subr.mxu0 0.0
  %4314 = vmatpush1.msra.mxu0 0.0
  %4315 = vmatprep.subr.mxu0 0.0
  %4316 = vmatpush1.msra.mxu0 0.0
  %4317 = vmatprep.subr.mxu0 0.0
  %4318 = vmatpush1.msra.mxu0 0.0
  %4319 = vmatprep.subr.mxu0 0.0
  %4320 = vmatpush1.msra.mxu0 0.0
  %4321 = vmatprep.subr.mxu0 0.0
  %4322 = vmatpush1.msra.mxu0 0.0
  %4323 = vmatprep.subr.mxu0 0.0
  %4324 = vmatpush1.msra.mxu0 0.0
  %4325 = vmatprep.subr.mxu0 0.0
  %4326 = vmatpush1.msra.mxu0 0.0
  %4327 = vmatprep.subr.mxu0 0.0
  %4328 = vmatpush1.msra.mxu0 0.0
  %4329 = vmatprep.subr.mxu0 0.0
  %4330 = vmatpush1.msra.mxu0 0.0
  %4331 = vmatprep.subr.mxu0 0.0
  %4332 = vmatpush1.msra.mxu0 0.0
  %4333 = vmatprep.subr.mxu0 0.0
  %4334 = vmatpush1.msra.mxu0 0.0
  %4335 = vmatprep.subr.mxu0 0.0
  %4336 = vmatpush1.msra.mxu0 0.0
  %4337 = vmatprep.subr.mxu0 0.0
  %4338 = vmatpush1.msra.mxu0 0.0
  %4339 = vmatprep.subr.mxu0 0.0
  %4340 = vmatpush1.msra.mxu0 0.0
  %4341 = vmatprep.subr.mxu0 0.0
  %4342 = vmatpush1.msra.mxu0 0.0
  %4343 = vmatprep.subr.mxu0 0.0
  %4344 = vmatpush1.msra.mxu0 0.0
  %4345 = vmatprep.subr.mxu0 0.0
  %4346 = vmatpush1.msra.mxu0 0.0
  %4347 = vmatprep.subr.mxu0 0.0
  %4348 = vmatpush1.msra.mxu0 0.0
  %4349 = vmatprep.mubr.f32.mxu0 0.0
  %4350 = vmatmul.mubr.f32.gmra.mrb[0].mxu0 %v4267
  %v4351 = vpop.f32.mrb[0].mxu0
  %v4352 = vadd.f32 %v4238, %v4351
  %v4353 = vpop.f32.mrb[0].mxu0
  %4354 = vmatprep.mubr.f32.mxu0 0.0
  %4355 = vmatmul.mubr.f32.gmra.mrb[0].mxu0 %v4269
  %v4356 = vpop.f32.mrb[0].mxu0
  %v4357 = vadd.f32 %v4238, %v4356
  %v4358 = vpop.f32.mrb[0].mxu0
  %4359 = vmatprep.mubr.f32.mxu0 0.0
  %4360 = vmatmul.mubr.f32.gmra.mrb[0].mxu0 %v4271
  %v4361 = vpop.f32.mrb[0].mxu0
  %v4362 = vadd.f32 %v4238, %v4361
  %v4363 = vpop.f32.mrb[0].mxu0
  %4364 = vmatprep.mubr.f32.mxu0 0.0
  %4365 = vmatmul.mubr.f32.gmra.mrb[0].mxu0 %v4273
  %v4366 = vpop.f32.mrb[0].mxu0
  %v4367 = vadd.f32 %v4238, %v4366
  %v4368 = vpop.f32.mrb[0].mxu0
  %4369 = vmatprep.mubr.f32.mxu0 0.0
  %4370 = vmatmul.mubr.f32.gmra.mrb[0].mxu0 %v4275
  %v4371 = vpop.f32.mrb[0].mxu0
  %v4372 = vadd.f32 %v4238, %v4371
  %v4373 = vpop.f32.mrb[0].mxu0
  %4374 = vmatprep.mubr.f32.mxu0 0.0
  %4375 = vmatmul.mubr.f32.gmra.mrb[0].mxu0 %v4277
  %v4376 = vpop.f32.mrb[0].mxu0
  %v4377 = vadd.f32 %v4238, %v4376
  %v4378 = vpop.f32.mrb[0].mxu0
  %4379 = vmatprep.mubr.f32.mxu0 0.0
  %4380 = vmatmul.mubr.f32.gmra.mrb[0].mxu0 %v4279
  %v4381 = vpop.f32.mrb[0].mxu0
  %v4382 = vadd.f32 %v4238, %v4381
  %v4383 = vpop.f32.mrb[0].mxu0
  %4384 = vmatprep.mubr.f32.mxu0 0.0
  %4385 = vmatmul.mubr.f32.gmra.mrb[0].mxu0 %v4281
  %v4386 = vpop.f32.mrb[0].mxu0
  %v4387 = vadd.f32 %v4238, %v4386
  %v4388 = vpop.f32.mrb[0].mxu0
  %4389 = vmatprep.mubr.f32.mxu0 0.0
  %4390 = vmatmul.mubr.f32.gmra.mrb[0].mxu0 %v4283
  %v4391 = vpop.f32.mrb[0].mxu0
  %v4392 = vadd.f32 %v4238, %v4391
  %v4393 = vpop.f32.mrb[0].mxu0
  %4394 = vdwg.mxu0
  %4395 = vst.msk [vmem:[%s14] sm:$0xff] %vm53, %v4352
  %4396 = vst.msk [vmem:[%s14 + $0x8] sm:$0xff] %vm53, %v4357
  %4397 = vst.msk [vmem:[%s14 + $0x10] sm:$0xff] %vm53, %v4362
  %4398 = vst.msk [vmem:[%s14 + $0x18] sm:$0xff] %vm53, %v4367
  %4399 = vst.msk [vmem:[%s14 + $0x20] sm:$0xff] %vm53, %v4372
  %4400 = vst.msk [vmem:[%s14 + $0x28] sm:$0xff] %vm53, %v4377
  %4401 = vst.msk [vmem:[%s14 + $0x30] sm:$0xff] %vm53, %v4382
  %4402 = vst.msk [vmem:[%s14 + $0x38] sm:$0xff] %vm53, %v4387
  %4403 = vst.msk [vmem:[%s14 + $0x40] sm:$0xff] %vm53, %v4392
  %4405 = vrot.lane.b32.xlu0 %v4226, 32
  %v4406 = vpop.permute.xlu0 %4405
  %4408 = vst.msk [vmem:[%s15] sm:$0xff] %vm611, %v4406
  %4410 = vrot.lane.b32.xlu0 %v4228, 32
  %v4411 = vpop.permute.xlu0 %4410
  %s4413 = scalar_lea.vmem %s15, 8
  %4414 = vst.msk [vmem:[%s4413] sm:$0xff] %vm611, %v4411
  // Predicated region
  $region58: #{seq2seq_forward.1} parent=0 // pred_check
    _
  $region59: #{seq2seq_forward.1} parent=0 // pred_check_branch
    %4416 = sbr.rel (0) target = $region61
  $region60: #{seq2seq_forward.1} parent=0 // pred_region
    _
  $region61: #{seq2seq_forward.1} parent=0 // pred_fallthru
    _
  // Predicated region
  $region62: #{seq2seq_forward.1} parent=0 // pred_check
    _
  $region63: #{seq2seq_forward.1} parent=0 // pred_check_branch
    %4418 = sbr.rel (0) target = $region65
  $region64: #{seq2seq_forward.1} parent=0 // pred_region
    _
  $region65: #{seq2seq_forward.1} parent=0 // pred_fallthru
    _
  // Predicated region
  $region66: #{seq2seq_forward.1} parent=0 // pred_check
    _
  $region67: #{seq2seq_forward.1} parent=0 // pred_check_branch
    %4420 = sbr.rel (0) target = $region69
  $region68: #{seq2seq_forward.1} parent=0 // pred_region
    _
  $region69: #{seq2seq_forward.1} parent=0 // pred_fallthru
    _
  // Predicated region
  $region70: #{seq2seq_forward.1} parent=0 // pred_check
    _
  $region71: #{seq2seq_forward.1} parent=0 // pred_check_branch
    %4422 = sbr.rel (0) target = $region73
  $region72: #{seq2seq_forward.1} parent=0 // pred_region
    _
  $region73: #{seq2seq_forward.1} parent=0 // pred_fallthru
    _

</llo_original>
